<compile_context>
chip_gen: v6e
topology: v6e:2x2x1
jax: 0.10.0
libtpu: 0.0.40
codegen_flags: <defaults>
</compile_context>

<pallas_src>
import numpy as np
import jax
import jax.numpy as jnp
from jax.experimental import pallas as pl
from jax.experimental.pallas import tpu as pltpu


def _conv3d_kernel(x_ref, w_ref, b_ref, o_ref):
    # x_ref : (D+2, H+2, (W+2)*Cin)   one zero-padded sample, channels-last,
    #                                 (W, Cin) collapsed into the lane dim
    # w_ref : (9, (W+2)*Cin, W*Cout)  resident banded weight slabs, one per (kd, kh)
    # b_ref : (1, W*Cout)             resident bias row (bias[co] at lane w*Cout+co)
    # o_ref : (D, H, W*Cout)          output block, lane dim = W*Cout (no padding)
    dp2, hp2, kl = x_ref.shape
    d, h = dp2 - 2, hp2 - 2
    nl = o_ref.shape[-1]

    acc = jnp.zeros((d * h, nl), jnp.float32)
    for kd in range(3):
        for kh in range(3):
            # Sublane/major-dim shifted window; the kw & Cin contraction lives in
            # the banded weight slab, so no lane-granular gather is needed here.
            xs = x_ref[kd:kd + d, kh:kh + h, :].reshape(d * h, kl)
            acc = acc + jnp.dot(xs, w_ref[kd * 3 + kh],
                                preferred_element_type=jnp.float32)
    acc = acc + b_ref[...]
    o_ref[...] = acc.reshape(d, h, nl).astype(o_ref.dtype)


def conv3d_pallas(x_ncdhw, weight, bias):
    """Conv3d(kernel_size=3, stride=1, padding=1) with bias.

    x_ncdhw: (N, Cin, D, H, W)   weight: (Cout, Cin, 3, 3, 3)   bias: (Cout,)
    returns: (N, Cout, D, H, W)
    """
    N, Cin, D, H, W = x_ncdhw.shape
    Cout = weight.shape[0]
    Wp = W + 2

    # Activation: channels-last, zero-pad D/H/W by 1, collapse (W+2, Cin) into lanes.
    # TODO(synk): keep the surrounding model channels-last to drop this transpose pass.
    x = jnp.transpose(x_ncdhw, (0, 2, 3, 4, 1))                     # (N, D, H, W, Cin)
    x = jnp.pad(x, ((0, 0), (1, 1), (1, 1), (1, 1), (0, 0)))        # (N, D+2, H+2, W+2, Cin)
    x = x.reshape(N, D + 2, H + 2, Wp * Cin)

    # Weights: nine banded (Toeplitz over W) slabs, one per (kd, kh):
    #   T[kd,kh][(wi*Cin+ci), (wo*Cout+co)] = weight[co,ci,kd,kh,wi-wo] for wi-wo in {0,1,2}
    wt = jnp.transpose(weight, (2, 3, 4, 1, 0))                     # (3, 3, 3, Cin, Cout)
    diff = jnp.arange(Wp)[:, None] - jnp.arange(W)[None, :]         # (Wp, W)
    sel = (diff[None] == jnp.arange(3)[:, None, None]).astype(x.dtype)   # (3, Wp, W)
    T = jnp.einsum('kpw,dhkio->dhpiwo', sel, wt)                    # (3,3,Wp,Cin,W,Cout)
    T = T.reshape(9, Wp * Cin, W * Cout).astype(x.dtype)

    b_row = jnp.tile(bias.astype(jnp.float32), W).reshape(1, W * Cout)

    out = pl.pallas_call(
        _conv3d_kernel,
        out_shape=jax.ShapeDtypeStruct((N, D, H, W * Cout), x.dtype),
        grid_spec=pltpu.PrefetchScalarGridSpec(
            num_scalar_prefetch=0,
            grid=(N,),
            in_specs=[
                # whole padded sample: contiguous in HBM, auto-pipelined across n
                pl.BlockSpec((None, D + 2, H + 2, Wp * Cin), lambda n: (n, 0, 0, 0)),
                pl.BlockSpec((9, Wp * Cin, W * Cout), lambda n: (0, 0, 0)),   # resident
                pl.BlockSpec((1, W * Cout), lambda n: (0, 0)),                # resident
            ],
            out_specs=pl.BlockSpec((None, D, H, W * Cout), lambda n: (n, 0, 0, 0)),
        ),
        compiler_params=pltpu.CompilerParams(
            dimension_semantics=("parallel",)),
    )(x, T, b_row)

    # Interface glue back to the PyTorch NCDHW layout.
    out = out.reshape(N, D, H, W, Cout)
    return jnp.transpose(out, (0, 4, 1, 2, 3))


def in_conv_forward(x_ncdhw, weight, bias):
    y = conv3d_pallas(x_ncdhw, weight, bias)
    # Dropout3d(0.2): identity in eval mode.
    return y


if __name__ == "__main__":
    N, Cin, Cout, D, H, W = 2, 4, 8, 16, 16, 16

    key = jax.random.PRNGKey(0)
    kx, kw = jax.random.split(key)

    # Input
    x = jax.random.normal(kx, (N, Cin, D, H, W), dtype=jnp.float32)

    # Parameters: xavier_uniform_(gain=sqrt(2)) weight, zero bias (as in the module init).
    fan_in = Cin * 3 * 3 * 3
    fan_out = Cout * 3 * 3 * 3
    bound = float(np.sqrt(2.0) * np.sqrt(6.0 / (fan_in + fan_out)))
    weight = jax.random.uniform(kw, (Cout, Cin, 3, 3, 3), jnp.float32,
                                minval=-bound, maxval=bound)
    bias = jnp.zeros((Cout,), jnp.float32)

    fwd = jax.jit(in_conv_forward)
    out = jax.block_until_ready(fwd(x, weight, bias))

    # Correctness check against XLA's reference conv.
    ref = jax.lax.conv_general_dilated(
        x, weight, window_strides=(1, 1, 1),
        padding=((1, 1), (1, 1), (1, 1)),
        dimension_numbers=("NCDHW", "OIDHW", "NCDHW"))
    assert out.shape == (N, Cout, D, H, W)
    assert jnp.allclose(out, ref, atol=5e-4, rtol=5e-4), "mismatch vs reference conv3d"

    print("KERNEL_OK")
</pallas_src>

<mosaic_0001>
module attributes {stable_mosaic.version = 11 : i64} {
  func.func @_conv3d_kernel(%arg0: i32, %arg1: memref<1x18x18x72xf32, #tpu.memory_space<vmem>>, %arg2: memref<9x72x128xf32, #tpu.memory_space<vmem>>, %arg3: memref<1x128xf32, #tpu.memory_space<vmem>>, %arg4: memref<1x16x16x128xf32, #tpu.memory_space<vmem>>) attributes {dimension_semantics = [#tpu.dimension_semantics<parallel>], iteration_bounds = array<i64: 2>, scalar_prefetch = 0 : i64, scratch_operands = 0 : i64, tpu.core_type = #tpu.core_type<tc>, window_params = [{transform_indices = @transform_0, window_bounds = array<i64: 1, 18, 18, 72>}, {pipeline_mode = #tpu.pipeline_mode<synchronous>, transform_indices = @transform_1, window_bounds = array<i64: 9, 72, 128>}, {pipeline_mode = #tpu.pipeline_mode<synchronous>, transform_indices = @transform_2, window_bounds = array<i64: 1, 128>}, {transform_indices = @transform_3, window_bounds = array<i64: 1, 16, 16, 128>}]} {
    %cst = arith.constant 0.000000e+00 : f32
    %0 = vector.broadcast %cst : f32 to vector<256x128xf32>
    %c0 = arith.constant 0 : index
    %c0_0 = arith.constant 0 : index
    %c0_1 = arith.constant 0 : index
    %c0_2 = arith.constant 0 : index
    %1 = vector.load %arg1[%c0, %c0_0, %c0_1, %c0_2] : memref<1x18x18x72xf32, #tpu.memory_space<vmem>>, vector<1x16x16x72xf32>
    %2 = vector.shape_cast %1 : vector<1x16x16x72xf32> to vector<16x16x72xf32>
    %3 = vector.shape_cast %2 : vector<16x16x72xf32> to vector<256x72xf32>
    %c0_3 = arith.constant 0 : index
    %c0_4 = arith.constant 0 : index
    %c0_5 = arith.constant 0 : index
    %4 = vector.load %arg2[%c0_3, %c0_4, %c0_5] : memref<9x72x128xf32, #tpu.memory_space<vmem>>, vector<1x72x128xf32>
    %5 = vector.shape_cast %4 : vector<1x72x128xf32> to vector<72x128xf32>
    %cst_6 = arith.constant dense<0.000000e+00> : vector<256x128xf32>
    %6 = tpu.matmul %3, %5, %cst_6 {dimension_numbers = #tpu.dot_dimension_numbers<[1], [0], [0], [1], [0, 0, 1, 1], [], []>} : vector<256x72xf32>, vector<72x128xf32>, vector<256x128xf32> -> vector<256x128xf32>
    %7 = arith.addf %0, %6 : vector<256x128xf32>
    %c0_7 = arith.constant 0 : index
    %c0_8 = arith.constant 0 : index
    %c1 = arith.constant 1 : index
    %c0_9 = arith.constant 0 : index
    %8 = vector.load %arg1[%c0_7, %c0_8, %c1, %c0_9] : memref<1x18x18x72xf32, #tpu.memory_space<vmem>>, vector<1x16x16x72xf32>
    %9 = vector.shape_cast %8 : vector<1x16x16x72xf32> to vector<16x16x72xf32>
    %10 = vector.shape_cast %9 : vector<16x16x72xf32> to vector<256x72xf32>
    %c1_10 = arith.constant 1 : index
    %c0_11 = arith.constant 0 : index
    %c0_12 = arith.constant 0 : index
    %11 = vector.load %arg2[%c1_10, %c0_11, %c0_12] : memref<9x72x128xf32, #tpu.memory_space<vmem>>, vector<1x72x128xf32>
    %12 = vector.shape_cast %11 : vector<1x72x128xf32> to vector<72x128xf32>
    %cst_13 = arith.constant dense<0.000000e+00> : vector<256x128xf32>
    %13 = tpu.matmul %10, %12, %cst_13 {dimension_numbers = #tpu.dot_dimension_numbers<[1], [0], [0], [1], [0, 0, 1, 1], [], []>} : vector<256x72xf32>, vector<72x128xf32>, vector<256x128xf32> -> vector<256x128xf32>
    %14 = arith.addf %7, %13 : vector<256x128xf32>
    %c0_14 = arith.constant 0 : index
    %c0_15 = arith.constant 0 : index
    %c2 = arith.constant 2 : index
    %c0_16 = arith.constant 0 : index
    %15 = vector.load %arg1[%c0_14, %c0_15, %c2, %c0_16] : memref<1x18x18x72xf32, #tpu.memory_space<vmem>>, vector<1x16x16x72xf32>
    %16 = vector.shape_cast %15 : vector<1x16x16x72xf32> to vector<16x16x72xf32>
    %17 = vector.shape_cast %16 : vector<16x16x72xf32> to vector<256x72xf32>
    %c2_17 = arith.constant 2 : index
    %c0_18 = arith.constant 0 : index
    %c0_19 = arith.constant 0 : index
    %18 = vector.load %arg2[%c2_17, %c0_18, %c0_19] : memref<9x72x128xf32, #tpu.memory_space<vmem>>, vector<1x72x128xf32>
    %19 = vector.shape_cast %18 : vector<1x72x128xf32> to vector<72x128xf32>
    %cst_20 = arith.constant dense<0.000000e+00> : vector<256x128xf32>
    %20 = tpu.matmul %17, %19, %cst_20 {dimension_numbers = #tpu.dot_dimension_numbers<[1], [0], [0], [1], [0, 0, 1, 1], [], []>} : vector<256x72xf32>, vector<72x128xf32>, vector<256x128xf32> -> vector<256x128xf32>
    %21 = arith.addf %14, %20 : vector<256x128xf32>
    %c0_21 = arith.constant 0 : index
    %c1_22 = arith.constant 1 : index
    %c0_23 = arith.constant 0 : index
    %c0_24 = arith.constant 0 : index
    %22 = vector.load %arg1[%c0_21, %c1_22, %c0_23, %c0_24] : memref<1x18x18x72xf32, #tpu.memory_space<vmem>>, vector<1x16x16x72xf32>
    %23 = vector.shape_cast %22 : vector<1x16x16x72xf32> to vector<16x16x72xf32>
    %24 = vector.shape_cast %23 : vector<16x16x72xf32> to vector<256x72xf32>
    %c3 = arith.constant 3 : index
    %c0_25 = arith.constant 0 : index
    %c0_26 = arith.constant 0 : index
    %25 = vector.load %arg2[%c3, %c0_25, %c0_26] : memref<9x72x128xf32, #tpu.memory_space<vmem>>, vector<1x72x128xf32>
    %26 = vector.shape_cast %25 : vector<1x72x128xf32> to vector<72x128xf32>
    %cst_27 = arith.constant dense<0.000000e+00> : vector<256x128xf32>
    %27 = tpu.matmul %24, %26, %cst_27 {dimension_numbers = #tpu.dot_dimension_numbers<[1], [0], [0], [1], [0, 0, 1, 1], [], []>} : vector<256x72xf32>, vector<72x128xf32>, vector<256x128xf32> -> vector<256x128xf32>
    %28 = arith.addf %21, %27 : vector<256x128xf32>
    %c0_28 = arith.constant 0 : index
    %c1_29 = arith.constant 1 : index
    %c1_30 = arith.constant 1 : index
    %c0_31 = arith.constant 0 : index
    %29 = vector.load %arg1[%c0_28, %c1_29, %c1_30, %c0_31] : memref<1x18x18x72xf32, #tpu.memory_space<vmem>>, vector<1x16x16x72xf32>
    %30 = vector.shape_cast %29 : vector<1x16x16x72xf32> to vector<16x16x72xf32>
    %31 = vector.shape_cast %30 : vector<16x16x72xf32> to vector<256x72xf32>
    %c4 = arith.constant 4 : index
    %c0_32 = arith.constant 0 : index
    %c0_33 = arith.constant 0 : index
    %32 = vector.load %arg2[%c4, %c0_32, %c0_33] : memref<9x72x128xf32, #tpu.memory_space<vmem>>, vector<1x72x128xf32>
    %33 = vector.shape_cast %32 : vector<1x72x128xf32> to vector<72x128xf32>
    %cst_34 = arith.constant dense<0.000000e+00> : vector<256x128xf32>
    %34 = tpu.matmul %31, %33, %cst_34 {dimension_numbers = #tpu.dot_dimension_numbers<[1], [0], [0], [1], [0, 0, 1, 1], [], []>} : vector<256x72xf32>, vector<72x128xf32>, vector<256x128xf32> -> vector<256x128xf32>
    %35 = arith.addf %28, %34 : vector<256x128xf32>
    %c0_35 = arith.constant 0 : index
    %c1_36 = arith.constant 1 : index
    %c2_37 = arith.constant 2 : index
    %c0_38 = arith.constant 0 : index
    %36 = vector.load %arg1[%c0_35, %c1_36, %c2_37, %c0_38] : memref<1x18x18x72xf32, #tpu.memory_space<vmem>>, vector<1x16x16x72xf32>
    %37 = vector.shape_cast %36 : vector<1x16x16x72xf32> to vector<16x16x72xf32>
    %38 = vector.shape_cast %37 : vector<16x16x72xf32> to vector<256x72xf32>
    %c5 = arith.constant 5 : index
    %c0_39 = arith.constant 0 : index
    %c0_40 = arith.constant 0 : index
    %39 = vector.load %arg2[%c5, %c0_39, %c0_40] : memref<9x72x128xf32, #tpu.memory_space<vmem>>, vector<1x72x128xf32>
    %40 = vector.shape_cast %39 : vector<1x72x128xf32> to vector<72x128xf32>
    %cst_41 = arith.constant dense<0.000000e+00> : vector<256x128xf32>
    %41 = tpu.matmul %38, %40, %cst_41 {dimension_numbers = #tpu.dot_dimension_numbers<[1], [0], [0], [1], [0, 0, 1, 1], [], []>} : vector<256x72xf32>, vector<72x128xf32>, vector<256x128xf32> -> vector<256x128xf32>
    %42 = arith.addf %35, %41 : vector<256x128xf32>
    %c0_42 = arith.constant 0 : index
    %c2_43 = arith.constant 2 : index
    %c0_44 = arith.constant 0 : index
    %c0_45 = arith.constant 0 : index
    %43 = vector.load %arg1[%c0_42, %c2_43, %c0_44, %c0_45] : memref<1x18x18x72xf32, #tpu.memory_space<vmem>>, vector<1x16x16x72xf32>
    %44 = vector.shape_cast %43 : vector<1x16x16x72xf32> to vector<16x16x72xf32>
    %45 = vector.shape_cast %44 : vector<16x16x72xf32> to vector<256x72xf32>
    %c6 = arith.constant 6 : index
    %c0_46 = arith.constant 0 : index
    %c0_47 = arith.constant 0 : index
    %46 = vector.load %arg2[%c6, %c0_46, %c0_47] : memref<9x72x128xf32, #tpu.memory_space<vmem>>, vector<1x72x128xf32>
    %47 = vector.shape_cast %46 : vector<1x72x128xf32> to vector<72x128xf32>
    %cst_48 = arith.constant dense<0.000000e+00> : vector<256x128xf32>
    %48 = tpu.matmul %45, %47, %cst_48 {dimension_numbers = #tpu.dot_dimension_numbers<[1], [0], [0], [1], [0, 0, 1, 1], [], []>} : vector<256x72xf32>, vector<72x128xf32>, vector<256x128xf32> -> vector<256x128xf32>
    %49 = arith.addf %42, %48 : vector<256x128xf32>
    %c0_49 = arith.constant 0 : index
    %c2_50 = arith.constant 2 : index
    %c1_51 = arith.constant 1 : index
    %c0_52 = arith.constant 0 : index
    %50 = vector.load %arg1[%c0_49, %c2_50, %c1_51, %c0_52] : memref<1x18x18x72xf32, #tpu.memory_space<vmem>>, vector<1x16x16x72xf32>
    %51 = vector.shape_cast %50 : vector<1x16x16x72xf32> to vector<16x16x72xf32>
    %52 = vector.shape_cast %51 : vector<16x16x72xf32> to vector<256x72xf32>
    %c7 = arith.constant 7 : index
    %c0_53 = arith.constant 0 : index
    %c0_54 = arith.constant 0 : index
    %53 = vector.load %arg2[%c7, %c0_53, %c0_54] : memref<9x72x128xf32, #tpu.memory_space<vmem>>, vector<1x72x128xf32>
    %54 = vector.shape_cast %53 : vector<1x72x128xf32> to vector<72x128xf32>
    %cst_55 = arith.constant dense<0.000000e+00> : vector<256x128xf32>
    %55 = tpu.matmul %52, %54, %cst_55 {dimension_numbers = #tpu.dot_dimension_numbers<[1], [0], [0], [1], [0, 0, 1, 1], [], []>} : vector<256x72xf32>, vector<72x128xf32>, vector<256x128xf32> -> vector<256x128xf32>
    %56 = arith.addf %49, %55 : vector<256x128xf32>
    %c0_56 = arith.constant 0 : index
    %c2_57 = arith.constant 2 : index
    %c2_58 = arith.constant 2 : index
    %c0_59 = arith.constant 0 : index
    %57 = vector.load %arg1[%c0_56, %c2_57, %c2_58, %c0_59] : memref<1x18x18x72xf32, #tpu.memory_space<vmem>>, vector<1x16x16x72xf32>
    %58 = vector.shape_cast %57 : vector<1x16x16x72xf32> to vector<16x16x72xf32>
    %59 = vector.shape_cast %58 : vector<16x16x72xf32> to vector<256x72xf32>
    %c8 = arith.constant 8 : index
    %c0_60 = arith.constant 0 : index
    %c0_61 = arith.constant 0 : index
    %60 = vector.load %arg2[%c8, %c0_60, %c0_61] : memref<9x72x128xf32, #tpu.memory_space<vmem>>, vector<1x72x128xf32>
    %61 = vector.shape_cast %60 : vector<1x72x128xf32> to vector<72x128xf32>
    %cst_62 = arith.constant dense<0.000000e+00> : vector<256x128xf32>
    %62 = tpu.matmul %59, %61, %cst_62 {dimension_numbers = #tpu.dot_dimension_numbers<[1], [0], [0], [1], [0, 0, 1, 1], [], []>} : vector<256x72xf32>, vector<72x128xf32>, vector<256x128xf32> -> vector<256x128xf32>
    %63 = arith.addf %56, %62 : vector<256x128xf32>
    %c0_63 = arith.constant 0 : index
    %c0_64 = arith.constant 0 : index
    %64 = vector.load %arg3[%c0_63, %c0_64] : memref<1x128xf32, #tpu.memory_space<vmem>>, vector<1x128xf32>
    %65 = vector.broadcast %64 : vector<1x128xf32> to vector<256x128xf32>
    %66 = arith.addf %63, %65 : vector<256x128xf32>
    %67 = vector.shape_cast %66 : vector<256x128xf32> to vector<16x16x128xf32>
    %c0_65 = arith.constant 0 : index
    %c0_66 = arith.constant 0 : index
    %c0_67 = arith.constant 0 : index
    %c0_68 = arith.constant 0 : index
    %68 = vector.load %arg4[%c0_65, %c0_66, %c0_67, %c0_68] : memref<1x16x16x128xf32, #tpu.memory_space<vmem>>, vector<1x16x16x128xf32>
    %69 = vector.shape_cast %68 : vector<1x16x16x128xf32> to vector<16x16x128xf32>
    %70 = vector.shape_cast %67 : vector<16x16x128xf32> to vector<1x16x16x128xf32>
    tpu.vector_store %arg4[%c0_65, %c0_66, %c0_67, %c0_68], %70 {strides = array<i32>} : memref<1x16x16x128xf32, #tpu.memory_space<vmem>>, vector<1x16x16x128xf32>,
    return
  }
  func.func @transform_0(%arg0: i32) -> (i32, i32, i32, i32) {
    %c0_i32 = arith.constant 0 : i32
    %c0_i32_0 = arith.constant 0 : i32
    %c0_i32_1 = arith.constant 0 : i32
    %c0_i32_2 = arith.constant 0 : i32
    return %arg0, %c0_i32, %c0_i32_0, %c0_i32_1 : i32, i32, i32, i32
  }
  func.func @transform_1(%arg0: i32) -> (i32, i32, i32) {
    %c0_i32 = arith.constant 0 : i32
    %c0_i32_0 = arith.constant 0 : i32
    %c0_i32_1 = arith.constant 0 : i32
    %c0_i32_2 = arith.constant 0 : i32
    return %c0_i32, %c0_i32_0, %c0_i32_1 : i32, i32, i32
  }
  func.func @transform_2(%arg0: i32) -> (i32, i32) {
    %c0_i32 = arith.constant 0 : i32
    %c0_i32_0 = arith.constant 0 : i32
    %c0_i32_1 = arith.constant 0 : i32
    return %c0_i32, %c0_i32_0 : i32, i32
  }
  func.func @transform_3(%arg0: i32) -> (i32, i32, i32, i32) {
    %c0_i32 = arith.constant 0 : i32
    %c0_i32_0 = arith.constant 0 : i32
    %c0_i32_1 = arith.constant 0 : i32
    %c0_i32_2 = arith.constant 0 : i32
    return %arg0, %c0_i32, %c0_i32_0, %c0_i32_1 : i32, i32, i32, i32
  }
}

</mosaic_0001>

<llo_original>
// kernel: tile.8
$region0: #{tile.8}
  #allocation0 [shape = 's32[1]{0}', space=sflag, size = 0x4, scoped, tag = 'scoped memory for tile.8']
  %s0 = inlined_call_operand.vmem [shape: f32[8], index: 0, kind: input, shape index: {}]
  %s1 = inlined_call_operand.vmem [shape: f32[16,8], index: 1, kind: output, shape index: {}]
  // Predicated region
  $region2: #{tile.8} parent=0 // pred_check
    _
  $region3: #{tile.8} parent=0 // pred_check_branch
    %3 = sbr.rel (0) target = $region5
  $region4: #{tile.8} parent=0 // pred_region
    _
  $region5: #{tile.8} parent=0 // pred_fallthru
    _
  %v4 = vld [vmem:[%s0] ss:$0 sm:$0xff]
  %5 = vst [vmem:[%s1] sm:$0xff] %v4
  %s6 = scalar_lea.vmem %s1, 8
  %7 = vst [vmem:[%s6] sm:$0xff] %v4

// kernel: tile.9
$region0: #{tile.9}
  %s0 = inlined_call_operand.vmem [shape: f32[16,8], index: 0, kind: input, shape index: {}]
  %s1 = inlined_call_operand.vmem [shape: f32[1,128], index: 1, kind: output, shape index: {}]
  $region1: #{tile.9} parent=0
    #allocation0 [shape = 'u8[4096]{0}', space=vmem, size = 0x1000, scoped, tag = 'scoped mem for output reshape']
    %v2 = vld [vmem:[%s0] sm:$0x1]
    %vm3 = vcmask 64512
    %4 = vst.msk [vmem:[#allocation0] sm:$0x1] %vm3, %v2
    %s5 = scalar_lea.vmem %s0, 15
    %v6 = vld [vmem:[%s5] sm:$0x1]
    %7 = vrot.lane.b32.xlu0 %v6, 120
    %v8 = vpop.permute.xlu0 %7
    %vm9 = vcmask 1048512
    %10 = vst.msk [vmem:[#allocation0] sm:$0x1] %vm9, %v8
    %s11 = scalar_lea.vmem %s0, 14
    %v12 = vld [vmem:[%s11] sm:$0x1]
    %13 = vrot.lane.b32.xlu0 %v12, 112
    %v14 = vpop.permute.xlu0 %13
    %vm15 = vcmask 982912
    %16 = vst.msk [vmem:[#allocation0] sm:$0x1] %vm15, %v14
    %s17 = scalar_lea.vmem %s0, 13
    %v18 = vld [vmem:[%s17] sm:$0x1]
    %19 = vrot.lane.b32.xlu0 %v18, 104
    %v20 = vpop.permute.xlu0 %19
    %vm21 = vcmask 917312
    %22 = vst.msk [vmem:[#allocation0] sm:$0x1] %vm21, %v20
    %s23 = scalar_lea.vmem %s0, 12
    %v24 = vld [vmem:[%s23] sm:$0x1]
    %25 = vrot.lane.b32.xlu0 %v24, 96
    %v26 = vpop.permute.xlu0 %25
    %vm27 = vcmask 851712
    %28 = vst.msk [vmem:[#allocation0] sm:$0x1] %vm27, %v26
    %s29 = scalar_lea.vmem %s0, 11
    %v30 = vld [vmem:[%s29] sm:$0x1]
    %31 = vrot.lane.b32.xlu0 %v30, 88
    %v32 = vpop.permute.xlu0 %31
    %vm33 = vcmask 786112
    %34 = vst.msk [vmem:[#allocation0] sm:$0x1] %vm33, %v32
    %s35 = scalar_lea.vmem %s0, 10
    %v36 = vld [vmem:[%s35] sm:$0x1]
    %37 = vrot.lane.b32.xlu0 %v36, 80
    %v38 = vpop.permute.xlu0 %37
    %vm39 = vcmask 720512
    %40 = vst.msk [vmem:[#allocation0] sm:$0x1] %vm39, %v38
    %s41 = scalar_lea.vmem %s0, 9
    %v42 = vld [vmem:[%s41] sm:$0x1]
    %43 = vrot.lane.b32.xlu0 %v42, 72
    %v44 = vpop.permute.xlu0 %43
    %vm45 = vcmask 654912
    %46 = vst.msk [vmem:[#allocation0] sm:$0x1] %vm45, %v44
    %s47 = scalar_lea.vmem %s0, 8
    %v48 = vld [vmem:[%s47] sm:$0x1]
    %49 = vrot.lane.b32.xlu0 %v48, 64
    %v50 = vpop.permute.xlu0 %49
    %vm51 = vcmask 589312
    %52 = vst.msk [vmem:[#allocation0] sm:$0x1] %vm51, %v50
    %s53 = scalar_lea.vmem %s0, 7
    %v54 = vld [vmem:[%s53] sm:$0x1]
    %55 = vrot.lane.b32.xlu0 %v54, 56
    %v56 = vpop.permute.xlu0 %55
    %vm57 = vcmask 523712
    %58 = vst.msk [vmem:[#allocation0] sm:$0x1] %vm57, %v56
    %s59 = scalar_lea.vmem %s0, 6
    %v60 = vld [vmem:[%s59] sm:$0x1]
    %61 = vrot.lane.b32.xlu0 %v60, 48
    %v62 = vpop.permute.xlu0 %61
    %vm63 = vcmask 458112
    %64 = vst.msk [vmem:[#allocation0] sm:$0x1] %vm63, %v62
    %s65 = scalar_lea.vmem %s0, 5
    %v66 = vld [vmem:[%s65] sm:$0x1]
    %67 = vrot.lane.b32.xlu0 %v66, 40
    %v68 = vpop.permute.xlu0 %67
    %vm69 = vcmask 392512
    %70 = vst.msk [vmem:[#allocation0] sm:$0x1] %vm69, %v68
    %s71 = scalar_lea.vmem %s0, 4
    %v72 = vld [vmem:[%s71] sm:$0x1]
    %73 = vrot.lane.b32.xlu0 %v72, 32
    %v74 = vpop.permute.xlu0 %73
    %vm75 = vcmask 326912
    %76 = vst.msk [vmem:[#allocation0] sm:$0x1] %vm75, %v74
    %s77 = scalar_lea.vmem %s0, 3
    %v78 = vld [vmem:[%s77] sm:$0x1]
    %79 = vrot.lane.b32.xlu0 %v78, 24
    %v80 = vpop.permute.xlu0 %79
    %vm81 = vcmask 261312
    %82 = vst.msk [vmem:[#allocation0] sm:$0x1] %vm81, %v80
    %s83 = scalar_lea.vmem %s0, 2
    %v84 = vld [vmem:[%s83] sm:$0x1]
    %85 = vrot.lane.b32.xlu0 %v84, 16
    %v86 = vpop.permute.xlu0 %85
    %vm87 = vcmask 195712
    %88 = vst.msk [vmem:[#allocation0] sm:$0x1] %vm87, %v86
    %s89 = scalar_lea.vmem %s0, 1
    %v90 = vld [vmem:[%s89] sm:$0x1]
    %91 = vrot.lane.b32.xlu0 %v90, 8
    %v92 = vpop.permute.xlu0 %91
    %vm93 = vcmask 130112
    %94 = vst.msk [vmem:[#allocation0] sm:$0x1] %vm93, %v92
    %s96 = sshll.u32 1, 1
    %s97 = ssub.s32 %s96, 1
    %v99 = vld [vmem:[#allocation0] sm:%s97]
    %s100 = sshll.u32 1, 1
    %s101 = ssub.s32 %s100, 1
    %102 = vst [vmem:[%s1] sm:%s101] %v99

// kernel: in_conv_forward.1
$region0: #{in_conv_forward.1}
  #allocation0 [shape = 'u32[]', space=smem, size = 0x4, offset = 0x4, fixed_abs, tag = 'smem constant byte address 0x4 - core index']
  #allocation1 [shape = 'u32[144,128]{1,0:T(1,128)}', space=vmem, size = 0x12000, scoped, tag = 'internal scratch']
  %s0 = inlined_call_operand.vmem [shape: f32[2,18,18,72], index: 0, kind: input, shape index: {}]
  %s1 = inlined_call_operand.vmem [shape: f32[9,72,128], index: 1, kind: input, shape index: {}]
  %s2 = inlined_call_operand.vmem [shape: f32[1,128], index: 2, kind: input, shape index: {}]
  %s3 = inlined_call_operand.vmem [shape: f32[2,16,16,128], index: 3, kind: output, shape index: {}]
  %s4 = sld [smem:[#allocation0]]
  $region45: #{in_conv_forward.1} parent=0
    _
  %s6 = ssub.s32 1, %s4
  %s7 = scalar_select 0, %s6, %s4
  loop: start=0, step=1, limit=4
  $region2: #{in_conv_forward.1} parent=0 // loop_pre_header
    _
  $region3: #{in_conv_forward.1} parent=0 // loop_header
    %s9 = sphi 0, %s13
    %p10 = scmp.ge.s32.totalorder %s9, 4
    %s19 = sphi 0, %s21
    %s22 = sphi 0, %s19
    %s23 = sphi 0, %s22
    %s39 = sphi 0, %s23
    %s43 = sphi 0, %s43
    %s45 = sphi 0, %s43
    %s46 = sphi 0, %s45
    %s60 = sphi 0, %s46
    %s64 = sphi 0, %s64
    %s66 = sphi 0, %s64
    %s67 = sphi 0, %s66
    %s81 = sphi 0, %s67
    %s87 = sphi 0, %s89
    %s90 = sphi 0, %s87
    %s91 = sphi 0, %s90
    %s107 = sphi 0, %s91
  $region4: #{in_conv_forward.1} parent=0 // loop_header_branch
    %12 = sbr.rel (%p10) target = $region8
  $region5: #{in_conv_forward.1} parent=0 // loop_body
    %s14 = ssub.s32 %s9, 1
    %s15 = ssub.s32 %s9, 2
    %s16 = sadd.s32 %s9, 1
    %s17 = ssub.s32 %s9, %s16
    %p18 = scmp.eq.s32.totalorder %s17, 0
    %s20 = sadd.s32 %s19, 1
    %s21 = scalar_select %p18, %s19, %s20
    %p24 = pneg %p18
    %p25 = scmp.eq.s32.totalorder %s9, 1
    %p26 = por %p24, %p25
    %p27 = scmp.ne.s32.totalorder %s19, %s22
    %p28 = scmp.eq.s32.totalorder %s9, 0
    %p29 = por %p27, %p28
    %p30 = scmp.ne.s32.totalorder %s19, %s22
    %p31 = scmp.eq.s32.totalorder %s14, 1
    %p32 = por %p30, %p31
    %p33 = scmp.ne.s32.totalorder %s22, %s23
    %p34 = scmp.eq.s32.totalorder %s14, 0
    %p35 = por %p33, %p34
    %p36 = scmp.ne.s32.totalorder %s22, %s23
    %p37 = scmp.eq.s32.totalorder %s15, 1
    %p38 = por %p36, %p37
    %p40 = scmp.ne.s32.totalorder %s23, %s39
    %p41 = scmp.eq.s32.totalorder %s15, 0
    %p42 = por %p40, %p41
    %s44 = sadd.s32 %s43, 1
    %p47 = scmp.eq.s32.totalorder %s9, 1
    %p48 = scmp.ne.s32.totalorder %s43, %s45
    %p49 = scmp.eq.s32.totalorder %s9, 0
    %p50 = por %p48, %p49
    %p51 = scmp.ne.s32.totalorder %s43, %s45
    %p52 = scmp.eq.s32.totalorder %s14, 1
    %p53 = por %p51, %p52
    %p54 = scmp.ne.s32.totalorder %s45, %s46
    %p55 = scmp.eq.s32.totalorder %s14, 0
    %p56 = por %p54, %p55
    %p57 = scmp.ne.s32.totalorder %s45, %s46
    %p58 = scmp.eq.s32.totalorder %s15, 1
    %p59 = por %p57, %p58
    %p61 = scmp.ne.s32.totalorder %s46, %s60
    %p62 = scmp.eq.s32.totalorder %s15, 0
    %p63 = por %p61, %p62
    %s65 = sadd.s32 %s64, 1
    %p68 = scmp.eq.s32.totalorder %s9, 1
    %p69 = scmp.ne.s32.totalorder %s64, %s66
    %p70 = scmp.eq.s32.totalorder %s9, 0
    %p71 = por %p69, %p70
    %p72 = scmp.ne.s32.totalorder %s64, %s66
    %p73 = scmp.eq.s32.totalorder %s14, 1
    %p74 = por %p72, %p73
    %p75 = scmp.ne.s32.totalorder %s66, %s67
    %p76 = scmp.eq.s32.totalorder %s14, 0
    %p77 = por %p75, %p76
    %p78 = scmp.ne.s32.totalorder %s66, %s67
    %p79 = scmp.eq.s32.totalorder %s15, 1
    %p80 = por %p78, %p79
    %p82 = scmp.ne.s32.totalorder %s67, %s81
    %p83 = scmp.eq.s32.totalorder %s15, 0
    %p84 = por %p82, %p83
    %s85 = ssub.s32 %s9, %s16
    %p86 = scmp.eq.s32.totalorder %s85, 0
    %s88 = sadd.s32 %s87, 1
    %s89 = scalar_select %p86, %s87, %s88
    %p92 = pneg %p86
    %p93 = scmp.eq.s32.totalorder %s9, 1
    %p94 = por %p92, %p93
    %p95 = scmp.ne.s32.totalorder %s87, %s90
    %p96 = scmp.eq.s32.totalorder %s9, 0
    %p97 = por %p95, %p96
    %p98 = scmp.ne.s32.totalorder %s87, %s90
    %p99 = scmp.eq.s32.totalorder %s14, 1
    %p100 = por %p98, %p99
    %p101 = scmp.ne.s32.totalorder %s90, %s91
    %p102 = scmp.eq.s32.totalorder %s14, 0
    %p103 = por %p101, %p102
    %p104 = scmp.ne.s32.totalorder %s90, %s91
    %p105 = scmp.eq.s32.totalorder %s15, 1
    %p106 = por %p104, %p105
    %p108 = scmp.ne.s32.totalorder %s91, %s107
    %p109 = scmp.eq.s32.totalorder %s15, 0
    %p110 = por %p108, %p109
    %p111 = scmp.le.s32.totalorder 1, %s9
    %p112 = scmp.lt.s32.totalorder %s9, 3
    %p113 = pnand %p111, %p112
    %p114 = pneg %p113
    // Predicated region
    $region9: #{in_conv_forward.1} parent=5 // pred_check
      _
    $region10: #{in_conv_forward.1} parent=5 // pred_check_branch
      %116 = sbr.rel (%p113) target = $region12
    $region11: #{in_conv_forward.1} parent=5 // pred_region
      %s117 = ssub.s32 %s9, 1
      // Predicated region
      $region13: #{in_conv_forward.1} parent=11 // pred_check
        %p118 = pneg %p56
      $region14: #{in_conv_forward.1} parent=11 // pred_check_branch
        %120 = sbr.rel (%p118) target = $region16
      $region15: #{in_conv_forward.1} parent=11 // pred_region
        _
      $region16: #{in_conv_forward.1} parent=11 // pred_fallthru
        _
      // Predicated region
      $region17: #{in_conv_forward.1} parent=11 // pred_check
        %p121 = pneg %p77
      $region18: #{in_conv_forward.1} parent=11 // pred_check_branch
        %123 = sbr.rel (%p121) target = $region20
      $region19: #{in_conv_forward.1} parent=11 // pred_region
        _
      $region20: #{in_conv_forward.1} parent=11 // pred_fallthru
        _
    $region12: #{in_conv_forward.1} parent=5 // pred_fallthru
      _
    %p124 = scmp.lt.s32.totalorder %s9, 2
    // Predicated region
    $region21: #{in_conv_forward.1} parent=5 // pred_check
      %p125 = pneg %p124
    $region22: #{in_conv_forward.1} parent=5 // pred_check_branch
      %127 = sbr.rel (%p125) target = $region24
    $region23: #{in_conv_forward.1} parent=5 // pred_region
      // Predicated region
      $region25: #{in_conv_forward.1} parent=23 // pred_check
        %p128 = pneg %p29
      $region26: #{in_conv_forward.1} parent=23 // pred_check_branch
        %130 = sbr.rel (%p128) target = $region28
      $region27: #{in_conv_forward.1} parent=23 // pred_region
        %p131 = scmp.lt.s32.totalorder %s9, 1
        %s132 = scalar_select %p131, %s9, 1
        %s133 = smul.addr %s132, 54
        %s134 = smul.addr %s133, 8
        %s135 = scalar_lea.vmem %s0, %s134
      $region28: #{in_conv_forward.1} parent=23 // pred_fallthru
        _
    $region24: #{in_conv_forward.1} parent=5 // pred_fallthru
      _
    %p136 = scmp.le.s32.totalorder 1, %s9
    %p137 = scmp.lt.s32.totalorder %s9, 3
    %p138 = pnand %p136, %p137
    %p139 = pneg %p138
    // Predicated region
    $region29: #{in_conv_forward.1} parent=5 // pred_check
      _
    $region30: #{in_conv_forward.1} parent=5 // pred_check_branch
      %141 = sbr.rel (%p138) target = $region32
    $region31: #{in_conv_forward.1} parent=5 // pred_region
      %s142 = ssub.s32 %s9, 1
      %p143 = scmp.lt.s32.totalorder %s14, 1
      %s144 = scalar_select %p143, %s14, 1
      %s145 = smul.addr %s144, 54
      %s146 = smul.addr %s145, 8
      %s147 = scalar_lea.vmem %s0, %s146
      %p148 = pneg %p35
      %p149 = pneg %p32
      %p150 = pneg %p56
      %p151 = pneg %p53
      %p152 = pneg %p77
      %p153 = pneg %p74
      %p154 = pneg %p103
      %p155 = pneg %p100
      %p156 = scmp.lt.s32.totalorder %s14, 1
      %s157 = scalar_select %p156, %s14, 1
      %s158 = smul.addr %s157, 32
      %s159 = smul.addr %s158, 8
      %s160 = scalar_lea.vmem %s3, %s159
      %p161 = scmp.lt.s32.totalorder %s14, 1
      %s162 = scalar_select %p161, %s14, 1
      %s163 = smul.addr %s162, 54
      %s164 = smul.addr %s163, 8
      %s165 = scalar_lea.vmem %s0, %s164
      %p166 = scmp.lt.s32.totalorder %s14, 1
      %s167 = scalar_select %p166, %s14, 1
      %s168 = smul.addr %s167, 32
      %s169 = smul.addr %s168, 8
      %s170 = scalar_lea.vmem %s3, %s169
      %v171 = vld [vmem:[%s165] sm:$0xff]
      %v172 = vld [vmem:[%s165 + $0x8] sm:$0xff]
      %v173 = vld [vmem:[%s165 + $0x18] sm:$0xff]
      %v174 = vld [vmem:[%s165 + $0x20] sm:$0xff]
      %v175 = vld [vmem:[%s165 + $0x30] sm:$0xff]
      %v176 = vld [vmem:[%s165 + $0x38] sm:$0xff]
      %v177 = vld [vmem:[%s165 + $0x48] sm:$0xff]
      %v178 = vld [vmem:[%s165 + $0x50] sm:$0xff]
      %v179 = vld [vmem:[%s165 + $0x60] sm:$0xff]
      %v180 = vld [vmem:[%s165 + $0x68] sm:$0xff]
      %v181 = vld [vmem:[%s165 + $0x78] sm:$0xff]
      %v182 = vld [vmem:[%s165 + $0x80] sm:$0xff]
      %v183 = vld [vmem:[%s165 + $0x90] sm:$0xff]
      %v184 = vld [vmem:[%s165 + $0x98] sm:$0xff]
      %v185 = vld [vmem:[%s165 + $0xa8] sm:$0xff]
      %v186 = vld [vmem:[%s165 + $0xb0] sm:$0xff]
      %v187 = vld [vmem:[%s165 + $0xc0] sm:$0xff]
      %v188 = vld [vmem:[%s165 + $0xc8] sm:$0xff]
      %v189 = vld [vmem:[%s165 + $0xd8] sm:$0xff]
      %v190 = vld [vmem:[%s165 + $0xe0] sm:$0xff]
      %v191 = vld [vmem:[%s165 + $0xf0] sm:$0xff]
      %v192 = vld [vmem:[%s165 + $0xf8] sm:$0xff]
      %v193 = vld [vmem:[%s165 + $0x108] sm:$0xff]
      %v194 = vld [vmem:[%s165 + $0x110] sm:$0xff]
      %v195 = vld [vmem:[%s165 + $0x120] sm:$0xff]
      %v196 = vld [vmem:[%s165 + $0x128] sm:$0xff]
      %v197 = vld [vmem:[%s165 + $0x138] sm:$0xff]
      %v198 = vld [vmem:[%s165 + $0x140] sm:$0xff]
      %v199 = vld [vmem:[%s165 + $0x150] sm:$0xff]
      %v200 = vld [vmem:[%s165 + $0x158] sm:$0xff]
      %v201 = vld [vmem:[%s165 + $0x168] sm:$0xff]
      %v202 = vld [vmem:[%s165 + $0x170] sm:$0xff]
      %v203 = vld [vmem:[%s1] sm:$0xff]
      %v204 = vld [vmem:[%s1 + $0x8] sm:$0xff]
      %v205 = vld [vmem:[%s1 + $0x10] sm:$0xff]
      %v206 = vld [vmem:[%s1 + $0x18] sm:$0xff]
      %v207 = vld [vmem:[%s1 + $0x20] sm:$0xff]
      %v208 = vld [vmem:[%s1 + $0x28] sm:$0xff]
      %v209 = vld [vmem:[%s1 + $0x30] sm:$0xff]
      %v210 = vld [vmem:[%s1 + $0x38] sm:$0xff]
      %v211 = vld [vmem:[%s1 + $0x40] sm:$0xff]
      %v212 = vld [vmem:[%s165 + $0x1] sm:$0xff]
      %v213 = vld [vmem:[%s165 + $0x9] sm:$0xff]
      %v214 = vld [vmem:[%s165 + $0x19] sm:$0xff]
      %v215 = vld [vmem:[%s165 + $0x21] sm:$0xff]
      %v216 = vld [vmem:[%s165 + $0x31] sm:$0xff]
      %v217 = vld [vmem:[%s165 + $0x39] sm:$0xff]
      %v218 = vld [vmem:[%s165 + $0x49] sm:$0xff]
      %v219 = vld [vmem:[%s165 + $0x51] sm:$0xff]
      %v220 = vld [vmem:[%s165 + $0x61] sm:$0xff]
      %v221 = vld [vmem:[%s165 + $0x69] sm:$0xff]
      %v222 = vld [vmem:[%s165 + $0x79] sm:$0xff]
      %v223 = vld [vmem:[%s165 + $0x81] sm:$0xff]
      %v224 = vld [vmem:[%s165 + $0x91] sm:$0xff]
      %v225 = vld [vmem:[%s165 + $0x99] sm:$0xff]
      %v226 = vld [vmem:[%s165 + $0xa9] sm:$0xff]
      %v227 = vld [vmem:[%s165 + $0xb1] sm:$0xff]
      %v228 = vld [vmem:[%s165 + $0xc1] sm:$0xff]
      %v229 = vld [vmem:[%s165 + $0xc9] sm:$0xff]
      %v230 = vld [vmem:[%s165 + $0xd9] sm:$0xff]
      %v231 = vld [vmem:[%s165 + $0xe1] sm:$0xff]
      %v232 = vld [vmem:[%s165 + $0xf1] sm:$0xff]
      %v233 = vld [vmem:[%s165 + $0xf9] sm:$0xff]
      %v234 = vld [vmem:[%s165 + $0x109] sm:$0xff]
      %v235 = vld [vmem:[%s165 + $0x111] sm:$0xff]
      %v236 = vld [vmem:[%s165 + $0x121] sm:$0xff]
      %v237 = vld [vmem:[%s165 + $0x129] sm:$0xff]
      %v238 = vld [vmem:[%s165 + $0x139] sm:$0xff]
      %v239 = vld [vmem:[%s165 + $0x141] sm:$0xff]
      %v240 = vld [vmem:[%s165 + $0x151] sm:$0xff]
      %v241 = vld [vmem:[%s165 + $0x159] sm:$0xff]
      %v242 = vld [vmem:[%s165 + $0x169] sm:$0xff]
      %v243 = vld [vmem:[%s165 + $0x171] sm:$0xff]
      %s244 = scalar_lea.vmem %s1, 72
      %v245 = vld [vmem:[%s244] sm:$0xff]
      %v246 = vld [vmem:[%s244 + $0x8] sm:$0xff]
      %v247 = vld [vmem:[%s244 + $0x10] sm:$0xff]
      %v248 = vld [vmem:[%s244 + $0x18] sm:$0xff]
      %v249 = vld [vmem:[%s244 + $0x20] sm:$0xff]
      %v250 = vld [vmem:[%s244 + $0x28] sm:$0xff]
      %v251 = vld [vmem:[%s244 + $0x30] sm:$0xff]
      %v252 = vld [vmem:[%s244 + $0x38] sm:$0xff]
      %v253 = vld [vmem:[%s244 + $0x40] sm:$0xff]
      %vm254 = vcmask 588800
      %v256 = vsel %vm254, %v212, 0
      %v259 = vsel %vm254, %v213, 0
      %v262 = vsel %vm254, %v214, 0
      %v265 = vsel %vm254, %v215, 0
      %v268 = vsel %vm254, %v216, 0
      %v271 = vsel %vm254, %v217, 0
      %v274 = vsel %vm254, %v218, 0
      %v277 = vsel %vm254, %v219, 0
      %v280 = vsel %vm254, %v220, 0
      %v283 = vsel %vm254, %v221, 0
      %v286 = vsel %vm254, %v222, 0
      %v289 = vsel %vm254, %v223, 0
      %v292 = vsel %vm254, %v224, 0
      %v295 = vsel %vm254, %v225, 0
      %v298 = vsel %vm254, %v226, 0
      %v301 = vsel %vm254, %v227, 0
      %v304 = vsel %vm254, %v228, 0
      %v307 = vsel %vm254, %v229, 0
      %v310 = vsel %vm254, %v230, 0
      %v313 = vsel %vm254, %v231, 0
      %v316 = vsel %vm254, %v232, 0
      %v319 = vsel %vm254, %v233, 0
      %v322 = vsel %vm254, %v234, 0
      %v325 = vsel %vm254, %v235, 0
      %v328 = vsel %vm254, %v236, 0
      %v331 = vsel %vm254, %v237, 0
      %v334 = vsel %vm254, %v238, 0
      %v337 = vsel %vm254, %v239, 0
      %v340 = vsel %vm254, %v240, 0
      %v343 = vsel %vm254, %v241, 0
      %v346 = vsel %vm254, %v242, 0
      %v349 = vsel %vm254, %v243, 0
      %351 = vmatprep.subr.mxu0 0.0
      %352 = vmatpush1.msra.mxu0 0.0
      %353 = vmatprep.subr.mxu0 0.0
      %354 = vmatpush1.msra.mxu0 0.0
      %355 = vmatprep.subr.mxu0 0.0
      %356 = vmatpush1.msra.mxu0 0.0
      %357 = vmatprep.subr.mxu0 0.0
      %358 = vmatpush1.msra.mxu0 0.0
      %359 = vmatprep.subr.mxu0 0.0
      %360 = vmatpush1.msra.mxu0 0.0
      %361 = vmatprep.subr.mxu0 0.0
      %362 = vmatpush1.msra.mxu0 0.0
      %363 = vmatprep.subr.mxu0 0.0
      %364 = vmatpush1.msra.mxu0 0.0
      %365 = vmatprep.subr.mxu0 0.0
      %366 = vmatpush1.msra.mxu0 %v253
      %367 = vmatprep.subr.mxu0 0.0
      %368 = vmatpush1.msra.mxu0 %v252
      %369 = vmatprep.subr.mxu0 0.0
      %370 = vmatpush1.msra.mxu0 %v251
      %371 = vmatprep.subr.mxu0 0.0
      %372 = vmatpush1.msra.mxu0 %v250
      %373 = vmatprep.subr.mxu0 0.0
      %374 = vmatpush1.msra.mxu0 %v249
      %375 = vmatprep.subr.mxu0 0.0
      %376 = vmatpush1.msra.mxu0 %v248
      %377 = vmatprep.subr.mxu0 0.0
      %378 = vmatpush1.msra.mxu0 %v247
      %379 = vmatprep.subr.mxu0 0.0
      %380 = vmatpush1.msra.mxu0 %v246
      %381 = vmatprep.subr.mxu0 0.0
      %382 = vmatpush1.msra.mxu0 %v245
      %383 = vmatprep.subr.mxu0 0.0
      %384 = vmatpush2.msra.mxu0 0.0
      %385 = vmatprep.subr.mxu0 0.0
      %386 = vmatpush2.msra.mxu0 0.0
      %387 = vmatprep.subr.mxu0 0.0
      %388 = vmatpush2.msra.mxu0 0.0
      %389 = vmatprep.subr.mxu0 0.0
      %390 = vmatpush2.msra.mxu0 0.0
      %391 = vmatprep.subr.mxu0 0.0
      %392 = vmatpush2.msra.mxu0 0.0
      %393 = vmatprep.subr.mxu0 0.0
      %394 = vmatpush2.msra.mxu0 0.0
      %395 = vmatprep.subr.mxu0 0.0
      %396 = vmatpush2.msra.mxu0 0.0
      %397 = vmatprep.subr.mxu0 0.0
      %398 = vmatpush2.msra.mxu0 0.0
      %399 = vmatprep.subr.mxu0 0.0
      %400 = vmatpush2.msra.mxu0 0.0
      %401 = vmatprep.subr.mxu0 0.0
      %402 = vmatpush2.msra.mxu0 0.0
      %403 = vmatprep.subr.mxu0 0.0
      %404 = vmatpush2.msra.mxu0 0.0
      %405 = vmatprep.subr.mxu0 0.0
      %406 = vmatpush2.msra.mxu0 0.0
      %407 = vmatprep.subr.mxu0 0.0
      %408 = vmatpush2.msra.mxu0 0.0
      %409 = vmatprep.subr.mxu0 0.0
      %410 = vmatpush2.msra.mxu0 0.0
      %411 = vmatprep.subr.mxu0 0.0
      %412 = vmatpush2.msra.mxu0 0.0
      %413 = vmatprep.subr.mxu0 0.0
      %414 = vmatpush2.msra.mxu0 0.0
      %415 = vmatprep.mubr.f32.mxu0 0.0
      %416 = vmatmul.mubr.f32.gmra.mxu0 %v256
      %v417 = vpop.f32.mrf.mxu0
      %v418 = vadd.f32 0.0, %v417
      %v419 = vpop.f32.mrf.mxu0
      %420 = vmatprep.mubr.f32.mxu0 0.0
      %421 = vmatmul.mubr.f32.gmra.mxu0 %v259
      %v422 = vpop.f32.mrf.mxu0
      %v423 = vadd.f32 0.0, %v422
      %v424 = vpop.f32.mrf.mxu0
      %425 = vmatprep.mubr.f32.mxu0 0.0
      %426 = vmatmul.mubr.f32.gmra.mxu0 %v262
      %v427 = vpop.f32.mrf.mxu0
      %v428 = vadd.f32 0.0, %v427
      %v429 = vpop.f32.mrf.mxu0
      %430 = vmatprep.mubr.f32.mxu0 0.0
      %431 = vmatmul.mubr.f32.gmra.mxu0 %v265
      %v432 = vpop.f32.mrf.mxu0
      %v433 = vadd.f32 0.0, %v432
      %v434 = vpop.f32.mrf.mxu0
      %435 = vmatprep.mubr.f32.mxu0 0.0
      %436 = vmatmul.mubr.f32.gmra.mxu0 %v268
      %v437 = vpop.f32.mrf.mxu0
      %v438 = vadd.f32 0.0, %v437
      %v439 = vpop.f32.mrf.mxu0
      %440 = vmatprep.mubr.f32.mxu0 0.0
      %441 = vmatmul.mubr.f32.gmra.mxu0 %v271
      %v442 = vpop.f32.mrf.mxu0
      %v443 = vadd.f32 0.0, %v442
      %v444 = vpop.f32.mrf.mxu0
      %445 = vmatprep.mubr.f32.mxu0 0.0
      %446 = vmatmul.mubr.f32.gmra.mxu0 %v274
      %v447 = vpop.f32.mrf.mxu0
      %v448 = vadd.f32 0.0, %v447
      %v449 = vpop.f32.mrf.mxu0
      %450 = vmatprep.mubr.f32.mxu0 0.0
      %451 = vmatmul.mubr.f32.gmra.mxu0 %v277
      %v452 = vpop.f32.mrf.mxu0
      %v453 = vadd.f32 0.0, %v452
      %v454 = vpop.f32.mrf.mxu0
      %455 = vmatprep.mubr.f32.mxu0 0.0
      %456 = vmatmul.mubr.f32.gmra.mxu0 %v280
      %v457 = vpop.f32.mrf.mxu0
      %v458 = vadd.f32 0.0, %v457
      %v459 = vpop.f32.mrf.mxu0
      %460 = vmatprep.mubr.f32.mxu0 0.0
      %461 = vmatmul.mubr.f32.gmra.mxu0 %v283
      %v462 = vpop.f32.mrf.mxu0
      %v463 = vadd.f32 0.0, %v462
      %v464 = vpop.f32.mrf.mxu0
      %465 = vmatprep.mubr.f32.mxu0 0.0
      %466 = vmatmul.mubr.f32.gmra.mxu0 %v286
      %v467 = vpop.f32.mrf.mxu0
      %v468 = vadd.f32 0.0, %v467
      %v469 = vpop.f32.mrf.mxu0
      %470 = vmatprep.mubr.f32.mxu0 0.0
      %471 = vmatmul.mubr.f32.gmra.mxu0 %v289
      %v472 = vpop.f32.mrf.mxu0
      %v473 = vadd.f32 0.0, %v472
      %v474 = vpop.f32.mrf.mxu0
      %475 = vmatprep.mubr.f32.mxu0 0.0
      %476 = vmatmul.mubr.f32.gmra.mxu0 %v292
      %v477 = vpop.f32.mrf.mxu0
      %v478 = vadd.f32 0.0, %v477
      %v479 = vpop.f32.mrf.mxu0
      %480 = vmatprep.mubr.f32.mxu0 0.0
      %481 = vmatmul.mubr.f32.gmra.mxu0 %v295
      %v482 = vpop.f32.mrf.mxu0
      %v483 = vadd.f32 0.0, %v482
      %v484 = vpop.f32.mrf.mxu0
      %485 = vmatprep.mubr.f32.mxu0 0.0
      %486 = vmatmul.mubr.f32.gmra.mxu0 %v298
      %v487 = vpop.f32.mrf.mxu0
      %v488 = vadd.f32 0.0, %v487
      %v489 = vpop.f32.mrf.mxu0
      %490 = vmatprep.mubr.f32.mxu0 0.0
      %491 = vmatmul.mubr.f32.gmra.mxu0 %v301
      %v492 = vpop.f32.mrf.mxu0
      %v493 = vadd.f32 0.0, %v492
      %v494 = vpop.f32.mrf.mxu0
      %495 = vmatprep.mubr.f32.mxu0 0.0
      %496 = vmatmul.mubr.f32.gmra.mxu0 %v304
      %v497 = vpop.f32.mrf.mxu0
      %v498 = vadd.f32 0.0, %v497
      %v499 = vpop.f32.mrf.mxu0
      %500 = vmatprep.mubr.f32.mxu0 0.0
      %501 = vmatmul.mubr.f32.gmra.mxu0 %v307
      %v502 = vpop.f32.mrf.mxu0
      %v503 = vadd.f32 0.0, %v502
      %v504 = vpop.f32.mrf.mxu0
      %505 = vmatprep.mubr.f32.mxu0 0.0
      %506 = vmatmul.mubr.f32.gmra.mxu0 %v310
      %v507 = vpop.f32.mrf.mxu0
      %v508 = vadd.f32 0.0, %v507
      %v509 = vpop.f32.mrf.mxu0
      %510 = vmatprep.mubr.f32.mxu0 0.0
      %511 = vmatmul.mubr.f32.gmra.mxu0 %v313
      %v512 = vpop.f32.mrf.mxu0
      %v513 = vadd.f32 0.0, %v512
      %v514 = vpop.f32.mrf.mxu0
      %515 = vmatprep.mubr.f32.mxu0 0.0
      %516 = vmatmul.mubr.f32.gmra.mxu0 %v316
      %v517 = vpop.f32.mrf.mxu0
      %v518 = vadd.f32 0.0, %v517
      %v519 = vpop.f32.mrf.mxu0
      %520 = vmatprep.mubr.f32.mxu0 0.0
      %521 = vmatmul.mubr.f32.gmra.mxu0 %v319
      %v522 = vpop.f32.mrf.mxu0
      %v523 = vadd.f32 0.0, %v522
      %v524 = vpop.f32.mrf.mxu0
      %525 = vmatprep.mubr.f32.mxu0 0.0
      %526 = vmatmul.mubr.f32.gmra.mxu0 %v322
      %v527 = vpop.f32.mrf.mxu0
      %v528 = vadd.f32 0.0, %v527
      %v529 = vpop.f32.mrf.mxu0
      %530 = vmatprep.mubr.f32.mxu0 0.0
      %531 = vmatmul.mubr.f32.gmra.mxu0 %v325
      %v532 = vpop.f32.mrf.mxu0
      %v533 = vadd.f32 0.0, %v532
      %v534 = vpop.f32.mrf.mxu0
      %535 = vmatprep.mubr.f32.mxu0 0.0
      %536 = vmatmul.mubr.f32.gmra.mxu0 %v328
      %v537 = vpop.f32.mrf.mxu0
      %v538 = vadd.f32 0.0, %v537
      %v539 = vpop.f32.mrf.mxu0
      %540 = vmatprep.mubr.f32.mxu0 0.0
      %541 = vmatmul.mubr.f32.gmra.mxu0 %v331
      %v542 = vpop.f32.mrf.mxu0
      %v543 = vadd.f32 0.0, %v542
      %v544 = vpop.f32.mrf.mxu0
      %545 = vmatprep.mubr.f32.mxu0 0.0
      %546 = vmatmul.mubr.f32.gmra.mxu0 %v334
      %v547 = vpop.f32.mrf.mxu0
      %v548 = vadd.f32 0.0, %v547
      %v549 = vpop.f32.mrf.mxu0
      %550 = vmatprep.mubr.f32.mxu0 0.0
      %551 = vmatmul.mubr.f32.gmra.mxu0 %v337
      %v552 = vpop.f32.mrf.mxu0
      %v553 = vadd.f32 0.0, %v552
      %v554 = vpop.f32.mrf.mxu0
      %555 = vmatprep.mubr.f32.mxu0 0.0
      %556 = vmatmul.mubr.f32.gmra.mxu0 %v340
      %v557 = vpop.f32.mrf.mxu0
      %v558 = vadd.f32 0.0, %v557
      %v559 = vpop.f32.mrf.mxu0
      %560 = vmatprep.mubr.f32.mxu0 0.0
      %561 = vmatmul.mubr.f32.gmra.mxu0 %v343
      %v562 = vpop.f32.mrf.mxu0
      %v563 = vadd.f32 0.0, %v562
      %v564 = vpop.f32.mrf.mxu0
      %565 = vmatprep.mubr.f32.mxu0 0.0
      %566 = vmatmul.mubr.f32.gmra.mxu0 %v346
      %v567 = vpop.f32.mrf.mxu0
      %v568 = vadd.f32 0.0, %v567
      %v569 = vpop.f32.mrf.mxu0
      %570 = vmatprep.mubr.f32.mxu0 0.0
      %571 = vmatmul.mubr.f32.gmra.mxu0 %v349
      %v572 = vpop.f32.mrf.mxu0
      %v573 = vadd.f32 0.0, %v572
      %v574 = vpop.f32.mrf.mxu0
      %575 = vdwg.mxu0
      %v577 = vsel %vm254, %v171, 0
      %v580 = vsel %vm254, %v172, 0
      %v583 = vsel %vm254, %v173, 0
      %v586 = vsel %vm254, %v174, 0
      %v589 = vsel %vm254, %v175, 0
      %v592 = vsel %vm254, %v176, 0
      %v595 = vsel %vm254, %v177, 0
      %v598 = vsel %vm254, %v178, 0
      %v601 = vsel %vm254, %v179, 0
      %v604 = vsel %vm254, %v180, 0
      %v607 = vsel %vm254, %v181, 0
      %v610 = vsel %vm254, %v182, 0
      %v613 = vsel %vm254, %v183, 0
      %v616 = vsel %vm254, %v184, 0
      %v619 = vsel %vm254, %v185, 0
      %v622 = vsel %vm254, %v186, 0
      %v625 = vsel %vm254, %v187, 0
      %v628 = vsel %vm254, %v188, 0
      %v631 = vsel %vm254, %v189, 0
      %v634 = vsel %vm254, %v190, 0
      %v637 = vsel %vm254, %v191, 0
      %v640 = vsel %vm254, %v192, 0
      %v643 = vsel %vm254, %v193, 0
      %v646 = vsel %vm254, %v194, 0
      %v649 = vsel %vm254, %v195, 0
      %v652 = vsel %vm254, %v196, 0
      %v655 = vsel %vm254, %v197, 0
      %v658 = vsel %vm254, %v198, 0
      %v661 = vsel %vm254, %v199, 0
      %v664 = vsel %vm254, %v200, 0
      %v667 = vsel %vm254, %v201, 0
      %v670 = vsel %vm254, %v202, 0
      %672 = vmatprep.subr.mxu0 0.0
      %673 = vmatpush1.msra.mxu0 0.0
      %674 = vmatprep.subr.mxu0 0.0
      %675 = vmatpush1.msra.mxu0 0.0
      %676 = vmatprep.subr.mxu0 0.0
      %677 = vmatpush1.msra.mxu0 0.0
      %678 = vmatprep.subr.mxu0 0.0
      %679 = vmatpush1.msra.mxu0 0.0
      %680 = vmatprep.subr.mxu0 0.0
      %681 = vmatpush1.msra.mxu0 0.0
      %682 = vmatprep.subr.mxu0 0.0
      %683 = vmatpush1.msra.mxu0 0.0
      %684 = vmatprep.subr.mxu0 0.0
      %685 = vmatpush1.msra.mxu0 0.0
      %686 = vmatprep.subr.mxu0 0.0
      %687 = vmatpush1.msra.mxu0 %v211
      %688 = vmatprep.subr.mxu0 0.0
      %689 = vmatpush1.msra.mxu0 %v210
      %690 = vmatprep.subr.mxu0 0.0
      %691 = vmatpush1.msra.mxu0 %v209
      %692 = vmatprep.subr.mxu0 0.0
      %693 = vmatpush1.msra.mxu0 %v208
      %694 = vmatprep.subr.mxu0 0.0
      %695 = vmatpush1.msra.mxu0 %v207
      %696 = vmatprep.subr.mxu0 0.0
      %697 = vmatpush1.msra.mxu0 %v206
      %698 = vmatprep.subr.mxu0 0.0
      %699 = vmatpush1.msra.mxu0 %v205
      %700 = vmatprep.subr.mxu0 0.0
      %701 = vmatpush1.msra.mxu0 %v204
      %702 = vmatprep.subr.mxu0 0.0
      %703 = vmatpush1.msra.mxu0 %v203
      %704 = vmatprep.subr.mxu0 0.0
      %705 = vmatpush2.msra.mxu0 0.0
      %706 = vmatprep.subr.mxu0 0.0
      %707 = vmatpush2.msra.mxu0 0.0
      %708 = vmatprep.subr.mxu0 0.0
      %709 = vmatpush2.msra.mxu0 0.0
      %710 = vmatprep.subr.mxu0 0.0
      %711 = vmatpush2.msra.mxu0 0.0
      %712 = vmatprep.subr.mxu0 0.0
      %713 = vmatpush2.msra.mxu0 0.0
      %714 = vmatprep.subr.mxu0 0.0
      %715 = vmatpush2.msra.mxu0 0.0
      %716 = vmatprep.subr.mxu0 0.0
      %717 = vmatpush2.msra.mxu0 0.0
      %718 = vmatprep.subr.mxu0 0.0
      %719 = vmatpush2.msra.mxu0 0.0
      %720 = vmatprep.subr.mxu0 0.0
      %721 = vmatpush2.msra.mxu0 0.0
      %722 = vmatprep.subr.mxu0 0.0
      %723 = vmatpush2.msra.mxu0 0.0
      %724 = vmatprep.subr.mxu0 0.0
      %725 = vmatpush2.msra.mxu0 0.0
      %726 = vmatprep.subr.mxu0 0.0
      %727 = vmatpush2.msra.mxu0 0.0
      %728 = vmatprep.subr.mxu0 0.0
      %729 = vmatpush2.msra.mxu0 0.0
      %730 = vmatprep.subr.mxu0 0.0
      %731 = vmatpush2.msra.mxu0 0.0
      %732 = vmatprep.subr.mxu0 0.0
      %733 = vmatpush2.msra.mxu0 0.0
      %734 = vmatprep.subr.mxu0 0.0
      %735 = vmatpush2.msra.mxu0 0.0
      %736 = vmatprep.mubr.f32.mxu0 0.0
      %737 = vmatmul.mubr.f32.gmra.mxu0 %v577
      %v738 = vpop.f32.mrf.mxu0
      %v739 = vadd.f32 %v418, %v738
      %v740 = vpop.f32.mrf.mxu0
      %741 = vmatprep.mubr.f32.mxu0 0.0
      %742 = vmatmul.mubr.f32.gmra.mxu0 %v580
      %v743 = vpop.f32.mrf.mxu0
      %v744 = vadd.f32 %v423, %v743
      %v745 = vpop.f32.mrf.mxu0
      %746 = vmatprep.mubr.f32.mxu0 0.0
      %747 = vmatmul.mubr.f32.gmra.mxu0 %v583
      %v748 = vpop.f32.mrf.mxu0
      %v749 = vadd.f32 %v428, %v748
      %v750 = vpop.f32.mrf.mxu0
      %751 = vmatprep.mubr.f32.mxu0 0.0
      %752 = vmatmul.mubr.f32.gmra.mxu0 %v586
      %v753 = vpop.f32.mrf.mxu0
      %v754 = vadd.f32 %v433, %v753
      %v755 = vpop.f32.mrf.mxu0
      %756 = vmatprep.mubr.f32.mxu0 0.0
      %757 = vmatmul.mubr.f32.gmra.mxu0 %v589
      %v758 = vpop.f32.mrf.mxu0
      %v759 = vadd.f32 %v438, %v758
      %v760 = vpop.f32.mrf.mxu0
      %761 = vmatprep.mubr.f32.mxu0 0.0
      %762 = vmatmul.mubr.f32.gmra.mxu0 %v592
      %v763 = vpop.f32.mrf.mxu0
      %v764 = vadd.f32 %v443, %v763
      %v765 = vpop.f32.mrf.mxu0
      %766 = vmatprep.mubr.f32.mxu0 0.0
      %767 = vmatmul.mubr.f32.gmra.mxu0 %v595
      %v768 = vpop.f32.mrf.mxu0
      %v769 = vadd.f32 %v448, %v768
      %v770 = vpop.f32.mrf.mxu0
      %771 = vmatprep.mubr.f32.mxu0 0.0
      %772 = vmatmul.mubr.f32.gmra.mxu0 %v598
      %v773 = vpop.f32.mrf.mxu0
      %v774 = vadd.f32 %v453, %v773
      %v775 = vpop.f32.mrf.mxu0
      %776 = vmatprep.mubr.f32.mxu0 0.0
      %777 = vmatmul.mubr.f32.gmra.mxu0 %v601
      %v778 = vpop.f32.mrf.mxu0
      %v779 = vadd.f32 %v458, %v778
      %v780 = vpop.f32.mrf.mxu0
      %781 = vmatprep.mubr.f32.mxu0 0.0
      %782 = vmatmul.mubr.f32.gmra.mxu0 %v604
      %v783 = vpop.f32.mrf.mxu0
      %v784 = vadd.f32 %v463, %v783
      %v785 = vpop.f32.mrf.mxu0
      %786 = vmatprep.mubr.f32.mxu0 0.0
      %787 = vmatmul.mubr.f32.gmra.mxu0 %v607
      %v788 = vpop.f32.mrf.mxu0
      %v789 = vadd.f32 %v468, %v788
      %v790 = vpop.f32.mrf.mxu0
      %791 = vmatprep.mubr.f32.mxu0 0.0
      %792 = vmatmul.mubr.f32.gmra.mxu0 %v610
      %v793 = vpop.f32.mrf.mxu0
      %v794 = vadd.f32 %v473, %v793
      %v795 = vpop.f32.mrf.mxu0
      %796 = vmatprep.mubr.f32.mxu0 0.0
      %797 = vmatmul.mubr.f32.gmra.mxu0 %v613
      %v798 = vpop.f32.mrf.mxu0
      %v799 = vadd.f32 %v478, %v798
      %v800 = vpop.f32.mrf.mxu0
      %801 = vmatprep.mubr.f32.mxu0 0.0
      %802 = vmatmul.mubr.f32.gmra.mxu0 %v616
      %v803 = vpop.f32.mrf.mxu0
      %v804 = vadd.f32 %v483, %v803
      %v805 = vpop.f32.mrf.mxu0
      %806 = vmatprep.mubr.f32.mxu0 0.0
      %807 = vmatmul.mubr.f32.gmra.mxu0 %v619
      %v808 = vpop.f32.mrf.mxu0
      %v809 = vadd.f32 %v488, %v808
      %v810 = vpop.f32.mrf.mxu0
      %811 = vmatprep.mubr.f32.mxu0 0.0
      %812 = vmatmul.mubr.f32.gmra.mxu0 %v622
      %v813 = vpop.f32.mrf.mxu0
      %v814 = vadd.f32 %v493, %v813
      %v815 = vpop.f32.mrf.mxu0
      %816 = vmatprep.mubr.f32.mxu0 0.0
      %817 = vmatmul.mubr.f32.gmra.mxu0 %v625
      %v818 = vpop.f32.mrf.mxu0
      %v819 = vadd.f32 %v498, %v818
      %v820 = vpop.f32.mrf.mxu0
      %821 = vmatprep.mubr.f32.mxu0 0.0
      %822 = vmatmul.mubr.f32.gmra.mxu0 %v628
      %v823 = vpop.f32.mrf.mxu0
      %v824 = vadd.f32 %v503, %v823
      %v825 = vpop.f32.mrf.mxu0
      %826 = vmatprep.mubr.f32.mxu0 0.0
      %827 = vmatmul.mubr.f32.gmra.mxu0 %v631
      %v828 = vpop.f32.mrf.mxu0
      %v829 = vadd.f32 %v508, %v828
      %v830 = vpop.f32.mrf.mxu0
      %831 = vmatprep.mubr.f32.mxu0 0.0
      %832 = vmatmul.mubr.f32.gmra.mxu0 %v634
      %v833 = vpop.f32.mrf.mxu0
      %v834 = vadd.f32 %v513, %v833
      %v835 = vpop.f32.mrf.mxu0
      %836 = vmatprep.mubr.f32.mxu0 0.0
      %837 = vmatmul.mubr.f32.gmra.mxu0 %v637
      %v838 = vpop.f32.mrf.mxu0
      %v839 = vadd.f32 %v518, %v838
      %v840 = vpop.f32.mrf.mxu0
      %841 = vmatprep.mubr.f32.mxu0 0.0
      %842 = vmatmul.mubr.f32.gmra.mxu0 %v640
      %v843 = vpop.f32.mrf.mxu0
      %v844 = vadd.f32 %v523, %v843
      %v845 = vpop.f32.mrf.mxu0
      %846 = vmatprep.mubr.f32.mxu0 0.0
      %847 = vmatmul.mubr.f32.gmra.mxu0 %v643
      %v848 = vpop.f32.mrf.mxu0
      %v849 = vadd.f32 %v528, %v848
      %v850 = vpop.f32.mrf.mxu0
      %851 = vmatprep.mubr.f32.mxu0 0.0
      %852 = vmatmul.mubr.f32.gmra.mxu0 %v646
      %v853 = vpop.f32.mrf.mxu0
      %v854 = vadd.f32 %v533, %v853
      %v855 = vpop.f32.mrf.mxu0
      %856 = vmatprep.mubr.f32.mxu0 0.0
      %857 = vmatmul.mubr.f32.gmra.mxu0 %v649
      %v858 = vpop.f32.mrf.mxu0
      %v859 = vadd.f32 %v538, %v858
      %v860 = vpop.f32.mrf.mxu0
      %861 = vmatprep.mubr.f32.mxu0 0.0
      %862 = vmatmul.mubr.f32.gmra.mxu0 %v652
      %v863 = vpop.f32.mrf.mxu0
      %v864 = vadd.f32 %v543, %v863
      %v865 = vpop.f32.mrf.mxu0
      %866 = vmatprep.mubr.f32.mxu0 0.0
      %867 = vmatmul.mubr.f32.gmra.mxu0 %v655
      %v868 = vpop.f32.mrf.mxu0
      %v869 = vadd.f32 %v548, %v868
      %v870 = vpop.f32.mrf.mxu0
      %871 = vmatprep.mubr.f32.mxu0 0.0
      %872 = vmatmul.mubr.f32.gmra.mxu0 %v658
      %v873 = vpop.f32.mrf.mxu0
      %v874 = vadd.f32 %v553, %v873
      %v875 = vpop.f32.mrf.mxu0
      %876 = vmatprep.mubr.f32.mxu0 0.0
      %877 = vmatmul.mubr.f32.gmra.mxu0 %v661
      %v878 = vpop.f32.mrf.mxu0
      %v879 = vadd.f32 %v558, %v878
      %v880 = vpop.f32.mrf.mxu0
      %881 = vmatprep.mubr.f32.mxu0 0.0
      %882 = vmatmul.mubr.f32.gmra.mxu0 %v664
      %v883 = vpop.f32.mrf.mxu0
      %v884 = vadd.f32 %v563, %v883
      %v885 = vpop.f32.mrf.mxu0
      %886 = vmatprep.mubr.f32.mxu0 0.0
      %887 = vmatmul.mubr.f32.gmra.mxu0 %v667
      %v888 = vpop.f32.mrf.mxu0
      %v889 = vadd.f32 %v568, %v888
      %v890 = vpop.f32.mrf.mxu0
      %891 = vmatprep.mubr.f32.mxu0 0.0
      %892 = vmatmul.mubr.f32.gmra.mxu0 %v670
      %v893 = vpop.f32.mrf.mxu0
      %v894 = vadd.f32 %v573, %v893
      %v895 = vpop.f32.mrf.mxu0
      %896 = vdwg.mxu0
      %v897 = vld [vmem:[%s165 + $0x2] sm:$0xff]
      %v898 = vld [vmem:[%s165 + $0xa] sm:$0xff]
      %v899 = vld [vmem:[%s165 + $0x1a] sm:$0xff]
      %v900 = vld [vmem:[%s165 + $0x22] sm:$0xff]
      %v901 = vld [vmem:[%s165 + $0x32] sm:$0xff]
      %v902 = vld [vmem:[%s165 + $0x3a] sm:$0xff]
      %v903 = vld [vmem:[%s165 + $0x4a] sm:$0xff]
      %v904 = vld [vmem:[%s165 + $0x52] sm:$0xff]
      %v905 = vld [vmem:[%s165 + $0x62] sm:$0xff]
      %v906 = vld [vmem:[%s165 + $0x6a] sm:$0xff]
      %v907 = vld [vmem:[%s165 + $0x7a] sm:$0xff]
      %v908 = vld [vmem:[%s165 + $0x82] sm:$0xff]
      %v909 = vld [vmem:[%s165 + $0x92] sm:$0xff]
      %v910 = vld [vmem:[%s165 + $0x9a] sm:$0xff]
      %v911 = vld [vmem:[%s165 + $0xaa] sm:$0xff]
      %v912 = vld [vmem:[%s165 + $0xb2] sm:$0xff]
      %v913 = vld [vmem:[%s165 + $0xc2] sm:$0xff]
      %v914 = vld [vmem:[%s165 + $0xca] sm:$0xff]
      %v915 = vld [vmem:[%s165 + $0xda] sm:$0xff]
      %v916 = vld [vmem:[%s165 + $0xe2] sm:$0xff]
      %v917 = vld [vmem:[%s165 + $0xf2] sm:$0xff]
      %v918 = vld [vmem:[%s165 + $0xfa] sm:$0xff]
      %v919 = vld [vmem:[%s165 + $0x10a] sm:$0xff]
      %v920 = vld [vmem:[%s165 + $0x112] sm:$0xff]
      %v921 = vld [vmem:[%s165 + $0x122] sm:$0xff]
      %v922 = vld [vmem:[%s165 + $0x12a] sm:$0xff]
      %v923 = vld [vmem:[%s165 + $0x13a] sm:$0xff]
      %v924 = vld [vmem:[%s165 + $0x142] sm:$0xff]
      %v925 = vld [vmem:[%s165 + $0x152] sm:$0xff]
      %v926 = vld [vmem:[%s165 + $0x15a] sm:$0xff]
      %v927 = vld [vmem:[%s165 + $0x16a] sm:$0xff]
      %v928 = vld [vmem:[%s165 + $0x172] sm:$0xff]
      %s929 = scalar_lea.vmem %s1, 144
      %v930 = vld [vmem:[%s929] sm:$0xff]
      %v931 = vld [vmem:[%s929 + $0x8] sm:$0xff]
      %v932 = vld [vmem:[%s929 + $0x10] sm:$0xff]
      %v933 = vld [vmem:[%s929 + $0x18] sm:$0xff]
      %v934 = vld [vmem:[%s929 + $0x20] sm:$0xff]
      %v935 = vld [vmem:[%s929 + $0x28] sm:$0xff]
      %v936 = vld [vmem:[%s929 + $0x30] sm:$0xff]
      %v937 = vld [vmem:[%s929 + $0x38] sm:$0xff]
      %v938 = vld [vmem:[%s929 + $0x40] sm:$0xff]
      %v940 = vsel %vm254, %v897, 0
      %v943 = vsel %vm254, %v898, 0
      %v946 = vsel %vm254, %v899, 0
      %v949 = vsel %vm254, %v900, 0
      %v952 = vsel %vm254, %v901, 0
      %v955 = vsel %vm254, %v902, 0
      %v958 = vsel %vm254, %v903, 0
      %v961 = vsel %vm254, %v904, 0
      %v964 = vsel %vm254, %v905, 0
      %v967 = vsel %vm254, %v906, 0
      %v970 = vsel %vm254, %v907, 0
      %v973 = vsel %vm254, %v908, 0
      %v976 = vsel %vm254, %v909, 0
      %v979 = vsel %vm254, %v910, 0
      %v982 = vsel %vm254, %v911, 0
      %v985 = vsel %vm254, %v912, 0
      %v988 = vsel %vm254, %v913, 0
      %v991 = vsel %vm254, %v914, 0
      %v994 = vsel %vm254, %v915, 0
      %v997 = vsel %vm254, %v916, 0
      %v1000 = vsel %vm254, %v917, 0
      %v1003 = vsel %vm254, %v918, 0
      %v1006 = vsel %vm254, %v919, 0
      %v1009 = vsel %vm254, %v920, 0
      %v1012 = vsel %vm254, %v921, 0
      %v1015 = vsel %vm254, %v922, 0
      %v1018 = vsel %vm254, %v923, 0
      %v1021 = vsel %vm254, %v924, 0
      %v1024 = vsel %vm254, %v925, 0
      %v1027 = vsel %vm254, %v926, 0
      %v1030 = vsel %vm254, %v927, 0
      %v1033 = vsel %vm254, %v928, 0
      %1035 = vmatprep.subr.mxu0 0.0
      %1036 = vmatpush1.msra.mxu0 0.0
      %1037 = vmatprep.subr.mxu0 0.0
      %1038 = vmatpush1.msra.mxu0 0.0
      %1039 = vmatprep.subr.mxu0 0.0
      %1040 = vmatpush1.msra.mxu0 0.0
      %1041 = vmatprep.subr.mxu0 0.0
      %1042 = vmatpush1.msra.mxu0 0.0
      %1043 = vmatprep.subr.mxu0 0.0
      %1044 = vmatpush1.msra.mxu0 0.0
      %1045 = vmatprep.subr.mxu0 0.0
      %1046 = vmatpush1.msra.mxu0 0.0
      %1047 = vmatprep.subr.mxu0 0.0
      %1048 = vmatpush1.msra.mxu0 0.0
      %1049 = vmatprep.subr.mxu0 0.0
      %1050 = vmatpush1.msra.mxu0 %v938
      %1051 = vmatprep.subr.mxu0 0.0
      %1052 = vmatpush1.msra.mxu0 %v937
      %1053 = vmatprep.subr.mxu0 0.0
      %1054 = vmatpush1.msra.mxu0 %v936
      %1055 = vmatprep.subr.mxu0 0.0
      %1056 = vmatpush1.msra.mxu0 %v935
      %1057 = vmatprep.subr.mxu0 0.0
      %1058 = vmatpush1.msra.mxu0 %v934
      %1059 = vmatprep.subr.mxu0 0.0
      %1060 = vmatpush1.msra.mxu0 %v933
      %1061 = vmatprep.subr.mxu0 0.0
      %1062 = vmatpush1.msra.mxu0 %v932
      %1063 = vmatprep.subr.mxu0 0.0
      %1064 = vmatpush1.msra.mxu0 %v931
      %1065 = vmatprep.subr.mxu0 0.0
      %1066 = vmatpush1.msra.mxu0 %v930
      %1067 = vmatprep.subr.mxu0 0.0
      %1068 = vmatpush2.msra.mxu0 0.0
      %1069 = vmatprep.subr.mxu0 0.0
      %1070 = vmatpush2.msra.mxu0 0.0
      %1071 = vmatprep.subr.mxu0 0.0
      %1072 = vmatpush2.msra.mxu0 0.0
      %1073 = vmatprep.subr.mxu0 0.0
      %1074 = vmatpush2.msra.mxu0 0.0
      %1075 = vmatprep.subr.mxu0 0.0
      %1076 = vmatpush2.msra.mxu0 0.0
      %1077 = vmatprep.subr.mxu0 0.0
      %1078 = vmatpush2.msra.mxu0 0.0
      %1079 = vmatprep.subr.mxu0 0.0
      %1080 = vmatpush2.msra.mxu0 0.0
      %1081 = vmatprep.subr.mxu0 0.0
      %1082 = vmatpush2.msra.mxu0 0.0
      %1083 = vmatprep.subr.mxu0 0.0
      %1084 = vmatpush2.msra.mxu0 0.0
      %1085 = vmatprep.subr.mxu0 0.0
      %1086 = vmatpush2.msra.mxu0 0.0
      %1087 = vmatprep.subr.mxu0 0.0
      %1088 = vmatpush2.msra.mxu0 0.0
      %1089 = vmatprep.subr.mxu0 0.0
      %1090 = vmatpush2.msra.mxu0 0.0
      %1091 = vmatprep.subr.mxu0 0.0
      %1092 = vmatpush2.msra.mxu0 0.0
      %1093 = vmatprep.subr.mxu0 0.0
      %1094 = vmatpush2.msra.mxu0 0.0
      %1095 = vmatprep.subr.mxu0 0.0
      %1096 = vmatpush2.msra.mxu0 0.0
      %1097 = vmatprep.subr.mxu0 0.0
      %1098 = vmatpush2.msra.mxu0 0.0
      %1099 = vmatprep.mubr.f32.mxu0 0.0
      %1100 = vmatmul.mubr.f32.gmra.mxu0 %v940
      %v1101 = vpop.f32.mrf.mxu0
      %v1102 = vadd.f32 0.0, %v1101
      %v1103 = vpop.f32.mrf.mxu0
      %1104 = vmatprep.mubr.f32.mxu0 0.0
      %1105 = vmatmul.mubr.f32.gmra.mxu0 %v943
      %v1106 = vpop.f32.mrf.mxu0
      %v1107 = vadd.f32 0.0, %v1106
      %v1108 = vpop.f32.mrf.mxu0
      %1109 = vmatprep.mubr.f32.mxu0 0.0
      %1110 = vmatmul.mubr.f32.gmra.mxu0 %v946
      %v1111 = vpop.f32.mrf.mxu0
      %v1112 = vadd.f32 0.0, %v1111
      %v1113 = vpop.f32.mrf.mxu0
      %1114 = vmatprep.mubr.f32.mxu0 0.0
      %1115 = vmatmul.mubr.f32.gmra.mxu0 %v949
      %v1116 = vpop.f32.mrf.mxu0
      %v1117 = vadd.f32 0.0, %v1116
      %v1118 = vpop.f32.mrf.mxu0
      %1119 = vmatprep.mubr.f32.mxu0 0.0
      %1120 = vmatmul.mubr.f32.gmra.mxu0 %v952
      %v1121 = vpop.f32.mrf.mxu0
      %v1122 = vadd.f32 0.0, %v1121
      %v1123 = vpop.f32.mrf.mxu0
      %1124 = vmatprep.mubr.f32.mxu0 0.0
      %1125 = vmatmul.mubr.f32.gmra.mxu0 %v955
      %v1126 = vpop.f32.mrf.mxu0
      %v1127 = vadd.f32 0.0, %v1126
      %v1128 = vpop.f32.mrf.mxu0
      %1129 = vmatprep.mubr.f32.mxu0 0.0
      %1130 = vmatmul.mubr.f32.gmra.mxu0 %v958
      %v1131 = vpop.f32.mrf.mxu0
      %v1132 = vadd.f32 0.0, %v1131
      %v1133 = vpop.f32.mrf.mxu0
      %1134 = vmatprep.mubr.f32.mxu0 0.0
      %1135 = vmatmul.mubr.f32.gmra.mxu0 %v961
      %v1136 = vpop.f32.mrf.mxu0
      %v1137 = vadd.f32 0.0, %v1136
      %v1138 = vpop.f32.mrf.mxu0
      %1139 = vmatprep.mubr.f32.mxu0 0.0
      %1140 = vmatmul.mubr.f32.gmra.mxu0 %v964
      %v1141 = vpop.f32.mrf.mxu0
      %v1142 = vadd.f32 0.0, %v1141
      %v1143 = vpop.f32.mrf.mxu0
      %1144 = vmatprep.mubr.f32.mxu0 0.0
      %1145 = vmatmul.mubr.f32.gmra.mxu0 %v967
      %v1146 = vpop.f32.mrf.mxu0
      %v1147 = vadd.f32 0.0, %v1146
      %v1148 = vpop.f32.mrf.mxu0
      %1149 = vmatprep.mubr.f32.mxu0 0.0
      %1150 = vmatmul.mubr.f32.gmra.mxu0 %v970
      %v1151 = vpop.f32.mrf.mxu0
      %v1152 = vadd.f32 0.0, %v1151
      %v1153 = vpop.f32.mrf.mxu0
      %1154 = vmatprep.mubr.f32.mxu0 0.0
      %1155 = vmatmul.mubr.f32.gmra.mxu0 %v973
      %v1156 = vpop.f32.mrf.mxu0
      %v1157 = vadd.f32 0.0, %v1156
      %v1158 = vpop.f32.mrf.mxu0
      %1159 = vmatprep.mubr.f32.mxu0 0.0
      %1160 = vmatmul.mubr.f32.gmra.mxu0 %v976
      %v1161 = vpop.f32.mrf.mxu0
      %v1162 = vadd.f32 0.0, %v1161
      %v1163 = vpop.f32.mrf.mxu0
      %1164 = vmatprep.mubr.f32.mxu0 0.0
      %1165 = vmatmul.mubr.f32.gmra.mxu0 %v979
      %v1166 = vpop.f32.mrf.mxu0
      %v1167 = vadd.f32 0.0, %v1166
      %v1168 = vpop.f32.mrf.mxu0
      %1169 = vmatprep.mubr.f32.mxu0 0.0
      %1170 = vmatmul.mubr.f32.gmra.mxu0 %v982
      %v1171 = vpop.f32.mrf.mxu0
      %v1172 = vadd.f32 0.0, %v1171
      %v1173 = vpop.f32.mrf.mxu0
      %1174 = vmatprep.mubr.f32.mxu0 0.0
      %1175 = vmatmul.mubr.f32.gmra.mxu0 %v985
      %v1176 = vpop.f32.mrf.mxu0
      %v1177 = vadd.f32 0.0, %v1176
      %v1178 = vpop.f32.mrf.mxu0
      %1179 = vmatprep.mubr.f32.mxu0 0.0
      %1180 = vmatmul.mubr.f32.gmra.mxu0 %v988
      %v1181 = vpop.f32.mrf.mxu0
      %v1182 = vadd.f32 0.0, %v1181
      %v1183 = vpop.f32.mrf.mxu0
      %1184 = vmatprep.mubr.f32.mxu0 0.0
      %1185 = vmatmul.mubr.f32.gmra.mxu0 %v991
      %v1186 = vpop.f32.mrf.mxu0
      %v1187 = vadd.f32 0.0, %v1186
      %v1188 = vpop.f32.mrf.mxu0
      %1189 = vmatprep.mubr.f32.mxu0 0.0
      %1190 = vmatmul.mubr.f32.gmra.mxu0 %v994
      %v1191 = vpop.f32.mrf.mxu0
      %v1192 = vadd.f32 0.0, %v1191
      %v1193 = vpop.f32.mrf.mxu0
      %1194 = vmatprep.mubr.f32.mxu0 0.0
      %1195 = vmatmul.mubr.f32.gmra.mxu0 %v997
      %v1196 = vpop.f32.mrf.mxu0
      %v1197 = vadd.f32 0.0, %v1196
      %v1198 = vpop.f32.mrf.mxu0
      %1199 = vmatprep.mubr.f32.mxu0 0.0
      %1200 = vmatmul.mubr.f32.gmra.mxu0 %v1000
      %v1201 = vpop.f32.mrf.mxu0
      %v1202 = vadd.f32 0.0, %v1201
      %v1203 = vpop.f32.mrf.mxu0
      %1204 = vmatprep.mubr.f32.mxu0 0.0
      %1205 = vmatmul.mubr.f32.gmra.mxu0 %v1003
      %v1206 = vpop.f32.mrf.mxu0
      %v1207 = vadd.f32 0.0, %v1206
      %v1208 = vpop.f32.mrf.mxu0
      %1209 = vmatprep.mubr.f32.mxu0 0.0
      %1210 = vmatmul.mubr.f32.gmra.mxu0 %v1006
      %v1211 = vpop.f32.mrf.mxu0
      %v1212 = vadd.f32 0.0, %v1211
      %v1213 = vpop.f32.mrf.mxu0
      %1214 = vmatprep.mubr.f32.mxu0 0.0
      %1215 = vmatmul.mubr.f32.gmra.mxu0 %v1009
      %v1216 = vpop.f32.mrf.mxu0
      %v1217 = vadd.f32 0.0, %v1216
      %v1218 = vpop.f32.mrf.mxu0
      %1219 = vmatprep.mubr.f32.mxu0 0.0
      %1220 = vmatmul.mubr.f32.gmra.mxu0 %v1012
      %v1221 = vpop.f32.mrf.mxu0
      %v1222 = vadd.f32 0.0, %v1221
      %v1223 = vpop.f32.mrf.mxu0
      %1224 = vmatprep.mubr.f32.mxu0 0.0
      %1225 = vmatmul.mubr.f32.gmra.mxu0 %v1015
      %v1226 = vpop.f32.mrf.mxu0
      %v1227 = vadd.f32 0.0, %v1226
      %v1228 = vpop.f32.mrf.mxu0
      %1229 = vmatprep.mubr.f32.mxu0 0.0
      %1230 = vmatmul.mubr.f32.gmra.mxu0 %v1018
      %v1231 = vpop.f32.mrf.mxu0
      %v1232 = vadd.f32 0.0, %v1231
      %v1233 = vpop.f32.mrf.mxu0
      %1234 = vmatprep.mubr.f32.mxu0 0.0
      %1235 = vmatmul.mubr.f32.gmra.mxu0 %v1021
      %v1236 = vpop.f32.mrf.mxu0
      %v1237 = vadd.f32 0.0, %v1236
      %v1238 = vpop.f32.mrf.mxu0
      %1239 = vmatprep.mubr.f32.mxu0 0.0
      %1240 = vmatmul.mubr.f32.gmra.mxu0 %v1024
      %v1241 = vpop.f32.mrf.mxu0
      %v1242 = vadd.f32 0.0, %v1241
      %v1243 = vpop.f32.mrf.mxu0
      %1244 = vmatprep.mubr.f32.mxu0 0.0
      %1245 = vmatmul.mubr.f32.gmra.mxu0 %v1027
      %v1246 = vpop.f32.mrf.mxu0
      %v1247 = vadd.f32 0.0, %v1246
      %v1248 = vpop.f32.mrf.mxu0
      %1249 = vmatprep.mubr.f32.mxu0 0.0
      %1250 = vmatmul.mubr.f32.gmra.mxu0 %v1030
      %v1251 = vpop.f32.mrf.mxu0
      %v1252 = vadd.f32 0.0, %v1251
      %v1253 = vpop.f32.mrf.mxu0
      %1254 = vmatprep.mubr.f32.mxu0 0.0
      %1255 = vmatmul.mubr.f32.gmra.mxu0 %v1033
      %v1256 = vpop.f32.mrf.mxu0
      %v1257 = vadd.f32 0.0, %v1256
      %v1258 = vpop.f32.mrf.mxu0
      %1259 = vdwg.mxu0
      %v1260 = vadd.f32 %v739, %v1102
      %v1261 = vadd.f32 %v744, %v1107
      %v1262 = vadd.f32 %v749, %v1112
      %v1263 = vadd.f32 %v754, %v1117
      %v1264 = vadd.f32 %v759, %v1122
      %v1265 = vadd.f32 %v764, %v1127
      %v1266 = vadd.f32 %v769, %v1132
      %v1267 = vadd.f32 %v774, %v1137
      %v1268 = vadd.f32 %v779, %v1142
      %v1269 = vadd.f32 %v784, %v1147
      %v1270 = vadd.f32 %v789, %v1152
      %v1271 = vadd.f32 %v794, %v1157
      %v1272 = vadd.f32 %v799, %v1162
      %v1273 = vadd.f32 %v804, %v1167
      %v1274 = vadd.f32 %v809, %v1172
      %v1275 = vadd.f32 %v814, %v1177
      %v1276 = vadd.f32 %v819, %v1182
      %v1277 = vadd.f32 %v824, %v1187
      %v1278 = vadd.f32 %v829, %v1192
      %v1279 = vadd.f32 %v834, %v1197
      %v1280 = vadd.f32 %v839, %v1202
      %v1281 = vadd.f32 %v844, %v1207
      %v1282 = vadd.f32 %v849, %v1212
      %v1283 = vadd.f32 %v854, %v1217
      %v1284 = vadd.f32 %v859, %v1222
      %v1285 = vadd.f32 %v864, %v1227
      %v1286 = vadd.f32 %v869, %v1232
      %v1287 = vadd.f32 %v874, %v1237
      %v1288 = vadd.f32 %v879, %v1242
      %v1289 = vadd.f32 %v884, %v1247
      %v1290 = vadd.f32 %v889, %v1252
      %v1291 = vadd.f32 %v894, %v1257
      %s1292 = scalar_lea.vmem %s165, 24
      %v1293 = vld [vmem:[%s1292] sm:$0xff]
      %v1294 = vld [vmem:[%s1292 + $0x8] sm:$0xff]
      %v1295 = vld [vmem:[%s1292 + $0x18] sm:$0xff]
      %v1296 = vld [vmem:[%s1292 + $0x20] sm:$0xff]
      %v1297 = vld [vmem:[%s1292 + $0x30] sm:$0xff]
      %v1298 = vld [vmem:[%s1292 + $0x38] sm:$0xff]
      %v1299 = vld [vmem:[%s1292 + $0x48] sm:$0xff]
      %v1300 = vld [vmem:[%s1292 + $0x50] sm:$0xff]
      %v1301 = vld [vmem:[%s1292 + $0x60] sm:$0xff]
      %v1302 = vld [vmem:[%s1292 + $0x68] sm:$0xff]
      %v1303 = vld [vmem:[%s1292 + $0x78] sm:$0xff]
      %v1304 = vld [vmem:[%s1292 + $0x80] sm:$0xff]
      %v1305 = vld [vmem:[%s1292 + $0x90] sm:$0xff]
      %v1306 = vld [vmem:[%s1292 + $0x98] sm:$0xff]
      %v1307 = vld [vmem:[%s1292 + $0xa8] sm:$0xff]
      %v1308 = vld [vmem:[%s1292 + $0xb0] sm:$0xff]
      %v1309 = vld [vmem:[%s1292 + $0xc0] sm:$0xff]
      %v1310 = vld [vmem:[%s1292 + $0xc8] sm:$0xff]
      %v1311 = vld [vmem:[%s1292 + $0xd8] sm:$0xff]
      %v1312 = vld [vmem:[%s1292 + $0xe0] sm:$0xff]
      %v1313 = vld [vmem:[%s1292 + $0xf0] sm:$0xff]
      %v1314 = vld [vmem:[%s1292 + $0xf8] sm:$0xff]
      %v1315 = vld [vmem:[%s1292 + $0x108] sm:$0xff]
      %v1316 = vld [vmem:[%s1292 + $0x110] sm:$0xff]
      %v1317 = vld [vmem:[%s1292 + $0x120] sm:$0xff]
      %v1318 = vld [vmem:[%s1292 + $0x128] sm:$0xff]
      %v1319 = vld [vmem:[%s1292 + $0x138] sm:$0xff]
      %v1320 = vld [vmem:[%s1292 + $0x140] sm:$0xff]
      %v1321 = vld [vmem:[%s1292 + $0x150] sm:$0xff]
      %v1322 = vld [vmem:[%s1292 + $0x158] sm:$0xff]
      %v1323 = vld [vmem:[%s1292 + $0x168] sm:$0xff]
      %v1324 = vld [vmem:[%s1292 + $0x170] sm:$0xff]
      %s1325 = scalar_lea.vmem %s1, 216
      %v1326 = vld [vmem:[%s1325] sm:$0xff]
      %v1327 = vld [vmem:[%s1325 + $0x8] sm:$0xff]
      %v1328 = vld [vmem:[%s1325 + $0x10] sm:$0xff]
      %v1329 = vld [vmem:[%s1325 + $0x18] sm:$0xff]
      %v1330 = vld [vmem:[%s1325 + $0x20] sm:$0xff]
      %v1331 = vld [vmem:[%s1325 + $0x28] sm:$0xff]
      %v1332 = vld [vmem:[%s1325 + $0x30] sm:$0xff]
      %v1333 = vld [vmem:[%s1325 + $0x38] sm:$0xff]
      %v1334 = vld [vmem:[%s1325 + $0x40] sm:$0xff]
      %v1336 = vsel %vm254, %v1293, 0
      %v1339 = vsel %vm254, %v1294, 0
      %v1342 = vsel %vm254, %v1295, 0
      %v1345 = vsel %vm254, %v1296, 0
      %v1348 = vsel %vm254, %v1297, 0
      %v1351 = vsel %vm254, %v1298, 0
      %v1354 = vsel %vm254, %v1299, 0
      %v1357 = vsel %vm254, %v1300, 0
      %v1360 = vsel %vm254, %v1301, 0
      %v1363 = vsel %vm254, %v1302, 0
      %v1366 = vsel %vm254, %v1303, 0
      %v1369 = vsel %vm254, %v1304, 0
      %v1372 = vsel %vm254, %v1305, 0
      %v1375 = vsel %vm254, %v1306, 0
      %v1378 = vsel %vm254, %v1307, 0
      %v1381 = vsel %vm254, %v1308, 0
      %v1384 = vsel %vm254, %v1309, 0
      %v1387 = vsel %vm254, %v1310, 0
      %v1390 = vsel %vm254, %v1311, 0
      %v1393 = vsel %vm254, %v1312, 0
      %v1396 = vsel %vm254, %v1313, 0
      %v1399 = vsel %vm254, %v1314, 0
      %v1402 = vsel %vm254, %v1315, 0
      %v1405 = vsel %vm254, %v1316, 0
      %v1408 = vsel %vm254, %v1317, 0
      %v1411 = vsel %vm254, %v1318, 0
      %v1414 = vsel %vm254, %v1319, 0
      %v1417 = vsel %vm254, %v1320, 0
      %v1420 = vsel %vm254, %v1321, 0
      %v1423 = vsel %vm254, %v1322, 0
      %v1426 = vsel %vm254, %v1323, 0
      %v1429 = vsel %vm254, %v1324, 0
      %1431 = vmatprep.subr.mxu0 0.0
      %1432 = vmatpush1.msra.mxu0 0.0
      %1433 = vmatprep.subr.mxu0 0.0
      %1434 = vmatpush1.msra.mxu0 0.0
      %1435 = vmatprep.subr.mxu0 0.0
      %1436 = vmatpush1.msra.mxu0 0.0
      %1437 = vmatprep.subr.mxu0 0.0
      %1438 = vmatpush1.msra.mxu0 0.0
      %1439 = vmatprep.subr.mxu0 0.0
      %1440 = vmatpush1.msra.mxu0 0.0
      %1441 = vmatprep.subr.mxu0 0.0
      %1442 = vmatpush1.msra.mxu0 0.0
      %1443 = vmatprep.subr.mxu0 0.0
      %1444 = vmatpush1.msra.mxu0 0.0
      %1445 = vmatprep.subr.mxu0 0.0
      %1446 = vmatpush1.msra.mxu0 %v1334
      %1447 = vmatprep.subr.mxu0 0.0
      %1448 = vmatpush1.msra.mxu0 %v1333
      %1449 = vmatprep.subr.mxu0 0.0
      %1450 = vmatpush1.msra.mxu0 %v1332
      %1451 = vmatprep.subr.mxu0 0.0
      %1452 = vmatpush1.msra.mxu0 %v1331
      %1453 = vmatprep.subr.mxu0 0.0
      %1454 = vmatpush1.msra.mxu0 %v1330
      %1455 = vmatprep.subr.mxu0 0.0
      %1456 = vmatpush1.msra.mxu0 %v1329
      %1457 = vmatprep.subr.mxu0 0.0
      %1458 = vmatpush1.msra.mxu0 %v1328
      %1459 = vmatprep.subr.mxu0 0.0
      %1460 = vmatpush1.msra.mxu0 %v1327
      %1461 = vmatprep.subr.mxu0 0.0
      %1462 = vmatpush1.msra.mxu0 %v1326
      %1463 = vmatprep.subr.mxu0 0.0
      %1464 = vmatpush2.msra.mxu0 0.0
      %1465 = vmatprep.subr.mxu0 0.0
      %1466 = vmatpush2.msra.mxu0 0.0
      %1467 = vmatprep.subr.mxu0 0.0
      %1468 = vmatpush2.msra.mxu0 0.0
      %1469 = vmatprep.subr.mxu0 0.0
      %1470 = vmatpush2.msra.mxu0 0.0
      %1471 = vmatprep.subr.mxu0 0.0
      %1472 = vmatpush2.msra.mxu0 0.0
      %1473 = vmatprep.subr.mxu0 0.0
      %1474 = vmatpush2.msra.mxu0 0.0
      %1475 = vmatprep.subr.mxu0 0.0
      %1476 = vmatpush2.msra.mxu0 0.0
      %1477 = vmatprep.subr.mxu0 0.0
      %1478 = vmatpush2.msra.mxu0 0.0
      %1479 = vmatprep.subr.mxu0 0.0
      %1480 = vmatpush2.msra.mxu0 0.0
      %1481 = vmatprep.subr.mxu0 0.0
      %1482 = vmatpush2.msra.mxu0 0.0
      %1483 = vmatprep.subr.mxu0 0.0
      %1484 = vmatpush2.msra.mxu0 0.0
      %1485 = vmatprep.subr.mxu0 0.0
      %1486 = vmatpush2.msra.mxu0 0.0
      %1487 = vmatprep.subr.mxu0 0.0
      %1488 = vmatpush2.msra.mxu0 0.0
      %1489 = vmatprep.subr.mxu0 0.0
      %1490 = vmatpush2.msra.mxu0 0.0
      %1491 = vmatprep.subr.mxu0 0.0
      %1492 = vmatpush2.msra.mxu0 0.0
      %1493 = vmatprep.subr.mxu0 0.0
      %1494 = vmatpush2.msra.mxu0 0.0
      %1495 = vmatprep.mubr.f32.mxu0 0.0
      %1496 = vmatmul.mubr.f32.gmra.mxu0 %v1336
      %v1497 = vpop.f32.mrf.mxu0
      %v1498 = vadd.f32 0.0, %v1497
      %v1499 = vpop.f32.mrf.mxu0
      %1500 = vmatprep.mubr.f32.mxu0 0.0
      %1501 = vmatmul.mubr.f32.gmra.mxu0 %v1339
      %v1502 = vpop.f32.mrf.mxu0
      %v1503 = vadd.f32 0.0, %v1502
      %v1504 = vpop.f32.mrf.mxu0
      %1505 = vmatprep.mubr.f32.mxu0 0.0
      %1506 = vmatmul.mubr.f32.gmra.mxu0 %v1342
      %v1507 = vpop.f32.mrf.mxu0
      %v1508 = vadd.f32 0.0, %v1507
      %v1509 = vpop.f32.mrf.mxu0
      %1510 = vmatprep.mubr.f32.mxu0 0.0
      %1511 = vmatmul.mubr.f32.gmra.mxu0 %v1345
      %v1512 = vpop.f32.mrf.mxu0
      %v1513 = vadd.f32 0.0, %v1512
      %v1514 = vpop.f32.mrf.mxu0
      %1515 = vmatprep.mubr.f32.mxu0 0.0
      %1516 = vmatmul.mubr.f32.gmra.mxu0 %v1348
      %v1517 = vpop.f32.mrf.mxu0
      %v1518 = vadd.f32 0.0, %v1517
      %v1519 = vpop.f32.mrf.mxu0
      %1520 = vmatprep.mubr.f32.mxu0 0.0
      %1521 = vmatmul.mubr.f32.gmra.mxu0 %v1351
      %v1522 = vpop.f32.mrf.mxu0
      %v1523 = vadd.f32 0.0, %v1522
      %v1524 = vpop.f32.mrf.mxu0
      %1525 = vmatprep.mubr.f32.mxu0 0.0
      %1526 = vmatmul.mubr.f32.gmra.mxu0 %v1354
      %v1527 = vpop.f32.mrf.mxu0
      %v1528 = vadd.f32 0.0, %v1527
      %v1529 = vpop.f32.mrf.mxu0
      %1530 = vmatprep.mubr.f32.mxu0 0.0
      %1531 = vmatmul.mubr.f32.gmra.mxu0 %v1357
      %v1532 = vpop.f32.mrf.mxu0
      %v1533 = vadd.f32 0.0, %v1532
      %v1534 = vpop.f32.mrf.mxu0
      %1535 = vmatprep.mubr.f32.mxu0 0.0
      %1536 = vmatmul.mubr.f32.gmra.mxu0 %v1360
      %v1537 = vpop.f32.mrf.mxu0
      %v1538 = vadd.f32 0.0, %v1537
      %v1539 = vpop.f32.mrf.mxu0
      %1540 = vmatprep.mubr.f32.mxu0 0.0
      %1541 = vmatmul.mubr.f32.gmra.mxu0 %v1363
      %v1542 = vpop.f32.mrf.mxu0
      %v1543 = vadd.f32 0.0, %v1542
      %v1544 = vpop.f32.mrf.mxu0
      %1545 = vmatprep.mubr.f32.mxu0 0.0
      %1546 = vmatmul.mubr.f32.gmra.mxu0 %v1366
      %v1547 = vpop.f32.mrf.mxu0
      %v1548 = vadd.f32 0.0, %v1547
      %v1549 = vpop.f32.mrf.mxu0
      %1550 = vmatprep.mubr.f32.mxu0 0.0
      %1551 = vmatmul.mubr.f32.gmra.mxu0 %v1369
      %v1552 = vpop.f32.mrf.mxu0
      %v1553 = vadd.f32 0.0, %v1552
      %v1554 = vpop.f32.mrf.mxu0
      %1555 = vmatprep.mubr.f32.mxu0 0.0
      %1556 = vmatmul.mubr.f32.gmra.mxu0 %v1372
      %v1557 = vpop.f32.mrf.mxu0
      %v1558 = vadd.f32 0.0, %v1557
      %v1559 = vpop.f32.mrf.mxu0
      %1560 = vmatprep.mubr.f32.mxu0 0.0
      %1561 = vmatmul.mubr.f32.gmra.mxu0 %v1375
      %v1562 = vpop.f32.mrf.mxu0
      %v1563 = vadd.f32 0.0, %v1562
      %v1564 = vpop.f32.mrf.mxu0
      %1565 = vmatprep.mubr.f32.mxu0 0.0
      %1566 = vmatmul.mubr.f32.gmra.mxu0 %v1378
      %v1567 = vpop.f32.mrf.mxu0
      %v1568 = vadd.f32 0.0, %v1567
      %v1569 = vpop.f32.mrf.mxu0
      %1570 = vmatprep.mubr.f32.mxu0 0.0
      %1571 = vmatmul.mubr.f32.gmra.mxu0 %v1381
      %v1572 = vpop.f32.mrf.mxu0
      %v1573 = vadd.f32 0.0, %v1572
      %v1574 = vpop.f32.mrf.mxu0
      %1575 = vmatprep.mubr.f32.mxu0 0.0
      %1576 = vmatmul.mubr.f32.gmra.mxu0 %v1384
      %v1577 = vpop.f32.mrf.mxu0
      %v1578 = vadd.f32 0.0, %v1577
      %v1579 = vpop.f32.mrf.mxu0
      %1580 = vmatprep.mubr.f32.mxu0 0.0
      %1581 = vmatmul.mubr.f32.gmra.mxu0 %v1387
      %v1582 = vpop.f32.mrf.mxu0
      %v1583 = vadd.f32 0.0, %v1582
      %v1584 = vpop.f32.mrf.mxu0
      %1585 = vmatprep.mubr.f32.mxu0 0.0
      %1586 = vmatmul.mubr.f32.gmra.mxu0 %v1390
      %v1587 = vpop.f32.mrf.mxu0
      %v1588 = vadd.f32 0.0, %v1587
      %v1589 = vpop.f32.mrf.mxu0
      %1590 = vmatprep.mubr.f32.mxu0 0.0
      %1591 = vmatmul.mubr.f32.gmra.mxu0 %v1393
      %v1592 = vpop.f32.mrf.mxu0
      %v1593 = vadd.f32 0.0, %v1592
      %v1594 = vpop.f32.mrf.mxu0
      %1595 = vmatprep.mubr.f32.mxu0 0.0
      %1596 = vmatmul.mubr.f32.gmra.mxu0 %v1396
      %v1597 = vpop.f32.mrf.mxu0
      %v1598 = vadd.f32 0.0, %v1597
      %v1599 = vpop.f32.mrf.mxu0
      %1600 = vmatprep.mubr.f32.mxu0 0.0
      %1601 = vmatmul.mubr.f32.gmra.mxu0 %v1399
      %v1602 = vpop.f32.mrf.mxu0
      %v1603 = vadd.f32 0.0, %v1602
      %v1604 = vpop.f32.mrf.mxu0
      %1605 = vmatprep.mubr.f32.mxu0 0.0
      %1606 = vmatmul.mubr.f32.gmra.mxu0 %v1402
      %v1607 = vpop.f32.mrf.mxu0
      %v1608 = vadd.f32 0.0, %v1607
      %v1609 = vpop.f32.mrf.mxu0
      %1610 = vmatprep.mubr.f32.mxu0 0.0
      %1611 = vmatmul.mubr.f32.gmra.mxu0 %v1405
      %v1612 = vpop.f32.mrf.mxu0
      %v1613 = vadd.f32 0.0, %v1612
      %v1614 = vpop.f32.mrf.mxu0
      %1615 = vmatprep.mubr.f32.mxu0 0.0
      %1616 = vmatmul.mubr.f32.gmra.mxu0 %v1408
      %v1617 = vpop.f32.mrf.mxu0
      %v1618 = vadd.f32 0.0, %v1617
      %v1619 = vpop.f32.mrf.mxu0
      %1620 = vmatprep.mubr.f32.mxu0 0.0
      %1621 = vmatmul.mubr.f32.gmra.mxu0 %v1411
      %v1622 = vpop.f32.mrf.mxu0
      %v1623 = vadd.f32 0.0, %v1622
      %v1624 = vpop.f32.mrf.mxu0
      %1625 = vmatprep.mubr.f32.mxu0 0.0
      %1626 = vmatmul.mubr.f32.gmra.mxu0 %v1414
      %v1627 = vpop.f32.mrf.mxu0
      %v1628 = vadd.f32 0.0, %v1627
      %v1629 = vpop.f32.mrf.mxu0
      %1630 = vmatprep.mubr.f32.mxu0 0.0
      %1631 = vmatmul.mubr.f32.gmra.mxu0 %v1417
      %v1632 = vpop.f32.mrf.mxu0
      %v1633 = vadd.f32 0.0, %v1632
      %v1634 = vpop.f32.mrf.mxu0
      %1635 = vmatprep.mubr.f32.mxu0 0.0
      %1636 = vmatmul.mubr.f32.gmra.mxu0 %v1420
      %v1637 = vpop.f32.mrf.mxu0
      %v1638 = vadd.f32 0.0, %v1637
      %v1639 = vpop.f32.mrf.mxu0
      %1640 = vmatprep.mubr.f32.mxu0 0.0
      %1641 = vmatmul.mubr.f32.gmra.mxu0 %v1423
      %v1642 = vpop.f32.mrf.mxu0
      %v1643 = vadd.f32 0.0, %v1642
      %v1644 = vpop.f32.mrf.mxu0
      %1645 = vmatprep.mubr.f32.mxu0 0.0
      %1646 = vmatmul.mubr.f32.gmra.mxu0 %v1426
      %v1647 = vpop.f32.mrf.mxu0
      %v1648 = vadd.f32 0.0, %v1647
      %v1649 = vpop.f32.mrf.mxu0
      %1650 = vmatprep.mubr.f32.mxu0 0.0
      %1651 = vmatmul.mubr.f32.gmra.mxu0 %v1429
      %v1652 = vpop.f32.mrf.mxu0
      %v1653 = vadd.f32 0.0, %v1652
      %v1654 = vpop.f32.mrf.mxu0
      %1655 = vdwg.mxu0
      %v1656 = vadd.f32 %v1260, %v1498
      %v1657 = vadd.f32 %v1261, %v1503
      %v1658 = vadd.f32 %v1262, %v1508
      %v1659 = vadd.f32 %v1263, %v1513
      %v1660 = vadd.f32 %v1264, %v1518
      %v1661 = vadd.f32 %v1265, %v1523
      %v1662 = vadd.f32 %v1266, %v1528
      %v1663 = vadd.f32 %v1267, %v1533
      %v1664 = vadd.f32 %v1268, %v1538
      %v1665 = vadd.f32 %v1269, %v1543
      %v1666 = vadd.f32 %v1270, %v1548
      %v1667 = vadd.f32 %v1271, %v1553
      %v1668 = vadd.f32 %v1272, %v1558
      %v1669 = vadd.f32 %v1273, %v1563
      %v1670 = vadd.f32 %v1274, %v1568
      %v1671 = vadd.f32 %v1275, %v1573
      %v1672 = vadd.f32 %v1276, %v1578
      %v1673 = vadd.f32 %v1277, %v1583
      %v1674 = vadd.f32 %v1278, %v1588
      %v1675 = vadd.f32 %v1279, %v1593
      %v1676 = vadd.f32 %v1280, %v1598
      %v1677 = vadd.f32 %v1281, %v1603
      %v1678 = vadd.f32 %v1282, %v1608
      %v1679 = vadd.f32 %v1283, %v1613
      %v1680 = vadd.f32 %v1284, %v1618
      %v1681 = vadd.f32 %v1285, %v1623
      %v1682 = vadd.f32 %v1286, %v1628
      %v1683 = vadd.f32 %v1287, %v1633
      %v1684 = vadd.f32 %v1288, %v1638
      %v1685 = vadd.f32 %v1289, %v1643
      %v1686 = vadd.f32 %v1290, %v1648
      %v1687 = vadd.f32 %v1291, %v1653
      %v1688 = vld [vmem:[%s1292 + $0x1] sm:$0xff]
      %v1689 = vld [vmem:[%s1292 + $0x9] sm:$0xff]
      %v1690 = vld [vmem:[%s1292 + $0x19] sm:$0xff]
      %v1691 = vld [vmem:[%s1292 + $0x21] sm:$0xff]
      %v1692 = vld [vmem:[%s1292 + $0x31] sm:$0xff]
      %v1693 = vld [vmem:[%s1292 + $0x39] sm:$0xff]
      %v1694 = vld [vmem:[%s1292 + $0x49] sm:$0xff]
      %v1695 = vld [vmem:[%s1292 + $0x51] sm:$0xff]
      %v1696 = vld [vmem:[%s1292 + $0x61] sm:$0xff]
      %v1697 = vld [vmem:[%s1292 + $0x69] sm:$0xff]
      %v1698 = vld [vmem:[%s1292 + $0x79] sm:$0xff]
      %v1699 = vld [vmem:[%s1292 + $0x81] sm:$0xff]
      %v1700 = vld [vmem:[%s1292 + $0x91] sm:$0xff]
      %v1701 = vld [vmem:[%s1292 + $0x99] sm:$0xff]
      %v1702 = vld [vmem:[%s1292 + $0xa9] sm:$0xff]
      %v1703 = vld [vmem:[%s1292 + $0xb1] sm:$0xff]
      %v1704 = vld [vmem:[%s1292 + $0xc1] sm:$0xff]
      %v1705 = vld [vmem:[%s1292 + $0xc9] sm:$0xff]
      %v1706 = vld [vmem:[%s1292 + $0xd9] sm:$0xff]
      %v1707 = vld [vmem:[%s1292 + $0xe1] sm:$0xff]
      %v1708 = vld [vmem:[%s1292 + $0xf1] sm:$0xff]
      %v1709 = vld [vmem:[%s1292 + $0xf9] sm:$0xff]
      %v1710 = vld [vmem:[%s1292 + $0x109] sm:$0xff]
      %v1711 = vld [vmem:[%s1292 + $0x111] sm:$0xff]
      %v1712 = vld [vmem:[%s1292 + $0x121] sm:$0xff]
      %v1713 = vld [vmem:[%s1292 + $0x129] sm:$0xff]
      %v1714 = vld [vmem:[%s1292 + $0x139] sm:$0xff]
      %v1715 = vld [vmem:[%s1292 + $0x141] sm:$0xff]
      %v1716 = vld [vmem:[%s1292 + $0x151] sm:$0xff]
      %v1717 = vld [vmem:[%s1292 + $0x159] sm:$0xff]
      %v1718 = vld [vmem:[%s1292 + $0x169] sm:$0xff]
      %v1719 = vld [vmem:[%s1292 + $0x171] sm:$0xff]
      %s1720 = scalar_lea.vmem %s1, 288
      %v1721 = vld [vmem:[%s1720] sm:$0xff]
      %v1722 = vld [vmem:[%s1720 + $0x8] sm:$0xff]
      %v1723 = vld [vmem:[%s1720 + $0x10] sm:$0xff]
      %v1724 = vld [vmem:[%s1720 + $0x18] sm:$0xff]
      %v1725 = vld [vmem:[%s1720 + $0x20] sm:$0xff]
      %v1726 = vld [vmem:[%s1720 + $0x28] sm:$0xff]
      %v1727 = vld [vmem:[%s1720 + $0x30] sm:$0xff]
      %v1728 = vld [vmem:[%s1720 + $0x38] sm:$0xff]
      %v1729 = vld [vmem:[%s1720 + $0x40] sm:$0xff]
      %v1731 = vsel %vm254, %v1688, 0
      %v1734 = vsel %vm254, %v1689, 0
      %v1737 = vsel %vm254, %v1690, 0
      %v1740 = vsel %vm254, %v1691, 0
      %v1743 = vsel %vm254, %v1692, 0
      %v1746 = vsel %vm254, %v1693, 0
      %v1749 = vsel %vm254, %v1694, 0
      %v1752 = vsel %vm254, %v1695, 0
      %v1755 = vsel %vm254, %v1696, 0
      %v1758 = vsel %vm254, %v1697, 0
      %v1761 = vsel %vm254, %v1698, 0
      %v1764 = vsel %vm254, %v1699, 0
      %v1767 = vsel %vm254, %v1700, 0
      %v1770 = vsel %vm254, %v1701, 0
      %v1773 = vsel %vm254, %v1702, 0
      %v1776 = vsel %vm254, %v1703, 0
      %v1779 = vsel %vm254, %v1704, 0
      %v1782 = vsel %vm254, %v1705, 0
      %v1785 = vsel %vm254, %v1706, 0
      %v1788 = vsel %vm254, %v1707, 0
      %v1791 = vsel %vm254, %v1708, 0
      %v1794 = vsel %vm254, %v1709, 0
      %v1797 = vsel %vm254, %v1710, 0
      %v1800 = vsel %vm254, %v1711, 0
      %v1803 = vsel %vm254, %v1712, 0
      %v1806 = vsel %vm254, %v1713, 0
      %v1809 = vsel %vm254, %v1714, 0
      %v1812 = vsel %vm254, %v1715, 0
      %v1815 = vsel %vm254, %v1716, 0
      %v1818 = vsel %vm254, %v1717, 0
      %v1821 = vsel %vm254, %v1718, 0
      %v1824 = vsel %vm254, %v1719, 0
      %1826 = vmatprep.subr.mxu0 0.0
      %1827 = vmatpush1.msra.mxu0 0.0
      %1828 = vmatprep.subr.mxu0 0.0
      %1829 = vmatpush1.msra.mxu0 0.0
      %1830 = vmatprep.subr.mxu0 0.0
      %1831 = vmatpush1.msra.mxu0 0.0
      %1832 = vmatprep.subr.mxu0 0.0
      %1833 = vmatpush1.msra.mxu0 0.0
      %1834 = vmatprep.subr.mxu0 0.0
      %1835 = vmatpush1.msra.mxu0 0.0
      %1836 = vmatprep.subr.mxu0 0.0
      %1837 = vmatpush1.msra.mxu0 0.0
      %1838 = vmatprep.subr.mxu0 0.0
      %1839 = vmatpush1.msra.mxu0 0.0
      %1840 = vmatprep.subr.mxu0 0.0
      %1841 = vmatpush1.msra.mxu0 %v1729
      %1842 = vmatprep.subr.mxu0 0.0
      %1843 = vmatpush1.msra.mxu0 %v1728
      %1844 = vmatprep.subr.mxu0 0.0
      %1845 = vmatpush1.msra.mxu0 %v1727
      %1846 = vmatprep.subr.mxu0 0.0
      %1847 = vmatpush1.msra.mxu0 %v1726
      %1848 = vmatprep.subr.mxu0 0.0
      %1849 = vmatpush1.msra.mxu0 %v1725
      %1850 = vmatprep.subr.mxu0 0.0
      %1851 = vmatpush1.msra.mxu0 %v1724
      %1852 = vmatprep.subr.mxu0 0.0
      %1853 = vmatpush1.msra.mxu0 %v1723
      %1854 = vmatprep.subr.mxu0 0.0
      %1855 = vmatpush1.msra.mxu0 %v1722
      %1856 = vmatprep.subr.mxu0 0.0
      %1857 = vmatpush1.msra.mxu0 %v1721
      %1858 = vmatprep.subr.mxu0 0.0
      %1859 = vmatpush2.msra.mxu0 0.0
      %1860 = vmatprep.subr.mxu0 0.0
      %1861 = vmatpush2.msra.mxu0 0.0
      %1862 = vmatprep.subr.mxu0 0.0
      %1863 = vmatpush2.msra.mxu0 0.0
      %1864 = vmatprep.subr.mxu0 0.0
      %1865 = vmatpush2.msra.mxu0 0.0
      %1866 = vmatprep.subr.mxu0 0.0
      %1867 = vmatpush2.msra.mxu0 0.0
      %1868 = vmatprep.subr.mxu0 0.0
      %1869 = vmatpush2.msra.mxu0 0.0
      %1870 = vmatprep.subr.mxu0 0.0
      %1871 = vmatpush2.msra.mxu0 0.0
      %1872 = vmatprep.subr.mxu0 0.0
      %1873 = vmatpush2.msra.mxu0 0.0
      %1874 = vmatprep.subr.mxu0 0.0
      %1875 = vmatpush2.msra.mxu0 0.0
      %1876 = vmatprep.subr.mxu0 0.0
      %1877 = vmatpush2.msra.mxu0 0.0
      %1878 = vmatprep.subr.mxu0 0.0
      %1879 = vmatpush2.msra.mxu0 0.0
      %1880 = vmatprep.subr.mxu0 0.0
      %1881 = vmatpush2.msra.mxu0 0.0
      %1882 = vmatprep.subr.mxu0 0.0
      %1883 = vmatpush2.msra.mxu0 0.0
      %1884 = vmatprep.subr.mxu0 0.0
      %1885 = vmatpush2.msra.mxu0 0.0
      %1886 = vmatprep.subr.mxu0 0.0
      %1887 = vmatpush2.msra.mxu0 0.0
      %1888 = vmatprep.subr.mxu0 0.0
      %1889 = vmatpush2.msra.mxu0 0.0
      %1890 = vmatprep.mubr.f32.mxu0 0.0
      %1891 = vmatmul.mubr.f32.gmra.mxu0 %v1731
      %v1892 = vpop.f32.mrf.mxu0
      %v1893 = vadd.f32 0.0, %v1892
      %v1894 = vpop.f32.mrf.mxu0
      %1895 = vmatprep.mubr.f32.mxu0 0.0
      %1896 = vmatmul.mubr.f32.gmra.mxu0 %v1734
      %v1897 = vpop.f32.mrf.mxu0
      %v1898 = vadd.f32 0.0, %v1897
      %v1899 = vpop.f32.mrf.mxu0
      %1900 = vmatprep.mubr.f32.mxu0 0.0
      %1901 = vmatmul.mubr.f32.gmra.mxu0 %v1737
      %v1902 = vpop.f32.mrf.mxu0
      %v1903 = vadd.f32 0.0, %v1902
      %v1904 = vpop.f32.mrf.mxu0
      %1905 = vmatprep.mubr.f32.mxu0 0.0
      %1906 = vmatmul.mubr.f32.gmra.mxu0 %v1740
      %v1907 = vpop.f32.mrf.mxu0
      %v1908 = vadd.f32 0.0, %v1907
      %v1909 = vpop.f32.mrf.mxu0
      %1910 = vmatprep.mubr.f32.mxu0 0.0
      %1911 = vmatmul.mubr.f32.gmra.mxu0 %v1743
      %v1912 = vpop.f32.mrf.mxu0
      %v1913 = vadd.f32 0.0, %v1912
      %v1914 = vpop.f32.mrf.mxu0
      %1915 = vmatprep.mubr.f32.mxu0 0.0
      %1916 = vmatmul.mubr.f32.gmra.mxu0 %v1746
      %v1917 = vpop.f32.mrf.mxu0
      %v1918 = vadd.f32 0.0, %v1917
      %v1919 = vpop.f32.mrf.mxu0
      %1920 = vmatprep.mubr.f32.mxu0 0.0
      %1921 = vmatmul.mubr.f32.gmra.mxu0 %v1749
      %v1922 = vpop.f32.mrf.mxu0
      %v1923 = vadd.f32 0.0, %v1922
      %v1924 = vpop.f32.mrf.mxu0
      %1925 = vmatprep.mubr.f32.mxu0 0.0
      %1926 = vmatmul.mubr.f32.gmra.mxu0 %v1752
      %v1927 = vpop.f32.mrf.mxu0
      %v1928 = vadd.f32 0.0, %v1927
      %v1929 = vpop.f32.mrf.mxu0
      %1930 = vmatprep.mubr.f32.mxu0 0.0
      %1931 = vmatmul.mubr.f32.gmra.mxu0 %v1755
      %v1932 = vpop.f32.mrf.mxu0
      %v1933 = vadd.f32 0.0, %v1932
      %v1934 = vpop.f32.mrf.mxu0
      %1935 = vmatprep.mubr.f32.mxu0 0.0
      %1936 = vmatmul.mubr.f32.gmra.mxu0 %v1758
      %v1937 = vpop.f32.mrf.mxu0
      %v1938 = vadd.f32 0.0, %v1937
      %v1939 = vpop.f32.mrf.mxu0
      %1940 = vmatprep.mubr.f32.mxu0 0.0
      %1941 = vmatmul.mubr.f32.gmra.mxu0 %v1761
      %v1942 = vpop.f32.mrf.mxu0
      %v1943 = vadd.f32 0.0, %v1942
      %v1944 = vpop.f32.mrf.mxu0
      %1945 = vmatprep.mubr.f32.mxu0 0.0
      %1946 = vmatmul.mubr.f32.gmra.mxu0 %v1764
      %v1947 = vpop.f32.mrf.mxu0
      %v1948 = vadd.f32 0.0, %v1947
      %v1949 = vpop.f32.mrf.mxu0
      %1950 = vmatprep.mubr.f32.mxu0 0.0
      %1951 = vmatmul.mubr.f32.gmra.mxu0 %v1767
      %v1952 = vpop.f32.mrf.mxu0
      %v1953 = vadd.f32 0.0, %v1952
      %v1954 = vpop.f32.mrf.mxu0
      %1955 = vmatprep.mubr.f32.mxu0 0.0
      %1956 = vmatmul.mubr.f32.gmra.mxu0 %v1770
      %v1957 = vpop.f32.mrf.mxu0
      %v1958 = vadd.f32 0.0, %v1957
      %v1959 = vpop.f32.mrf.mxu0
      %1960 = vmatprep.mubr.f32.mxu0 0.0
      %1961 = vmatmul.mubr.f32.gmra.mxu0 %v1773
      %v1962 = vpop.f32.mrf.mxu0
      %v1963 = vadd.f32 0.0, %v1962
      %v1964 = vpop.f32.mrf.mxu0
      %1965 = vmatprep.mubr.f32.mxu0 0.0
      %1966 = vmatmul.mubr.f32.gmra.mxu0 %v1776
      %v1967 = vpop.f32.mrf.mxu0
      %v1968 = vadd.f32 0.0, %v1967
      %v1969 = vpop.f32.mrf.mxu0
      %1970 = vmatprep.mubr.f32.mxu0 0.0
      %1971 = vmatmul.mubr.f32.gmra.mxu0 %v1779
      %v1972 = vpop.f32.mrf.mxu0
      %v1973 = vadd.f32 0.0, %v1972
      %v1974 = vpop.f32.mrf.mxu0
      %1975 = vmatprep.mubr.f32.mxu0 0.0
      %1976 = vmatmul.mubr.f32.gmra.mxu0 %v1782
      %v1977 = vpop.f32.mrf.mxu0
      %v1978 = vadd.f32 0.0, %v1977
      %v1979 = vpop.f32.mrf.mxu0
      %1980 = vmatprep.mubr.f32.mxu0 0.0
      %1981 = vmatmul.mubr.f32.gmra.mxu0 %v1785
      %v1982 = vpop.f32.mrf.mxu0
      %v1983 = vadd.f32 0.0, %v1982
      %v1984 = vpop.f32.mrf.mxu0
      %1985 = vmatprep.mubr.f32.mxu0 0.0
      %1986 = vmatmul.mubr.f32.gmra.mxu0 %v1788
      %v1987 = vpop.f32.mrf.mxu0
      %v1988 = vadd.f32 0.0, %v1987
      %v1989 = vpop.f32.mrf.mxu0
      %1990 = vmatprep.mubr.f32.mxu0 0.0
      %1991 = vmatmul.mubr.f32.gmra.mxu0 %v1791
      %v1992 = vpop.f32.mrf.mxu0
      %v1993 = vadd.f32 0.0, %v1992
      %v1994 = vpop.f32.mrf.mxu0
      %1995 = vmatprep.mubr.f32.mxu0 0.0
      %1996 = vmatmul.mubr.f32.gmra.mxu0 %v1794
      %v1997 = vpop.f32.mrf.mxu0
      %v1998 = vadd.f32 0.0, %v1997
      %v1999 = vpop.f32.mrf.mxu0
      %2000 = vmatprep.mubr.f32.mxu0 0.0
      %2001 = vmatmul.mubr.f32.gmra.mxu0 %v1797
      %v2002 = vpop.f32.mrf.mxu0
      %v2003 = vadd.f32 0.0, %v2002
      %v2004 = vpop.f32.mrf.mxu0
      %2005 = vmatprep.mubr.f32.mxu0 0.0
      %2006 = vmatmul.mubr.f32.gmra.mxu0 %v1800
      %v2007 = vpop.f32.mrf.mxu0
      %v2008 = vadd.f32 0.0, %v2007
      %v2009 = vpop.f32.mrf.mxu0
      %2010 = vmatprep.mubr.f32.mxu0 0.0
      %2011 = vmatmul.mubr.f32.gmra.mxu0 %v1803
      %v2012 = vpop.f32.mrf.mxu0
      %v2013 = vadd.f32 0.0, %v2012
      %v2014 = vpop.f32.mrf.mxu0
      %2015 = vmatprep.mubr.f32.mxu0 0.0
      %2016 = vmatmul.mubr.f32.gmra.mxu0 %v1806
      %v2017 = vpop.f32.mrf.mxu0
      %v2018 = vadd.f32 0.0, %v2017
      %v2019 = vpop.f32.mrf.mxu0
      %2020 = vmatprep.mubr.f32.mxu0 0.0
      %2021 = vmatmul.mubr.f32.gmra.mxu0 %v1809
      %v2022 = vpop.f32.mrf.mxu0
      %v2023 = vadd.f32 0.0, %v2022
      %v2024 = vpop.f32.mrf.mxu0
      %2025 = vmatprep.mubr.f32.mxu0 0.0
      %2026 = vmatmul.mubr.f32.gmra.mxu0 %v1812
      %v2027 = vpop.f32.mrf.mxu0
      %v2028 = vadd.f32 0.0, %v2027
      %v2029 = vpop.f32.mrf.mxu0
      %2030 = vmatprep.mubr.f32.mxu0 0.0
      %2031 = vmatmul.mubr.f32.gmra.mxu0 %v1815
      %v2032 = vpop.f32.mrf.mxu0
      %v2033 = vadd.f32 0.0, %v2032
      %v2034 = vpop.f32.mrf.mxu0
      %2035 = vmatprep.mubr.f32.mxu0 0.0
      %2036 = vmatmul.mubr.f32.gmra.mxu0 %v1818
      %v2037 = vpop.f32.mrf.mxu0
      %v2038 = vadd.f32 0.0, %v2037
      %v2039 = vpop.f32.mrf.mxu0
      %2040 = vmatprep.mubr.f32.mxu0 0.0
      %2041 = vmatmul.mubr.f32.gmra.mxu0 %v1821
      %v2042 = vpop.f32.mrf.mxu0
      %v2043 = vadd.f32 0.0, %v2042
      %v2044 = vpop.f32.mrf.mxu0
      %2045 = vmatprep.mubr.f32.mxu0 0.0
      %2046 = vmatmul.mubr.f32.gmra.mxu0 %v1824
      %v2047 = vpop.f32.mrf.mxu0
      %v2048 = vadd.f32 0.0, %v2047
      %v2049 = vpop.f32.mrf.mxu0
      %2050 = vdwg.mxu0
      %v2051 = vadd.f32 %v1656, %v1893
      %v2052 = vadd.f32 %v1657, %v1898
      %v2053 = vadd.f32 %v1658, %v1903
      %v2054 = vadd.f32 %v1659, %v1908
      %v2055 = vadd.f32 %v1660, %v1913
      %v2056 = vadd.f32 %v1661, %v1918
      %v2057 = vadd.f32 %v1662, %v1923
      %v2058 = vadd.f32 %v1663, %v1928
      %v2059 = vadd.f32 %v1664, %v1933
      %v2060 = vadd.f32 %v1665, %v1938
      %v2061 = vadd.f32 %v1666, %v1943
      %v2062 = vadd.f32 %v1667, %v1948
      %v2063 = vadd.f32 %v1668, %v1953
      %v2064 = vadd.f32 %v1669, %v1958
      %v2065 = vadd.f32 %v1670, %v1963
      %v2066 = vadd.f32 %v1671, %v1968
      %v2067 = vadd.f32 %v1672, %v1973
      %v2068 = vadd.f32 %v1673, %v1978
      %v2069 = vadd.f32 %v1674, %v1983
      %v2070 = vadd.f32 %v1675, %v1988
      %v2071 = vadd.f32 %v1676, %v1993
      %v2072 = vadd.f32 %v1677, %v1998
      %v2073 = vadd.f32 %v1678, %v2003
      %v2074 = vadd.f32 %v1679, %v2008
      %v2075 = vadd.f32 %v1680, %v2013
      %v2076 = vadd.f32 %v1681, %v2018
      %v2077 = vadd.f32 %v1682, %v2023
      %v2078 = vadd.f32 %v1683, %v2028
      %v2079 = vadd.f32 %v1684, %v2033
      %v2080 = vadd.f32 %v1685, %v2038
      %v2081 = vadd.f32 %v1686, %v2043
      %v2082 = vadd.f32 %v1687, %v2048
      %v2083 = vld [vmem:[%s1292 + $0x2] sm:$0xff]
      %v2084 = vld [vmem:[%s1292 + $0xa] sm:$0xff]
      %v2085 = vld [vmem:[%s1292 + $0x1a] sm:$0xff]
      %v2086 = vld [vmem:[%s1292 + $0x22] sm:$0xff]
      %v2087 = vld [vmem:[%s1292 + $0x32] sm:$0xff]
      %v2088 = vld [vmem:[%s1292 + $0x3a] sm:$0xff]
      %v2089 = vld [vmem:[%s1292 + $0x4a] sm:$0xff]
      %v2090 = vld [vmem:[%s1292 + $0x52] sm:$0xff]
      %v2091 = vld [vmem:[%s1292 + $0x62] sm:$0xff]
      %v2092 = vld [vmem:[%s1292 + $0x6a] sm:$0xff]
      %v2093 = vld [vmem:[%s1292 + $0x7a] sm:$0xff]
      %v2094 = vld [vmem:[%s1292 + $0x82] sm:$0xff]
      %v2095 = vld [vmem:[%s1292 + $0x92] sm:$0xff]
      %v2096 = vld [vmem:[%s1292 + $0x9a] sm:$0xff]
      %v2097 = vld [vmem:[%s1292 + $0xaa] sm:$0xff]
      %v2098 = vld [vmem:[%s1292 + $0xb2] sm:$0xff]
      %v2099 = vld [vmem:[%s1292 + $0xc2] sm:$0xff]
      %v2100 = vld [vmem:[%s1292 + $0xca] sm:$0xff]
      %v2101 = vld [vmem:[%s1292 + $0xda] sm:$0xff]
      %v2102 = vld [vmem:[%s1292 + $0xe2] sm:$0xff]
      %v2103 = vld [vmem:[%s1292 + $0xf2] sm:$0xff]
      %v2104 = vld [vmem:[%s1292 + $0xfa] sm:$0xff]
      %v2105 = vld [vmem:[%s1292 + $0x10a] sm:$0xff]
      %v2106 = vld [vmem:[%s1292 + $0x112] sm:$0xff]
      %v2107 = vld [vmem:[%s1292 + $0x122] sm:$0xff]
      %v2108 = vld [vmem:[%s1292 + $0x12a] sm:$0xff]
      %v2109 = vld [vmem:[%s1292 + $0x13a] sm:$0xff]
      %v2110 = vld [vmem:[%s1292 + $0x142] sm:$0xff]
      %v2111 = vld [vmem:[%s1292 + $0x152] sm:$0xff]
      %v2112 = vld [vmem:[%s1292 + $0x15a] sm:$0xff]
      %v2113 = vld [vmem:[%s1292 + $0x16a] sm:$0xff]
      %v2114 = vld [vmem:[%s1292 + $0x172] sm:$0xff]
      %s2115 = scalar_lea.vmem %s1, 360
      %v2116 = vld [vmem:[%s2115] sm:$0xff]
      %v2117 = vld [vmem:[%s2115 + $0x8] sm:$0xff]
      %v2118 = vld [vmem:[%s2115 + $0x10] sm:$0xff]
      %v2119 = vld [vmem:[%s2115 + $0x18] sm:$0xff]
      %v2120 = vld [vmem:[%s2115 + $0x20] sm:$0xff]
      %v2121 = vld [vmem:[%s2115 + $0x28] sm:$0xff]
      %v2122 = vld [vmem:[%s2115 + $0x30] sm:$0xff]
      %v2123 = vld [vmem:[%s2115 + $0x38] sm:$0xff]
      %v2124 = vld [vmem:[%s2115 + $0x40] sm:$0xff]
      %v2126 = vsel %vm254, %v2083, 0
      %v2129 = vsel %vm254, %v2084, 0
      %v2132 = vsel %vm254, %v2085, 0
      %v2135 = vsel %vm254, %v2086, 0
      %v2138 = vsel %vm254, %v2087, 0
      %v2141 = vsel %vm254, %v2088, 0
      %v2144 = vsel %vm254, %v2089, 0
      %v2147 = vsel %vm254, %v2090, 0
      %v2150 = vsel %vm254, %v2091, 0
      %v2153 = vsel %vm254, %v2092, 0
      %v2156 = vsel %vm254, %v2093, 0
      %v2159 = vsel %vm254, %v2094, 0
      %v2162 = vsel %vm254, %v2095, 0
      %v2165 = vsel %vm254, %v2096, 0
      %v2168 = vsel %vm254, %v2097, 0
      %v2171 = vsel %vm254, %v2098, 0
      %v2174 = vsel %vm254, %v2099, 0
      %v2177 = vsel %vm254, %v2100, 0
      %v2180 = vsel %vm254, %v2101, 0
      %v2183 = vsel %vm254, %v2102, 0
      %v2186 = vsel %vm254, %v2103, 0
      %v2189 = vsel %vm254, %v2104, 0
      %v2192 = vsel %vm254, %v2105, 0
      %v2195 = vsel %vm254, %v2106, 0
      %v2198 = vsel %vm254, %v2107, 0
      %v2201 = vsel %vm254, %v2108, 0
      %v2204 = vsel %vm254, %v2109, 0
      %v2207 = vsel %vm254, %v2110, 0
      %v2210 = vsel %vm254, %v2111, 0
      %v2213 = vsel %vm254, %v2112, 0
      %v2216 = vsel %vm254, %v2113, 0
      %v2219 = vsel %vm254, %v2114, 0
      %2221 = vmatprep.subr.mxu0 0.0
      %2222 = vmatpush1.msra.mxu0 0.0
      %2223 = vmatprep.subr.mxu0 0.0
      %2224 = vmatpush1.msra.mxu0 0.0
      %2225 = vmatprep.subr.mxu0 0.0
      %2226 = vmatpush1.msra.mxu0 0.0
      %2227 = vmatprep.subr.mxu0 0.0
      %2228 = vmatpush1.msra.mxu0 0.0
      %2229 = vmatprep.subr.mxu0 0.0
      %2230 = vmatpush1.msra.mxu0 0.0
      %2231 = vmatprep.subr.mxu0 0.0
      %2232 = vmatpush1.msra.mxu0 0.0
      %2233 = vmatprep.subr.mxu0 0.0
      %2234 = vmatpush1.msra.mxu0 0.0
      %2235 = vmatprep.subr.mxu0 0.0
      %2236 = vmatpush1.msra.mxu0 %v2124
      %2237 = vmatprep.subr.mxu0 0.0
      %2238 = vmatpush1.msra.mxu0 %v2123
      %2239 = vmatprep.subr.mxu0 0.0
      %2240 = vmatpush1.msra.mxu0 %v2122
      %2241 = vmatprep.subr.mxu0 0.0
      %2242 = vmatpush1.msra.mxu0 %v2121
      %2243 = vmatprep.subr.mxu0 0.0
      %2244 = vmatpush1.msra.mxu0 %v2120
      %2245 = vmatprep.subr.mxu0 0.0
      %2246 = vmatpush1.msra.mxu0 %v2119
      %2247 = vmatprep.subr.mxu0 0.0
      %2248 = vmatpush1.msra.mxu0 %v2118
      %2249 = vmatprep.subr.mxu0 0.0
      %2250 = vmatpush1.msra.mxu0 %v2117
      %2251 = vmatprep.subr.mxu0 0.0
      %2252 = vmatpush1.msra.mxu0 %v2116
      %2253 = vmatprep.subr.mxu0 0.0
      %2254 = vmatpush2.msra.mxu0 0.0
      %2255 = vmatprep.subr.mxu0 0.0
      %2256 = vmatpush2.msra.mxu0 0.0
      %2257 = vmatprep.subr.mxu0 0.0
      %2258 = vmatpush2.msra.mxu0 0.0
      %2259 = vmatprep.subr.mxu0 0.0
      %2260 = vmatpush2.msra.mxu0 0.0
      %2261 = vmatprep.subr.mxu0 0.0
      %2262 = vmatpush2.msra.mxu0 0.0
      %2263 = vmatprep.subr.mxu0 0.0
      %2264 = vmatpush2.msra.mxu0 0.0
      %2265 = vmatprep.subr.mxu0 0.0
      %2266 = vmatpush2.msra.mxu0 0.0
      %2267 = vmatprep.subr.mxu0 0.0
      %2268 = vmatpush2.msra.mxu0 0.0
      %2269 = vmatprep.subr.mxu0 0.0
      %2270 = vmatpush2.msra.mxu0 0.0
      %2271 = vmatprep.subr.mxu0 0.0
      %2272 = vmatpush2.msra.mxu0 0.0
      %2273 = vmatprep.subr.mxu0 0.0
      %2274 = vmatpush2.msra.mxu0 0.0
      %2275 = vmatprep.subr.mxu0 0.0
      %2276 = vmatpush2.msra.mxu0 0.0
      %2277 = vmatprep.subr.mxu0 0.0
      %2278 = vmatpush2.msra.mxu0 0.0
      %2279 = vmatprep.subr.mxu0 0.0
      %2280 = vmatpush2.msra.mxu0 0.0
      %2281 = vmatprep.subr.mxu0 0.0
      %2282 = vmatpush2.msra.mxu0 0.0
      %2283 = vmatprep.subr.mxu0 0.0
      %2284 = vmatpush2.msra.mxu0 0.0
      %2285 = vmatprep.mubr.f32.mxu0 0.0
      %2286 = vmatmul.mubr.f32.gmra.mxu0 %v2126
      %v2287 = vpop.f32.mrf.mxu0
      %v2288 = vadd.f32 0.0, %v2287
      %v2289 = vpop.f32.mrf.mxu0
      %2290 = vmatprep.mubr.f32.mxu0 0.0
      %2291 = vmatmul.mubr.f32.gmra.mxu0 %v2129
      %v2292 = vpop.f32.mrf.mxu0
      %v2293 = vadd.f32 0.0, %v2292
      %v2294 = vpop.f32.mrf.mxu0
      %2295 = vmatprep.mubr.f32.mxu0 0.0
      %2296 = vmatmul.mubr.f32.gmra.mxu0 %v2132
      %v2297 = vpop.f32.mrf.mxu0
      %v2298 = vadd.f32 0.0, %v2297
      %v2299 = vpop.f32.mrf.mxu0
      %2300 = vmatprep.mubr.f32.mxu0 0.0
      %2301 = vmatmul.mubr.f32.gmra.mxu0 %v2135
      %v2302 = vpop.f32.mrf.mxu0
      %v2303 = vadd.f32 0.0, %v2302
      %v2304 = vpop.f32.mrf.mxu0
      %2305 = vmatprep.mubr.f32.mxu0 0.0
      %2306 = vmatmul.mubr.f32.gmra.mxu0 %v2138
      %v2307 = vpop.f32.mrf.mxu0
      %v2308 = vadd.f32 0.0, %v2307
      %v2309 = vpop.f32.mrf.mxu0
      %2310 = vmatprep.mubr.f32.mxu0 0.0
      %2311 = vmatmul.mubr.f32.gmra.mxu0 %v2141
      %v2312 = vpop.f32.mrf.mxu0
      %v2313 = vadd.f32 0.0, %v2312
      %v2314 = vpop.f32.mrf.mxu0
      %2315 = vmatprep.mubr.f32.mxu0 0.0
      %2316 = vmatmul.mubr.f32.gmra.mxu0 %v2144
      %v2317 = vpop.f32.mrf.mxu0
      %v2318 = vadd.f32 0.0, %v2317
      %v2319 = vpop.f32.mrf.mxu0
      %2320 = vmatprep.mubr.f32.mxu0 0.0
      %2321 = vmatmul.mubr.f32.gmra.mxu0 %v2147
      %v2322 = vpop.f32.mrf.mxu0
      %v2323 = vadd.f32 0.0, %v2322
      %v2324 = vpop.f32.mrf.mxu0
      %2325 = vmatprep.mubr.f32.mxu0 0.0
      %2326 = vmatmul.mubr.f32.gmra.mxu0 %v2150
      %v2327 = vpop.f32.mrf.mxu0
      %v2328 = vadd.f32 0.0, %v2327
      %v2329 = vpop.f32.mrf.mxu0
      %2330 = vmatprep.mubr.f32.mxu0 0.0
      %2331 = vmatmul.mubr.f32.gmra.mxu0 %v2153
      %v2332 = vpop.f32.mrf.mxu0
      %v2333 = vadd.f32 0.0, %v2332
      %v2334 = vpop.f32.mrf.mxu0
      %2335 = vmatprep.mubr.f32.mxu0 0.0
      %2336 = vmatmul.mubr.f32.gmra.mxu0 %v2156
      %v2337 = vpop.f32.mrf.mxu0
      %v2338 = vadd.f32 0.0, %v2337
      %v2339 = vpop.f32.mrf.mxu0
      %2340 = vmatprep.mubr.f32.mxu0 0.0
      %2341 = vmatmul.mubr.f32.gmra.mxu0 %v2159
      %v2342 = vpop.f32.mrf.mxu0
      %v2343 = vadd.f32 0.0, %v2342
      %v2344 = vpop.f32.mrf.mxu0
      %2345 = vmatprep.mubr.f32.mxu0 0.0
      %2346 = vmatmul.mubr.f32.gmra.mxu0 %v2162
      %v2347 = vpop.f32.mrf.mxu0
      %v2348 = vadd.f32 0.0, %v2347
      %v2349 = vpop.f32.mrf.mxu0
      %2350 = vmatprep.mubr.f32.mxu0 0.0
      %2351 = vmatmul.mubr.f32.gmra.mxu0 %v2165
      %v2352 = vpop.f32.mrf.mxu0
      %v2353 = vadd.f32 0.0, %v2352
      %v2354 = vpop.f32.mrf.mxu0
      %2355 = vmatprep.mubr.f32.mxu0 0.0
      %2356 = vmatmul.mubr.f32.gmra.mxu0 %v2168
      %v2357 = vpop.f32.mrf.mxu0
      %v2358 = vadd.f32 0.0, %v2357
      %v2359 = vpop.f32.mrf.mxu0
      %2360 = vmatprep.mubr.f32.mxu0 0.0
      %2361 = vmatmul.mubr.f32.gmra.mxu0 %v2171
      %v2362 = vpop.f32.mrf.mxu0
      %v2363 = vadd.f32 0.0, %v2362
      %v2364 = vpop.f32.mrf.mxu0
      %2365 = vmatprep.mubr.f32.mxu0 0.0
      %2366 = vmatmul.mubr.f32.gmra.mxu0 %v2174
      %v2367 = vpop.f32.mrf.mxu0
      %v2368 = vadd.f32 0.0, %v2367
      %v2369 = vpop.f32.mrf.mxu0
      %2370 = vmatprep.mubr.f32.mxu0 0.0
      %2371 = vmatmul.mubr.f32.gmra.mxu0 %v2177
      %v2372 = vpop.f32.mrf.mxu0
      %v2373 = vadd.f32 0.0, %v2372
      %v2374 = vpop.f32.mrf.mxu0
      %2375 = vmatprep.mubr.f32.mxu0 0.0
      %2376 = vmatmul.mubr.f32.gmra.mxu0 %v2180
      %v2377 = vpop.f32.mrf.mxu0
      %v2378 = vadd.f32 0.0, %v2377
      %v2379 = vpop.f32.mrf.mxu0
      %2380 = vmatprep.mubr.f32.mxu0 0.0
      %2381 = vmatmul.mubr.f32.gmra.mxu0 %v2183
      %v2382 = vpop.f32.mrf.mxu0
      %v2383 = vadd.f32 0.0, %v2382
      %v2384 = vpop.f32.mrf.mxu0
      %2385 = vmatprep.mubr.f32.mxu0 0.0
      %2386 = vmatmul.mubr.f32.gmra.mxu0 %v2186
      %v2387 = vpop.f32.mrf.mxu0
      %v2388 = vadd.f32 0.0, %v2387
      %v2389 = vpop.f32.mrf.mxu0
      %2390 = vmatprep.mubr.f32.mxu0 0.0
      %2391 = vmatmul.mubr.f32.gmra.mxu0 %v2189
      %v2392 = vpop.f32.mrf.mxu0
      %v2393 = vadd.f32 0.0, %v2392
      %v2394 = vpop.f32.mrf.mxu0
      %2395 = vmatprep.mubr.f32.mxu0 0.0
      %2396 = vmatmul.mubr.f32.gmra.mxu0 %v2192
      %v2397 = vpop.f32.mrf.mxu0
      %v2398 = vadd.f32 0.0, %v2397
      %v2399 = vpop.f32.mrf.mxu0
      %2400 = vmatprep.mubr.f32.mxu0 0.0
      %2401 = vmatmul.mubr.f32.gmra.mxu0 %v2195
      %v2402 = vpop.f32.mrf.mxu0
      %v2403 = vadd.f32 0.0, %v2402
      %v2404 = vpop.f32.mrf.mxu0
      %2405 = vmatprep.mubr.f32.mxu0 0.0
      %2406 = vmatmul.mubr.f32.gmra.mxu0 %v2198
      %v2407 = vpop.f32.mrf.mxu0
      %v2408 = vadd.f32 0.0, %v2407
      %v2409 = vpop.f32.mrf.mxu0
      %2410 = vmatprep.mubr.f32.mxu0 0.0
      %2411 = vmatmul.mubr.f32.gmra.mxu0 %v2201
      %v2412 = vpop.f32.mrf.mxu0
      %v2413 = vadd.f32 0.0, %v2412
      %v2414 = vpop.f32.mrf.mxu0
      %2415 = vmatprep.mubr.f32.mxu0 0.0
      %2416 = vmatmul.mubr.f32.gmra.mxu0 %v2204
      %v2417 = vpop.f32.mrf.mxu0
      %v2418 = vadd.f32 0.0, %v2417
      %v2419 = vpop.f32.mrf.mxu0
      %2420 = vmatprep.mubr.f32.mxu0 0.0
      %2421 = vmatmul.mubr.f32.gmra.mxu0 %v2207
      %v2422 = vpop.f32.mrf.mxu0
      %v2423 = vadd.f32 0.0, %v2422
      %v2424 = vpop.f32.mrf.mxu0
      %2425 = vmatprep.mubr.f32.mxu0 0.0
      %2426 = vmatmul.mubr.f32.gmra.mxu0 %v2210
      %v2427 = vpop.f32.mrf.mxu0
      %v2428 = vadd.f32 0.0, %v2427
      %v2429 = vpop.f32.mrf.mxu0
      %2430 = vmatprep.mubr.f32.mxu0 0.0
      %2431 = vmatmul.mubr.f32.gmra.mxu0 %v2213
      %v2432 = vpop.f32.mrf.mxu0
      %v2433 = vadd.f32 0.0, %v2432
      %v2434 = vpop.f32.mrf.mxu0
      %2435 = vmatprep.mubr.f32.mxu0 0.0
      %2436 = vmatmul.mubr.f32.gmra.mxu0 %v2216
      %v2437 = vpop.f32.mrf.mxu0
      %v2438 = vadd.f32 0.0, %v2437
      %v2439 = vpop.f32.mrf.mxu0
      %2440 = vmatprep.mubr.f32.mxu0 0.0
      %2441 = vmatmul.mubr.f32.gmra.mxu0 %v2219
      %v2442 = vpop.f32.mrf.mxu0
      %v2443 = vadd.f32 0.0, %v2442
      %v2444 = vpop.f32.mrf.mxu0
      %2445 = vdwg.mxu0
      %v2446 = vadd.f32 %v2051, %v2288
      %v2447 = vadd.f32 %v2052, %v2293
      %v2448 = vadd.f32 %v2053, %v2298
      %v2449 = vadd.f32 %v2054, %v2303
      %v2450 = vadd.f32 %v2055, %v2308
      %v2451 = vadd.f32 %v2056, %v2313
      %v2452 = vadd.f32 %v2057, %v2318
      %v2453 = vadd.f32 %v2058, %v2323
      %v2454 = vadd.f32 %v2059, %v2328
      %v2455 = vadd.f32 %v2060, %v2333
      %v2456 = vadd.f32 %v2061, %v2338
      %v2457 = vadd.f32 %v2062, %v2343
      %v2458 = vadd.f32 %v2063, %v2348
      %v2459 = vadd.f32 %v2064, %v2353
      %v2460 = vadd.f32 %v2065, %v2358
      %v2461 = vadd.f32 %v2066, %v2363
      %v2462 = vadd.f32 %v2067, %v2368
      %v2463 = vadd.f32 %v2068, %v2373
      %v2464 = vadd.f32 %v2069, %v2378
      %v2465 = vadd.f32 %v2070, %v2383
      %v2466 = vadd.f32 %v2071, %v2388
      %v2467 = vadd.f32 %v2072, %v2393
      %v2468 = vadd.f32 %v2073, %v2398
      %v2469 = vadd.f32 %v2074, %v2403
      %v2470 = vadd.f32 %v2075, %v2408
      %v2471 = vadd.f32 %v2076, %v2413
      %v2472 = vadd.f32 %v2077, %v2418
      %v2473 = vadd.f32 %v2078, %v2423
      %v2474 = vadd.f32 %v2079, %v2428
      %v2475 = vadd.f32 %v2080, %v2433
      %v2476 = vadd.f32 %v2081, %v2438
      %v2477 = vadd.f32 %v2082, %v2443
      %s2478 = scalar_lea.vmem %s165, 48
      %v2479 = vld [vmem:[%s2478] sm:$0xff]
      %v2480 = vld [vmem:[%s2478 + $0x8] sm:$0xff]
      %v2481 = vld [vmem:[%s2478 + $0x18] sm:$0xff]
      %v2482 = vld [vmem:[%s2478 + $0x20] sm:$0xff]
      %v2483 = vld [vmem:[%s2478 + $0x30] sm:$0xff]
      %v2484 = vld [vmem:[%s2478 + $0x38] sm:$0xff]
      %v2485 = vld [vmem:[%s2478 + $0x48] sm:$0xff]
      %v2486 = vld [vmem:[%s2478 + $0x50] sm:$0xff]
      %v2487 = vld [vmem:[%s2478 + $0x60] sm:$0xff]
      %v2488 = vld [vmem:[%s2478 + $0x68] sm:$0xff]
      %v2489 = vld [vmem:[%s2478 + $0x78] sm:$0xff]
      %v2490 = vld [vmem:[%s2478 + $0x80] sm:$0xff]
      %v2491 = vld [vmem:[%s2478 + $0x90] sm:$0xff]
      %v2492 = vld [vmem:[%s2478 + $0x98] sm:$0xff]
      %v2493 = vld [vmem:[%s2478 + $0xa8] sm:$0xff]
      %v2494 = vld [vmem:[%s2478 + $0xb0] sm:$0xff]
      %v2495 = vld [vmem:[%s2478 + $0xc0] sm:$0xff]
      %v2496 = vld [vmem:[%s2478 + $0xc8] sm:$0xff]
      %v2497 = vld [vmem:[%s2478 + $0xd8] sm:$0xff]
      %v2498 = vld [vmem:[%s2478 + $0xe0] sm:$0xff]
      %v2499 = vld [vmem:[%s2478 + $0xf0] sm:$0xff]
      %v2500 = vld [vmem:[%s2478 + $0xf8] sm:$0xff]
      %v2501 = vld [vmem:[%s2478 + $0x108] sm:$0xff]
      %v2502 = vld [vmem:[%s2478 + $0x110] sm:$0xff]
      %v2503 = vld [vmem:[%s2478 + $0x120] sm:$0xff]
      %v2504 = vld [vmem:[%s2478 + $0x128] sm:$0xff]
      %v2505 = vld [vmem:[%s2478 + $0x138] sm:$0xff]
      %v2506 = vld [vmem:[%s2478 + $0x140] sm:$0xff]
      %v2507 = vld [vmem:[%s2478 + $0x150] sm:$0xff]
      %v2508 = vld [vmem:[%s2478 + $0x158] sm:$0xff]
      %v2509 = vld [vmem:[%s2478 + $0x168] sm:$0xff]
      %v2510 = vld [vmem:[%s2478 + $0x170] sm:$0xff]
      %s2511 = scalar_lea.vmem %s1, 432
      %v2512 = vld [vmem:[%s2511] sm:$0xff]
      %v2513 = vld [vmem:[%s2511 + $0x8] sm:$0xff]
      %v2514 = vld [vmem:[%s2511 + $0x10] sm:$0xff]
      %v2515 = vld [vmem:[%s2511 + $0x18] sm:$0xff]
      %v2516 = vld [vmem:[%s2511 + $0x20] sm:$0xff]
      %v2517 = vld [vmem:[%s2511 + $0x28] sm:$0xff]
      %v2518 = vld [vmem:[%s2511 + $0x30] sm:$0xff]
      %v2519 = vld [vmem:[%s2511 + $0x38] sm:$0xff]
      %v2520 = vld [vmem:[%s2511 + $0x40] sm:$0xff]
      %v2522 = vsel %vm254, %v2479, 0
      %v2525 = vsel %vm254, %v2480, 0
      %v2528 = vsel %vm254, %v2481, 0
      %v2531 = vsel %vm254, %v2482, 0
      %v2534 = vsel %vm254, %v2483, 0
      %v2537 = vsel %vm254, %v2484, 0
      %v2540 = vsel %vm254, %v2485, 0
      %v2543 = vsel %vm254, %v2486, 0
      %v2546 = vsel %vm254, %v2487, 0
      %v2549 = vsel %vm254, %v2488, 0
      %v2552 = vsel %vm254, %v2489, 0
      %v2555 = vsel %vm254, %v2490, 0
      %v2558 = vsel %vm254, %v2491, 0
      %v2561 = vsel %vm254, %v2492, 0
      %v2564 = vsel %vm254, %v2493, 0
      %v2567 = vsel %vm254, %v2494, 0
      %v2570 = vsel %vm254, %v2495, 0
      %v2573 = vsel %vm254, %v2496, 0
      %v2576 = vsel %vm254, %v2497, 0
      %v2579 = vsel %vm254, %v2498, 0
      %v2582 = vsel %vm254, %v2499, 0
      %v2585 = vsel %vm254, %v2500, 0
      %v2588 = vsel %vm254, %v2501, 0
      %v2591 = vsel %vm254, %v2502, 0
      %v2594 = vsel %vm254, %v2503, 0
      %v2597 = vsel %vm254, %v2504, 0
      %v2600 = vsel %vm254, %v2505, 0
      %v2603 = vsel %vm254, %v2506, 0
      %v2606 = vsel %vm254, %v2507, 0
      %v2609 = vsel %vm254, %v2508, 0
      %v2612 = vsel %vm254, %v2509, 0
      %v2615 = vsel %vm254, %v2510, 0
      %2617 = vmatprep.subr.mxu0 0.0
      %2618 = vmatpush1.msra.mxu0 0.0
      %2619 = vmatprep.subr.mxu0 0.0
      %2620 = vmatpush1.msra.mxu0 0.0
      %2621 = vmatprep.subr.mxu0 0.0
      %2622 = vmatpush1.msra.mxu0 0.0
      %2623 = vmatprep.subr.mxu0 0.0
      %2624 = vmatpush1.msra.mxu0 0.0
      %2625 = vmatprep.subr.mxu0 0.0
      %2626 = vmatpush1.msra.mxu0 0.0
      %2627 = vmatprep.subr.mxu0 0.0
      %2628 = vmatpush1.msra.mxu0 0.0
      %2629 = vmatprep.subr.mxu0 0.0
      %2630 = vmatpush1.msra.mxu0 0.0
      %2631 = vmatprep.subr.mxu0 0.0
      %2632 = vmatpush1.msra.mxu0 %v2520
      %2633 = vmatprep.subr.mxu0 0.0
      %2634 = vmatpush1.msra.mxu0 %v2519
      %2635 = vmatprep.subr.mxu0 0.0
      %2636 = vmatpush1.msra.mxu0 %v2518
      %2637 = vmatprep.subr.mxu0 0.0
      %2638 = vmatpush1.msra.mxu0 %v2517
      %2639 = vmatprep.subr.mxu0 0.0
      %2640 = vmatpush1.msra.mxu0 %v2516
      %2641 = vmatprep.subr.mxu0 0.0
      %2642 = vmatpush1.msra.mxu0 %v2515
      %2643 = vmatprep.subr.mxu0 0.0
      %2644 = vmatpush1.msra.mxu0 %v2514
      %2645 = vmatprep.subr.mxu0 0.0
      %2646 = vmatpush1.msra.mxu0 %v2513
      %2647 = vmatprep.subr.mxu0 0.0
      %2648 = vmatpush1.msra.mxu0 %v2512
      %2649 = vmatprep.subr.mxu0 0.0
      %2650 = vmatpush2.msra.mxu0 0.0
      %2651 = vmatprep.subr.mxu0 0.0
      %2652 = vmatpush2.msra.mxu0 0.0
      %2653 = vmatprep.subr.mxu0 0.0
      %2654 = vmatpush2.msra.mxu0 0.0
      %2655 = vmatprep.subr.mxu0 0.0
      %2656 = vmatpush2.msra.mxu0 0.0
      %2657 = vmatprep.subr.mxu0 0.0
      %2658 = vmatpush2.msra.mxu0 0.0
      %2659 = vmatprep.subr.mxu0 0.0
      %2660 = vmatpush2.msra.mxu0 0.0
      %2661 = vmatprep.subr.mxu0 0.0
      %2662 = vmatpush2.msra.mxu0 0.0
      %2663 = vmatprep.subr.mxu0 0.0
      %2664 = vmatpush2.msra.mxu0 0.0
      %2665 = vmatprep.subr.mxu0 0.0
      %2666 = vmatpush2.msra.mxu0 0.0
      %2667 = vmatprep.subr.mxu0 0.0
      %2668 = vmatpush2.msra.mxu0 0.0
      %2669 = vmatprep.subr.mxu0 0.0
      %2670 = vmatpush2.msra.mxu0 0.0
      %2671 = vmatprep.subr.mxu0 0.0
      %2672 = vmatpush2.msra.mxu0 0.0
      %2673 = vmatprep.subr.mxu0 0.0
      %2674 = vmatpush2.msra.mxu0 0.0
      %2675 = vmatprep.subr.mxu0 0.0
      %2676 = vmatpush2.msra.mxu0 0.0
      %2677 = vmatprep.subr.mxu0 0.0
      %2678 = vmatpush2.msra.mxu0 0.0
      %2679 = vmatprep.subr.mxu0 0.0
      %2680 = vmatpush2.msra.mxu0 0.0
      %2681 = vmatprep.mubr.f32.mxu0 0.0
      %2682 = vmatmul.mubr.f32.gmra.mxu0 %v2522
      %v2683 = vpop.f32.mrf.mxu0
      %v2684 = vadd.f32 0.0, %v2683
      %v2685 = vpop.f32.mrf.mxu0
      %2686 = vmatprep.mubr.f32.mxu0 0.0
      %2687 = vmatmul.mubr.f32.gmra.mxu0 %v2525
      %v2688 = vpop.f32.mrf.mxu0
      %v2689 = vadd.f32 0.0, %v2688
      %v2690 = vpop.f32.mrf.mxu0
      %2691 = vmatprep.mubr.f32.mxu0 0.0
      %2692 = vmatmul.mubr.f32.gmra.mxu0 %v2528
      %v2693 = vpop.f32.mrf.mxu0
      %v2694 = vadd.f32 0.0, %v2693
      %v2695 = vpop.f32.mrf.mxu0
      %2696 = vmatprep.mubr.f32.mxu0 0.0
      %2697 = vmatmul.mubr.f32.gmra.mxu0 %v2531
      %v2698 = vpop.f32.mrf.mxu0
      %v2699 = vadd.f32 0.0, %v2698
      %v2700 = vpop.f32.mrf.mxu0
      %2701 = vmatprep.mubr.f32.mxu0 0.0
      %2702 = vmatmul.mubr.f32.gmra.mxu0 %v2534
      %v2703 = vpop.f32.mrf.mxu0
      %v2704 = vadd.f32 0.0, %v2703
      %v2705 = vpop.f32.mrf.mxu0
      %2706 = vmatprep.mubr.f32.mxu0 0.0
      %2707 = vmatmul.mubr.f32.gmra.mxu0 %v2537
      %v2708 = vpop.f32.mrf.mxu0
      %v2709 = vadd.f32 0.0, %v2708
      %v2710 = vpop.f32.mrf.mxu0
      %2711 = vmatprep.mubr.f32.mxu0 0.0
      %2712 = vmatmul.mubr.f32.gmra.mxu0 %v2540
      %v2713 = vpop.f32.mrf.mxu0
      %v2714 = vadd.f32 0.0, %v2713
      %v2715 = vpop.f32.mrf.mxu0
      %2716 = vmatprep.mubr.f32.mxu0 0.0
      %2717 = vmatmul.mubr.f32.gmra.mxu0 %v2543
      %v2718 = vpop.f32.mrf.mxu0
      %v2719 = vadd.f32 0.0, %v2718
      %v2720 = vpop.f32.mrf.mxu0
      %2721 = vmatprep.mubr.f32.mxu0 0.0
      %2722 = vmatmul.mubr.f32.gmra.mxu0 %v2546
      %v2723 = vpop.f32.mrf.mxu0
      %v2724 = vadd.f32 0.0, %v2723
      %v2725 = vpop.f32.mrf.mxu0
      %2726 = vmatprep.mubr.f32.mxu0 0.0
      %2727 = vmatmul.mubr.f32.gmra.mxu0 %v2549
      %v2728 = vpop.f32.mrf.mxu0
      %v2729 = vadd.f32 0.0, %v2728
      %v2730 = vpop.f32.mrf.mxu0
      %2731 = vmatprep.mubr.f32.mxu0 0.0
      %2732 = vmatmul.mubr.f32.gmra.mxu0 %v2552
      %v2733 = vpop.f32.mrf.mxu0
      %v2734 = vadd.f32 0.0, %v2733
      %v2735 = vpop.f32.mrf.mxu0
      %2736 = vmatprep.mubr.f32.mxu0 0.0
      %2737 = vmatmul.mubr.f32.gmra.mxu0 %v2555
      %v2738 = vpop.f32.mrf.mxu0
      %v2739 = vadd.f32 0.0, %v2738
      %v2740 = vpop.f32.mrf.mxu0
      %2741 = vmatprep.mubr.f32.mxu0 0.0
      %2742 = vmatmul.mubr.f32.gmra.mxu0 %v2558
      %v2743 = vpop.f32.mrf.mxu0
      %v2744 = vadd.f32 0.0, %v2743
      %v2745 = vpop.f32.mrf.mxu0
      %2746 = vmatprep.mubr.f32.mxu0 0.0
      %2747 = vmatmul.mubr.f32.gmra.mxu0 %v2561
      %v2748 = vpop.f32.mrf.mxu0
      %v2749 = vadd.f32 0.0, %v2748
      %v2750 = vpop.f32.mrf.mxu0
      %2751 = vmatprep.mubr.f32.mxu0 0.0
      %2752 = vmatmul.mubr.f32.gmra.mxu0 %v2564
      %v2753 = vpop.f32.mrf.mxu0
      %v2754 = vadd.f32 0.0, %v2753
      %v2755 = vpop.f32.mrf.mxu0
      %2756 = vmatprep.mubr.f32.mxu0 0.0
      %2757 = vmatmul.mubr.f32.gmra.mxu0 %v2567
      %v2758 = vpop.f32.mrf.mxu0
      %v2759 = vadd.f32 0.0, %v2758
      %v2760 = vpop.f32.mrf.mxu0
      %2761 = vmatprep.mubr.f32.mxu0 0.0
      %2762 = vmatmul.mubr.f32.gmra.mxu0 %v2570
      %v2763 = vpop.f32.mrf.mxu0
      %v2764 = vadd.f32 0.0, %v2763
      %v2765 = vpop.f32.mrf.mxu0
      %2766 = vmatprep.mubr.f32.mxu0 0.0
      %2767 = vmatmul.mubr.f32.gmra.mxu0 %v2573
      %v2768 = vpop.f32.mrf.mxu0
      %v2769 = vadd.f32 0.0, %v2768
      %v2770 = vpop.f32.mrf.mxu0
      %2771 = vmatprep.mubr.f32.mxu0 0.0
      %2772 = vmatmul.mubr.f32.gmra.mxu0 %v2576
      %v2773 = vpop.f32.mrf.mxu0
      %v2774 = vadd.f32 0.0, %v2773
      %v2775 = vpop.f32.mrf.mxu0
      %2776 = vmatprep.mubr.f32.mxu0 0.0
      %2777 = vmatmul.mubr.f32.gmra.mxu0 %v2579
      %v2778 = vpop.f32.mrf.mxu0
      %v2779 = vadd.f32 0.0, %v2778
      %v2780 = vpop.f32.mrf.mxu0
      %2781 = vmatprep.mubr.f32.mxu0 0.0
      %2782 = vmatmul.mubr.f32.gmra.mxu0 %v2582
      %v2783 = vpop.f32.mrf.mxu0
      %v2784 = vadd.f32 0.0, %v2783
      %v2785 = vpop.f32.mrf.mxu0
      %2786 = vmatprep.mubr.f32.mxu0 0.0
      %2787 = vmatmul.mubr.f32.gmra.mxu0 %v2585
      %v2788 = vpop.f32.mrf.mxu0
      %v2789 = vadd.f32 0.0, %v2788
      %v2790 = vpop.f32.mrf.mxu0
      %2791 = vmatprep.mubr.f32.mxu0 0.0
      %2792 = vmatmul.mubr.f32.gmra.mxu0 %v2588
      %v2793 = vpop.f32.mrf.mxu0
      %v2794 = vadd.f32 0.0, %v2793
      %v2795 = vpop.f32.mrf.mxu0
      %2796 = vmatprep.mubr.f32.mxu0 0.0
      %2797 = vmatmul.mubr.f32.gmra.mxu0 %v2591
      %v2798 = vpop.f32.mrf.mxu0
      %v2799 = vadd.f32 0.0, %v2798
      %v2800 = vpop.f32.mrf.mxu0
      %2801 = vmatprep.mubr.f32.mxu0 0.0
      %2802 = vmatmul.mubr.f32.gmra.mxu0 %v2594
      %v2803 = vpop.f32.mrf.mxu0
      %v2804 = vadd.f32 0.0, %v2803
      %v2805 = vpop.f32.mrf.mxu0
      %2806 = vmatprep.mubr.f32.mxu0 0.0
      %2807 = vmatmul.mubr.f32.gmra.mxu0 %v2597
      %v2808 = vpop.f32.mrf.mxu0
      %v2809 = vadd.f32 0.0, %v2808
      %v2810 = vpop.f32.mrf.mxu0
      %2811 = vmatprep.mubr.f32.mxu0 0.0
      %2812 = vmatmul.mubr.f32.gmra.mxu0 %v2600
      %v2813 = vpop.f32.mrf.mxu0
      %v2814 = vadd.f32 0.0, %v2813
      %v2815 = vpop.f32.mrf.mxu0
      %2816 = vmatprep.mubr.f32.mxu0 0.0
      %2817 = vmatmul.mubr.f32.gmra.mxu0 %v2603
      %v2818 = vpop.f32.mrf.mxu0
      %v2819 = vadd.f32 0.0, %v2818
      %v2820 = vpop.f32.mrf.mxu0
      %2821 = vmatprep.mubr.f32.mxu0 0.0
      %2822 = vmatmul.mubr.f32.gmra.mxu0 %v2606
      %v2823 = vpop.f32.mrf.mxu0
      %v2824 = vadd.f32 0.0, %v2823
      %v2825 = vpop.f32.mrf.mxu0
      %2826 = vmatprep.mubr.f32.mxu0 0.0
      %2827 = vmatmul.mubr.f32.gmra.mxu0 %v2609
      %v2828 = vpop.f32.mrf.mxu0
      %v2829 = vadd.f32 0.0, %v2828
      %v2830 = vpop.f32.mrf.mxu0
      %2831 = vmatprep.mubr.f32.mxu0 0.0
      %2832 = vmatmul.mubr.f32.gmra.mxu0 %v2612
      %v2833 = vpop.f32.mrf.mxu0
      %v2834 = vadd.f32 0.0, %v2833
      %v2835 = vpop.f32.mrf.mxu0
      %2836 = vmatprep.mubr.f32.mxu0 0.0
      %2837 = vmatmul.mubr.f32.gmra.mxu0 %v2615
      %v2838 = vpop.f32.mrf.mxu0
      %v2839 = vadd.f32 0.0, %v2838
      %v2840 = vpop.f32.mrf.mxu0
      %2841 = vdwg.mxu0
      %v2842 = vadd.f32 %v2446, %v2684
      %v2843 = vadd.f32 %v2447, %v2689
      %v2844 = vadd.f32 %v2448, %v2694
      %v2845 = vadd.f32 %v2449, %v2699
      %v2846 = vadd.f32 %v2450, %v2704
      %v2847 = vadd.f32 %v2451, %v2709
      %v2848 = vadd.f32 %v2452, %v2714
      %v2849 = vadd.f32 %v2453, %v2719
      %v2850 = vadd.f32 %v2454, %v2724
      %v2851 = vadd.f32 %v2455, %v2729
      %v2852 = vadd.f32 %v2456, %v2734
      %v2853 = vadd.f32 %v2457, %v2739
      %v2854 = vadd.f32 %v2458, %v2744
      %v2855 = vadd.f32 %v2459, %v2749
      %v2856 = vadd.f32 %v2460, %v2754
      %v2857 = vadd.f32 %v2461, %v2759
      %v2858 = vadd.f32 %v2462, %v2764
      %v2859 = vadd.f32 %v2463, %v2769
      %v2860 = vadd.f32 %v2464, %v2774
      %v2861 = vadd.f32 %v2465, %v2779
      %v2862 = vadd.f32 %v2466, %v2784
      %v2863 = vadd.f32 %v2467, %v2789
      %v2864 = vadd.f32 %v2468, %v2794
      %v2865 = vadd.f32 %v2469, %v2799
      %v2866 = vadd.f32 %v2470, %v2804
      %v2867 = vadd.f32 %v2471, %v2809
      %v2868 = vadd.f32 %v2472, %v2814
      %v2869 = vadd.f32 %v2473, %v2819
      %v2870 = vadd.f32 %v2474, %v2824
      %v2871 = vadd.f32 %v2475, %v2829
      %v2872 = vadd.f32 %v2476, %v2834
      %v2873 = vadd.f32 %v2477, %v2839
      %v2874 = vld [vmem:[%s2478 + $0x1] sm:$0xff]
      %v2875 = vld [vmem:[%s2478 + $0x9] sm:$0xff]
      %v2876 = vld [vmem:[%s2478 + $0x19] sm:$0xff]
      %v2877 = vld [vmem:[%s2478 + $0x21] sm:$0xff]
      %v2878 = vld [vmem:[%s2478 + $0x31] sm:$0xff]
      %v2879 = vld [vmem:[%s2478 + $0x39] sm:$0xff]
      %v2880 = vld [vmem:[%s2478 + $0x49] sm:$0xff]
      %v2881 = vld [vmem:[%s2478 + $0x51] sm:$0xff]
      %v2882 = vld [vmem:[%s2478 + $0x61] sm:$0xff]
      %v2883 = vld [vmem:[%s2478 + $0x69] sm:$0xff]
      %v2884 = vld [vmem:[%s2478 + $0x79] sm:$0xff]
      %v2885 = vld [vmem:[%s2478 + $0x81] sm:$0xff]
      %v2886 = vld [vmem:[%s2478 + $0x91] sm:$0xff]
      %v2887 = vld [vmem:[%s2478 + $0x99] sm:$0xff]
      %v2888 = vld [vmem:[%s2478 + $0xa9] sm:$0xff]
      %v2889 = vld [vmem:[%s2478 + $0xb1] sm:$0xff]
      %v2890 = vld [vmem:[%s2478 + $0xc1] sm:$0xff]
      %v2891 = vld [vmem:[%s2478 + $0xc9] sm:$0xff]
      %v2892 = vld [vmem:[%s2478 + $0xd9] sm:$0xff]
      %v2893 = vld [vmem:[%s2478 + $0xe1] sm:$0xff]
      %v2894 = vld [vmem:[%s2478 + $0xf1] sm:$0xff]
      %v2895 = vld [vmem:[%s2478 + $0xf9] sm:$0xff]
      %v2896 = vld [vmem:[%s2478 + $0x109] sm:$0xff]
      %v2897 = vld [vmem:[%s2478 + $0x111] sm:$0xff]
      %v2898 = vld [vmem:[%s2478 + $0x121] sm:$0xff]
      %v2899 = vld [vmem:[%s2478 + $0x129] sm:$0xff]
      %v2900 = vld [vmem:[%s2478 + $0x139] sm:$0xff]
      %v2901 = vld [vmem:[%s2478 + $0x141] sm:$0xff]
      %v2902 = vld [vmem:[%s2478 + $0x151] sm:$0xff]
      %v2903 = vld [vmem:[%s2478 + $0x159] sm:$0xff]
      %v2904 = vld [vmem:[%s2478 + $0x169] sm:$0xff]
      %v2905 = vld [vmem:[%s2478 + $0x171] sm:$0xff]
      %s2906 = scalar_lea.vmem %s1, 504
      %v2907 = vld [vmem:[%s2906] sm:$0xff]
      %v2908 = vld [vmem:[%s2906 + $0x8] sm:$0xff]
      %v2909 = vld [vmem:[%s2906 + $0x10] sm:$0xff]
      %v2910 = vld [vmem:[%s2906 + $0x18] sm:$0xff]
      %v2911 = vld [vmem:[%s2906 + $0x20] sm:$0xff]
      %v2912 = vld [vmem:[%s2906 + $0x28] sm:$0xff]
      %v2913 = vld [vmem:[%s2906 + $0x30] sm:$0xff]
      %v2914 = vld [vmem:[%s2906 + $0x38] sm:$0xff]
      %v2915 = vld [vmem:[%s2906 + $0x40] sm:$0xff]
      %v2917 = vsel %vm254, %v2874, 0
      %v2920 = vsel %vm254, %v2875, 0
      %v2923 = vsel %vm254, %v2876, 0
      %v2926 = vsel %vm254, %v2877, 0
      %v2929 = vsel %vm254, %v2878, 0
      %v2932 = vsel %vm254, %v2879, 0
      %v2935 = vsel %vm254, %v2880, 0
      %v2938 = vsel %vm254, %v2881, 0
      %v2941 = vsel %vm254, %v2882, 0
      %v2944 = vsel %vm254, %v2883, 0
      %v2947 = vsel %vm254, %v2884, 0
      %v2950 = vsel %vm254, %v2885, 0
      %v2953 = vsel %vm254, %v2886, 0
      %v2956 = vsel %vm254, %v2887, 0
      %v2959 = vsel %vm254, %v2888, 0
      %v2962 = vsel %vm254, %v2889, 0
      %v2965 = vsel %vm254, %v2890, 0
      %v2968 = vsel %vm254, %v2891, 0
      %v2971 = vsel %vm254, %v2892, 0
      %v2974 = vsel %vm254, %v2893, 0
      %v2977 = vsel %vm254, %v2894, 0
      %v2980 = vsel %vm254, %v2895, 0
      %v2983 = vsel %vm254, %v2896, 0
      %v2986 = vsel %vm254, %v2897, 0
      %v2989 = vsel %vm254, %v2898, 0
      %v2992 = vsel %vm254, %v2899, 0
      %v2995 = vsel %vm254, %v2900, 0
      %v2998 = vsel %vm254, %v2901, 0
      %v3001 = vsel %vm254, %v2902, 0
      %v3004 = vsel %vm254, %v2903, 0
      %v3007 = vsel %vm254, %v2904, 0
      %v3010 = vsel %vm254, %v2905, 0
      %3012 = vmatprep.subr.mxu0 0.0
      %3013 = vmatpush1.msra.mxu0 0.0
      %3014 = vmatprep.subr.mxu0 0.0
      %3015 = vmatpush1.msra.mxu0 0.0
      %3016 = vmatprep.subr.mxu0 0.0
      %3017 = vmatpush1.msra.mxu0 0.0
      %3018 = vmatprep.subr.mxu0 0.0
      %3019 = vmatpush1.msra.mxu0 0.0
      %3020 = vmatprep.subr.mxu0 0.0
      %3021 = vmatpush1.msra.mxu0 0.0
      %3022 = vmatprep.subr.mxu0 0.0
      %3023 = vmatpush1.msra.mxu0 0.0
      %3024 = vmatprep.subr.mxu0 0.0
      %3025 = vmatpush1.msra.mxu0 0.0
      %3026 = vmatprep.subr.mxu0 0.0
      %3027 = vmatpush1.msra.mxu0 %v2915
      %3028 = vmatprep.subr.mxu0 0.0
      %3029 = vmatpush1.msra.mxu0 %v2914
      %3030 = vmatprep.subr.mxu0 0.0
      %3031 = vmatpush1.msra.mxu0 %v2913
      %3032 = vmatprep.subr.mxu0 0.0
      %3033 = vmatpush1.msra.mxu0 %v2912
      %3034 = vmatprep.subr.mxu0 0.0
      %3035 = vmatpush1.msra.mxu0 %v2911
      %3036 = vmatprep.subr.mxu0 0.0
      %3037 = vmatpush1.msra.mxu0 %v2910
      %3038 = vmatprep.subr.mxu0 0.0
      %3039 = vmatpush1.msra.mxu0 %v2909
      %3040 = vmatprep.subr.mxu0 0.0
      %3041 = vmatpush1.msra.mxu0 %v2908
      %3042 = vmatprep.subr.mxu0 0.0
      %3043 = vmatpush1.msra.mxu0 %v2907
      %3044 = vmatprep.subr.mxu0 0.0
      %3045 = vmatpush2.msra.mxu0 0.0
      %3046 = vmatprep.subr.mxu0 0.0
      %3047 = vmatpush2.msra.mxu0 0.0
      %3048 = vmatprep.subr.mxu0 0.0
      %3049 = vmatpush2.msra.mxu0 0.0
      %3050 = vmatprep.subr.mxu0 0.0
      %3051 = vmatpush2.msra.mxu0 0.0
      %3052 = vmatprep.subr.mxu0 0.0
      %3053 = vmatpush2.msra.mxu0 0.0
      %3054 = vmatprep.subr.mxu0 0.0
      %3055 = vmatpush2.msra.mxu0 0.0
      %3056 = vmatprep.subr.mxu0 0.0
      %3057 = vmatpush2.msra.mxu0 0.0
      %3058 = vmatprep.subr.mxu0 0.0
      %3059 = vmatpush2.msra.mxu0 0.0
      %3060 = vmatprep.subr.mxu0 0.0
      %3061 = vmatpush2.msra.mxu0 0.0
      %3062 = vmatprep.subr.mxu0 0.0
      %3063 = vmatpush2.msra.mxu0 0.0
      %3064 = vmatprep.subr.mxu0 0.0
      %3065 = vmatpush2.msra.mxu0 0.0
      %3066 = vmatprep.subr.mxu0 0.0
      %3067 = vmatpush2.msra.mxu0 0.0
      %3068 = vmatprep.subr.mxu0 0.0
      %3069 = vmatpush2.msra.mxu0 0.0
      %3070 = vmatprep.subr.mxu0 0.0
      %3071 = vmatpush2.msra.mxu0 0.0
      %3072 = vmatprep.subr.mxu0 0.0
      %3073 = vmatpush2.msra.mxu0 0.0
      %3074 = vmatprep.subr.mxu0 0.0
      %3075 = vmatpush2.msra.mxu0 0.0
      %3076 = vmatprep.mubr.f32.mxu0 0.0
      %3077 = vmatmul.mubr.f32.gmra.mxu0 %v2917
      %v3078 = vpop.f32.mrf.mxu0
      %v3079 = vadd.f32 0.0, %v3078
      %v3080 = vpop.f32.mrf.mxu0
      %3081 = vmatprep.mubr.f32.mxu0 0.0
      %3082 = vmatmul.mubr.f32.gmra.mxu0 %v2920
      %v3083 = vpop.f32.mrf.mxu0
      %v3084 = vadd.f32 0.0, %v3083
      %v3085 = vpop.f32.mrf.mxu0
      %3086 = vmatprep.mubr.f32.mxu0 0.0
      %3087 = vmatmul.mubr.f32.gmra.mxu0 %v2923
      %v3088 = vpop.f32.mrf.mxu0
      %v3089 = vadd.f32 0.0, %v3088
      %v3090 = vpop.f32.mrf.mxu0
      %3091 = vmatprep.mubr.f32.mxu0 0.0
      %3092 = vmatmul.mubr.f32.gmra.mxu0 %v2926
      %v3093 = vpop.f32.mrf.mxu0
      %v3094 = vadd.f32 0.0, %v3093
      %v3095 = vpop.f32.mrf.mxu0
      %3096 = vmatprep.mubr.f32.mxu0 0.0
      %3097 = vmatmul.mubr.f32.gmra.mxu0 %v2929
      %v3098 = vpop.f32.mrf.mxu0
      %v3099 = vadd.f32 0.0, %v3098
      %v3100 = vpop.f32.mrf.mxu0
      %3101 = vmatprep.mubr.f32.mxu0 0.0
      %3102 = vmatmul.mubr.f32.gmra.mxu0 %v2932
      %v3103 = vpop.f32.mrf.mxu0
      %v3104 = vadd.f32 0.0, %v3103
      %v3105 = vpop.f32.mrf.mxu0
      %3106 = vmatprep.mubr.f32.mxu0 0.0
      %3107 = vmatmul.mubr.f32.gmra.mxu0 %v2935
      %v3108 = vpop.f32.mrf.mxu0
      %v3109 = vadd.f32 0.0, %v3108
      %v3110 = vpop.f32.mrf.mxu0
      %3111 = vmatprep.mubr.f32.mxu0 0.0
      %3112 = vmatmul.mubr.f32.gmra.mxu0 %v2938
      %v3113 = vpop.f32.mrf.mxu0
      %v3114 = vadd.f32 0.0, %v3113
      %v3115 = vpop.f32.mrf.mxu0
      %3116 = vmatprep.mubr.f32.mxu0 0.0
      %3117 = vmatmul.mubr.f32.gmra.mxu0 %v2941
      %v3118 = vpop.f32.mrf.mxu0
      %v3119 = vadd.f32 0.0, %v3118
      %v3120 = vpop.f32.mrf.mxu0
      %3121 = vmatprep.mubr.f32.mxu0 0.0
      %3122 = vmatmul.mubr.f32.gmra.mxu0 %v2944
      %v3123 = vpop.f32.mrf.mxu0
      %v3124 = vadd.f32 0.0, %v3123
      %v3125 = vpop.f32.mrf.mxu0
      %3126 = vmatprep.mubr.f32.mxu0 0.0
      %3127 = vmatmul.mubr.f32.gmra.mxu0 %v2947
      %v3128 = vpop.f32.mrf.mxu0
      %v3129 = vadd.f32 0.0, %v3128
      %v3130 = vpop.f32.mrf.mxu0
      %3131 = vmatprep.mubr.f32.mxu0 0.0
      %3132 = vmatmul.mubr.f32.gmra.mxu0 %v2950
      %v3133 = vpop.f32.mrf.mxu0
      %v3134 = vadd.f32 0.0, %v3133
      %v3135 = vpop.f32.mrf.mxu0
      %3136 = vmatprep.mubr.f32.mxu0 0.0
      %3137 = vmatmul.mubr.f32.gmra.mxu0 %v2953
      %v3138 = vpop.f32.mrf.mxu0
      %v3139 = vadd.f32 0.0, %v3138
      %v3140 = vpop.f32.mrf.mxu0
      %3141 = vmatprep.mubr.f32.mxu0 0.0
      %3142 = vmatmul.mubr.f32.gmra.mxu0 %v2956
      %v3143 = vpop.f32.mrf.mxu0
      %v3144 = vadd.f32 0.0, %v3143
      %v3145 = vpop.f32.mrf.mxu0
      %3146 = vmatprep.mubr.f32.mxu0 0.0
      %3147 = vmatmul.mubr.f32.gmra.mxu0 %v2959
      %v3148 = vpop.f32.mrf.mxu0
      %v3149 = vadd.f32 0.0, %v3148
      %v3150 = vpop.f32.mrf.mxu0
      %3151 = vmatprep.mubr.f32.mxu0 0.0
      %3152 = vmatmul.mubr.f32.gmra.mxu0 %v2962
      %v3153 = vpop.f32.mrf.mxu0
      %v3154 = vadd.f32 0.0, %v3153
      %v3155 = vpop.f32.mrf.mxu0
      %3156 = vmatprep.mubr.f32.mxu0 0.0
      %3157 = vmatmul.mubr.f32.gmra.mxu0 %v2965
      %v3158 = vpop.f32.mrf.mxu0
      %v3159 = vadd.f32 0.0, %v3158
      %v3160 = vpop.f32.mrf.mxu0
      %3161 = vmatprep.mubr.f32.mxu0 0.0
      %3162 = vmatmul.mubr.f32.gmra.mxu0 %v2968
      %v3163 = vpop.f32.mrf.mxu0
      %v3164 = vadd.f32 0.0, %v3163
      %v3165 = vpop.f32.mrf.mxu0
      %3166 = vmatprep.mubr.f32.mxu0 0.0
      %3167 = vmatmul.mubr.f32.gmra.mxu0 %v2971
      %v3168 = vpop.f32.mrf.mxu0
      %v3169 = vadd.f32 0.0, %v3168
      %v3170 = vpop.f32.mrf.mxu0
      %3171 = vmatprep.mubr.f32.mxu0 0.0
      %3172 = vmatmul.mubr.f32.gmra.mxu0 %v2974
      %v3173 = vpop.f32.mrf.mxu0
      %v3174 = vadd.f32 0.0, %v3173
      %v3175 = vpop.f32.mrf.mxu0
      %3176 = vmatprep.mubr.f32.mxu0 0.0
      %3177 = vmatmul.mubr.f32.gmra.mxu0 %v2977
      %v3178 = vpop.f32.mrf.mxu0
      %v3179 = vadd.f32 0.0, %v3178
      %v3180 = vpop.f32.mrf.mxu0
      %3181 = vmatprep.mubr.f32.mxu0 0.0
      %3182 = vmatmul.mubr.f32.gmra.mxu0 %v2980
      %v3183 = vpop.f32.mrf.mxu0
      %v3184 = vadd.f32 0.0, %v3183
      %v3185 = vpop.f32.mrf.mxu0
      %3186 = vmatprep.mubr.f32.mxu0 0.0
      %3187 = vmatmul.mubr.f32.gmra.mxu0 %v2983
      %v3188 = vpop.f32.mrf.mxu0
      %v3189 = vadd.f32 0.0, %v3188
      %v3190 = vpop.f32.mrf.mxu0
      %3191 = vmatprep.mubr.f32.mxu0 0.0
      %3192 = vmatmul.mubr.f32.gmra.mxu0 %v2986
      %v3193 = vpop.f32.mrf.mxu0
      %v3194 = vadd.f32 0.0, %v3193
      %v3195 = vpop.f32.mrf.mxu0
      %3196 = vmatprep.mubr.f32.mxu0 0.0
      %3197 = vmatmul.mubr.f32.gmra.mxu0 %v2989
      %v3198 = vpop.f32.mrf.mxu0
      %v3199 = vadd.f32 0.0, %v3198
      %v3200 = vpop.f32.mrf.mxu0
      %3201 = vmatprep.mubr.f32.mxu0 0.0
      %3202 = vmatmul.mubr.f32.gmra.mxu0 %v2992
      %v3203 = vpop.f32.mrf.mxu0
      %v3204 = vadd.f32 0.0, %v3203
      %v3205 = vpop.f32.mrf.mxu0
      %3206 = vmatprep.mubr.f32.mxu0 0.0
      %3207 = vmatmul.mubr.f32.gmra.mxu0 %v2995
      %v3208 = vpop.f32.mrf.mxu0
      %v3209 = vadd.f32 0.0, %v3208
      %v3210 = vpop.f32.mrf.mxu0
      %3211 = vmatprep.mubr.f32.mxu0 0.0
      %3212 = vmatmul.mubr.f32.gmra.mxu0 %v2998
      %v3213 = vpop.f32.mrf.mxu0
      %v3214 = vadd.f32 0.0, %v3213
      %v3215 = vpop.f32.mrf.mxu0
      %3216 = vmatprep.mubr.f32.mxu0 0.0
      %3217 = vmatmul.mubr.f32.gmra.mxu0 %v3001
      %v3218 = vpop.f32.mrf.mxu0
      %v3219 = vadd.f32 0.0, %v3218
      %v3220 = vpop.f32.mrf.mxu0
      %3221 = vmatprep.mubr.f32.mxu0 0.0
      %3222 = vmatmul.mubr.f32.gmra.mxu0 %v3004
      %v3223 = vpop.f32.mrf.mxu0
      %v3224 = vadd.f32 0.0, %v3223
      %v3225 = vpop.f32.mrf.mxu0
      %3226 = vmatprep.mubr.f32.mxu0 0.0
      %3227 = vmatmul.mubr.f32.gmra.mxu0 %v3007
      %v3228 = vpop.f32.mrf.mxu0
      %v3229 = vadd.f32 0.0, %v3228
      %v3230 = vpop.f32.mrf.mxu0
      %3231 = vmatprep.mubr.f32.mxu0 0.0
      %3232 = vmatmul.mubr.f32.gmra.mxu0 %v3010
      %v3233 = vpop.f32.mrf.mxu0
      %v3234 = vadd.f32 0.0, %v3233
      %v3235 = vpop.f32.mrf.mxu0
      %3236 = vdwg.mxu0
      %v3237 = vadd.f32 %v2842, %v3079
      %v3238 = vadd.f32 %v2843, %v3084
      %v3239 = vadd.f32 %v2844, %v3089
      %v3240 = vadd.f32 %v2845, %v3094
      %v3241 = vadd.f32 %v2846, %v3099
      %v3242 = vadd.f32 %v2847, %v3104
      %v3243 = vadd.f32 %v2848, %v3109
      %v3244 = vadd.f32 %v2849, %v3114
      %v3245 = vadd.f32 %v2850, %v3119
      %v3246 = vadd.f32 %v2851, %v3124
      %v3247 = vadd.f32 %v2852, %v3129
      %v3248 = vadd.f32 %v2853, %v3134
      %v3249 = vadd.f32 %v2854, %v3139
      %v3250 = vadd.f32 %v2855, %v3144
      %v3251 = vadd.f32 %v2856, %v3149
      %v3252 = vadd.f32 %v2857, %v3154
      %v3253 = vadd.f32 %v2858, %v3159
      %v3254 = vadd.f32 %v2859, %v3164
      %v3255 = vadd.f32 %v2860, %v3169
      %v3256 = vadd.f32 %v2861, %v3174
      %v3257 = vadd.f32 %v2862, %v3179
      %v3258 = vadd.f32 %v2863, %v3184
      %v3259 = vadd.f32 %v2864, %v3189
      %v3260 = vadd.f32 %v2865, %v3194
      %v3261 = vadd.f32 %v2866, %v3199
      %v3262 = vadd.f32 %v2867, %v3204
      %v3263 = vadd.f32 %v2868, %v3209
      %v3264 = vadd.f32 %v2869, %v3214
      %v3265 = vadd.f32 %v2870, %v3219
      %v3266 = vadd.f32 %v2871, %v3224
      %v3267 = vadd.f32 %v2872, %v3229
      %v3268 = vadd.f32 %v2873, %v3234
      %v3269 = vld [vmem:[%s2478 + $0x2] sm:$0xff]
      %v3270 = vld [vmem:[%s2478 + $0xa] sm:$0xff]
      %v3271 = vld [vmem:[%s2478 + $0x1a] sm:$0xff]
      %v3272 = vld [vmem:[%s2478 + $0x22] sm:$0xff]
      %v3273 = vld [vmem:[%s2478 + $0x32] sm:$0xff]
      %v3274 = vld [vmem:[%s2478 + $0x3a] sm:$0xff]
      %v3275 = vld [vmem:[%s2478 + $0x4a] sm:$0xff]
      %v3276 = vld [vmem:[%s2478 + $0x52] sm:$0xff]
      %v3277 = vld [vmem:[%s2478 + $0x62] sm:$0xff]
      %v3278 = vld [vmem:[%s2478 + $0x6a] sm:$0xff]
      %v3279 = vld [vmem:[%s2478 + $0x7a] sm:$0xff]
      %v3280 = vld [vmem:[%s2478 + $0x82] sm:$0xff]
      %v3281 = vld [vmem:[%s2478 + $0x92] sm:$0xff]
      %v3282 = vld [vmem:[%s2478 + $0x9a] sm:$0xff]
      %v3283 = vld [vmem:[%s2478 + $0xaa] sm:$0xff]
      %v3284 = vld [vmem:[%s2478 + $0xb2] sm:$0xff]
      %v3285 = vld [vmem:[%s2478 + $0xc2] sm:$0xff]
      %v3286 = vld [vmem:[%s2478 + $0xca] sm:$0xff]
      %v3287 = vld [vmem:[%s2478 + $0xda] sm:$0xff]
      %v3288 = vld [vmem:[%s2478 + $0xe2] sm:$0xff]
      %v3289 = vld [vmem:[%s2478 + $0xf2] sm:$0xff]
      %v3290 = vld [vmem:[%s2478 + $0xfa] sm:$0xff]
      %v3291 = vld [vmem:[%s2478 + $0x10a] sm:$0xff]
      %v3292 = vld [vmem:[%s2478 + $0x112] sm:$0xff]
      %v3293 = vld [vmem:[%s2478 + $0x122] sm:$0xff]
      %v3294 = vld [vmem:[%s2478 + $0x12a] sm:$0xff]
      %v3295 = vld [vmem:[%s2478 + $0x13a] sm:$0xff]
      %v3296 = vld [vmem:[%s2478 + $0x142] sm:$0xff]
      %v3297 = vld [vmem:[%s2478 + $0x152] sm:$0xff]
      %v3298 = vld [vmem:[%s2478 + $0x15a] sm:$0xff]
      %v3299 = vld [vmem:[%s2478 + $0x16a] sm:$0xff]
      %v3300 = vld [vmem:[%s2478 + $0x172] sm:$0xff]
      %s3301 = scalar_lea.vmem %s1, 576
      %v3302 = vld [vmem:[%s3301] sm:$0xff]
      %v3303 = vld [vmem:[%s3301 + $0x8] sm:$0xff]
      %v3304 = vld [vmem:[%s3301 + $0x10] sm:$0xff]
      %v3305 = vld [vmem:[%s3301 + $0x18] sm:$0xff]
      %v3306 = vld [vmem:[%s3301 + $0x20] sm:$0xff]
      %v3307 = vld [vmem:[%s3301 + $0x28] sm:$0xff]
      %v3308 = vld [vmem:[%s3301 + $0x30] sm:$0xff]
      %v3309 = vld [vmem:[%s3301 + $0x38] sm:$0xff]
      %v3310 = vld [vmem:[%s3301 + $0x40] sm:$0xff]
      %v3312 = vsel %vm254, %v3269, 0
      %v3315 = vsel %vm254, %v3270, 0
      %v3318 = vsel %vm254, %v3271, 0
      %v3321 = vsel %vm254, %v3272, 0
      %v3324 = vsel %vm254, %v3273, 0
      %v3327 = vsel %vm254, %v3274, 0
      %v3330 = vsel %vm254, %v3275, 0
      %v3333 = vsel %vm254, %v3276, 0
      %v3336 = vsel %vm254, %v3277, 0
      %v3339 = vsel %vm254, %v3278, 0
      %v3342 = vsel %vm254, %v3279, 0
      %v3345 = vsel %vm254, %v3280, 0
      %v3348 = vsel %vm254, %v3281, 0
      %v3351 = vsel %vm254, %v3282, 0
      %v3354 = vsel %vm254, %v3283, 0
      %v3357 = vsel %vm254, %v3284, 0
      %v3360 = vsel %vm254, %v3285, 0
      %v3363 = vsel %vm254, %v3286, 0
      %v3366 = vsel %vm254, %v3287, 0
      %v3369 = vsel %vm254, %v3288, 0
      %v3372 = vsel %vm254, %v3289, 0
      %v3375 = vsel %vm254, %v3290, 0
      %v3378 = vsel %vm254, %v3291, 0
      %v3381 = vsel %vm254, %v3292, 0
      %v3384 = vsel %vm254, %v3293, 0
      %v3387 = vsel %vm254, %v3294, 0
      %v3390 = vsel %vm254, %v3295, 0
      %v3393 = vsel %vm254, %v3296, 0
      %v3396 = vsel %vm254, %v3297, 0
      %v3399 = vsel %vm254, %v3298, 0
      %v3402 = vsel %vm254, %v3299, 0
      %v3405 = vsel %vm254, %v3300, 0
      %3407 = vmatprep.subr.mxu0 0.0
      %3408 = vmatpush1.msra.mxu0 0.0
      %3409 = vmatprep.subr.mxu0 0.0
      %3410 = vmatpush1.msra.mxu0 0.0
      %3411 = vmatprep.subr.mxu0 0.0
      %3412 = vmatpush1.msra.mxu0 0.0
      %3413 = vmatprep.subr.mxu0 0.0
      %3414 = vmatpush1.msra.mxu0 0.0
      %3415 = vmatprep.subr.mxu0 0.0
      %3416 = vmatpush1.msra.mxu0 0.0
      %3417 = vmatprep.subr.mxu0 0.0
      %3418 = vmatpush1.msra.mxu0 0.0
      %3419 = vmatprep.subr.mxu0 0.0
      %3420 = vmatpush1.msra.mxu0 0.0
      %3421 = vmatprep.subr.mxu0 0.0
      %3422 = vmatpush1.msra.mxu0 %v3310
      %3423 = vmatprep.subr.mxu0 0.0
      %3424 = vmatpush1.msra.mxu0 %v3309
      %3425 = vmatprep.subr.mxu0 0.0
      %3426 = vmatpush1.msra.mxu0 %v3308
      %3427 = vmatprep.subr.mxu0 0.0
      %3428 = vmatpush1.msra.mxu0 %v3307
      %3429 = vmatprep.subr.mxu0 0.0
      %3430 = vmatpush1.msra.mxu0 %v3306
      %3431 = vmatprep.subr.mxu0 0.0
      %3432 = vmatpush1.msra.mxu0 %v3305
      %3433 = vmatprep.subr.mxu0 0.0
      %3434 = vmatpush1.msra.mxu0 %v3304
      %3435 = vmatprep.subr.mxu0 0.0
      %3436 = vmatpush1.msra.mxu0 %v3303
      %3437 = vmatprep.subr.mxu0 0.0
      %3438 = vmatpush1.msra.mxu0 %v3302
      %3439 = vmatprep.subr.mxu0 0.0
      %3440 = vmatpush2.msra.mxu0 0.0
      %3441 = vmatprep.subr.mxu0 0.0
      %3442 = vmatpush2.msra.mxu0 0.0
      %3443 = vmatprep.subr.mxu0 0.0
      %3444 = vmatpush2.msra.mxu0 0.0
      %3445 = vmatprep.subr.mxu0 0.0
      %3446 = vmatpush2.msra.mxu0 0.0
      %3447 = vmatprep.subr.mxu0 0.0
      %3448 = vmatpush2.msra.mxu0 0.0
      %3449 = vmatprep.subr.mxu0 0.0
      %3450 = vmatpush2.msra.mxu0 0.0
      %3451 = vmatprep.subr.mxu0 0.0
      %3452 = vmatpush2.msra.mxu0 0.0
      %3453 = vmatprep.subr.mxu0 0.0
      %3454 = vmatpush2.msra.mxu0 0.0
      %3455 = vmatprep.subr.mxu0 0.0
      %3456 = vmatpush2.msra.mxu0 0.0
      %3457 = vmatprep.subr.mxu0 0.0
      %3458 = vmatpush2.msra.mxu0 0.0
      %3459 = vmatprep.subr.mxu0 0.0
      %3460 = vmatpush2.msra.mxu0 0.0
      %3461 = vmatprep.subr.mxu0 0.0
      %3462 = vmatpush2.msra.mxu0 0.0
      %3463 = vmatprep.subr.mxu0 0.0
      %3464 = vmatpush2.msra.mxu0 0.0
      %3465 = vmatprep.subr.mxu0 0.0
      %3466 = vmatpush2.msra.mxu0 0.0
      %3467 = vmatprep.subr.mxu0 0.0
      %3468 = vmatpush2.msra.mxu0 0.0
      %3469 = vmatprep.subr.mxu0 0.0
      %3470 = vmatpush2.msra.mxu0 0.0
      %3471 = vmatprep.mubr.f32.mxu0 0.0
      %3472 = vmatmul.mubr.f32.gmra.mxu0 %v3312
      %v3473 = vpop.f32.mrf.mxu0
      %v3474 = vadd.f32 0.0, %v3473
      %v3475 = vpop.f32.mrf.mxu0
      %3476 = vmatprep.mubr.f32.mxu0 0.0
      %3477 = vmatmul.mubr.f32.gmra.mxu0 %v3315
      %v3478 = vpop.f32.mrf.mxu0
      %v3479 = vadd.f32 0.0, %v3478
      %v3480 = vpop.f32.mrf.mxu0
      %3481 = vmatprep.mubr.f32.mxu0 0.0
      %3482 = vmatmul.mubr.f32.gmra.mxu0 %v3318
      %v3483 = vpop.f32.mrf.mxu0
      %v3484 = vadd.f32 0.0, %v3483
      %v3485 = vpop.f32.mrf.mxu0
      %3486 = vmatprep.mubr.f32.mxu0 0.0
      %3487 = vmatmul.mubr.f32.gmra.mxu0 %v3321
      %v3488 = vpop.f32.mrf.mxu0
      %v3489 = vadd.f32 0.0, %v3488
      %v3490 = vpop.f32.mrf.mxu0
      %3491 = vmatprep.mubr.f32.mxu0 0.0
      %3492 = vmatmul.mubr.f32.gmra.mxu0 %v3324
      %v3493 = vpop.f32.mrf.mxu0
      %v3494 = vadd.f32 0.0, %v3493
      %v3495 = vpop.f32.mrf.mxu0
      %3496 = vmatprep.mubr.f32.mxu0 0.0
      %3497 = vmatmul.mubr.f32.gmra.mxu0 %v3327
      %v3498 = vpop.f32.mrf.mxu0
      %v3499 = vadd.f32 0.0, %v3498
      %v3500 = vpop.f32.mrf.mxu0
      %3501 = vmatprep.mubr.f32.mxu0 0.0
      %3502 = vmatmul.mubr.f32.gmra.mxu0 %v3330
      %v3503 = vpop.f32.mrf.mxu0
      %v3504 = vadd.f32 0.0, %v3503
      %v3505 = vpop.f32.mrf.mxu0
      %3506 = vmatprep.mubr.f32.mxu0 0.0
      %3507 = vmatmul.mubr.f32.gmra.mxu0 %v3333
      %v3508 = vpop.f32.mrf.mxu0
      %v3509 = vadd.f32 0.0, %v3508
      %v3510 = vpop.f32.mrf.mxu0
      %3511 = vmatprep.mubr.f32.mxu0 0.0
      %3512 = vmatmul.mubr.f32.gmra.mxu0 %v3336
      %v3513 = vpop.f32.mrf.mxu0
      %v3514 = vadd.f32 0.0, %v3513
      %v3515 = vpop.f32.mrf.mxu0
      %3516 = vmatprep.mubr.f32.mxu0 0.0
      %3517 = vmatmul.mubr.f32.gmra.mxu0 %v3339
      %v3518 = vpop.f32.mrf.mxu0
      %v3519 = vadd.f32 0.0, %v3518
      %v3520 = vpop.f32.mrf.mxu0
      %3521 = vmatprep.mubr.f32.mxu0 0.0
      %3522 = vmatmul.mubr.f32.gmra.mxu0 %v3342
      %v3523 = vpop.f32.mrf.mxu0
      %v3524 = vadd.f32 0.0, %v3523
      %v3525 = vpop.f32.mrf.mxu0
      %3526 = vmatprep.mubr.f32.mxu0 0.0
      %3527 = vmatmul.mubr.f32.gmra.mxu0 %v3345
      %v3528 = vpop.f32.mrf.mxu0
      %v3529 = vadd.f32 0.0, %v3528
      %v3530 = vpop.f32.mrf.mxu0
      %3531 = vmatprep.mubr.f32.mxu0 0.0
      %3532 = vmatmul.mubr.f32.gmra.mxu0 %v3348
      %v3533 = vpop.f32.mrf.mxu0
      %v3534 = vadd.f32 0.0, %v3533
      %v3535 = vpop.f32.mrf.mxu0
      %3536 = vmatprep.mubr.f32.mxu0 0.0
      %3537 = vmatmul.mubr.f32.gmra.mxu0 %v3351
      %v3538 = vpop.f32.mrf.mxu0
      %v3539 = vadd.f32 0.0, %v3538
      %v3540 = vpop.f32.mrf.mxu0
      %3541 = vmatprep.mubr.f32.mxu0 0.0
      %3542 = vmatmul.mubr.f32.gmra.mxu0 %v3354
      %v3543 = vpop.f32.mrf.mxu0
      %v3544 = vadd.f32 0.0, %v3543
      %v3545 = vpop.f32.mrf.mxu0
      %3546 = vmatprep.mubr.f32.mxu0 0.0
      %3547 = vmatmul.mubr.f32.gmra.mxu0 %v3357
      %v3548 = vpop.f32.mrf.mxu0
      %v3549 = vadd.f32 0.0, %v3548
      %v3550 = vpop.f32.mrf.mxu0
      %3551 = vmatprep.mubr.f32.mxu0 0.0
      %3552 = vmatmul.mubr.f32.gmra.mxu0 %v3360
      %v3553 = vpop.f32.mrf.mxu0
      %v3554 = vadd.f32 0.0, %v3553
      %v3555 = vpop.f32.mrf.mxu0
      %3556 = vmatprep.mubr.f32.mxu0 0.0
      %3557 = vmatmul.mubr.f32.gmra.mxu0 %v3363
      %v3558 = vpop.f32.mrf.mxu0
      %v3559 = vadd.f32 0.0, %v3558
      %v3560 = vpop.f32.mrf.mxu0
      %3561 = vmatprep.mubr.f32.mxu0 0.0
      %3562 = vmatmul.mubr.f32.gmra.mxu0 %v3366
      %v3563 = vpop.f32.mrf.mxu0
      %v3564 = vadd.f32 0.0, %v3563
      %v3565 = vpop.f32.mrf.mxu0
      %3566 = vmatprep.mubr.f32.mxu0 0.0
      %3567 = vmatmul.mubr.f32.gmra.mxu0 %v3369
      %v3568 = vpop.f32.mrf.mxu0
      %v3569 = vadd.f32 0.0, %v3568
      %v3570 = vpop.f32.mrf.mxu0
      %3571 = vmatprep.mubr.f32.mxu0 0.0
      %3572 = vmatmul.mubr.f32.gmra.mxu0 %v3372
      %v3573 = vpop.f32.mrf.mxu0
      %v3574 = vadd.f32 0.0, %v3573
      %v3575 = vpop.f32.mrf.mxu0
      %3576 = vmatprep.mubr.f32.mxu0 0.0
      %3577 = vmatmul.mubr.f32.gmra.mxu0 %v3375
      %v3578 = vpop.f32.mrf.mxu0
      %v3579 = vadd.f32 0.0, %v3578
      %v3580 = vpop.f32.mrf.mxu0
      %3581 = vmatprep.mubr.f32.mxu0 0.0
      %3582 = vmatmul.mubr.f32.gmra.mxu0 %v3378
      %v3583 = vpop.f32.mrf.mxu0
      %v3584 = vadd.f32 0.0, %v3583
      %v3585 = vpop.f32.mrf.mxu0
      %3586 = vmatprep.mubr.f32.mxu0 0.0
      %3587 = vmatmul.mubr.f32.gmra.mxu0 %v3381
      %v3588 = vpop.f32.mrf.mxu0
      %v3589 = vadd.f32 0.0, %v3588
      %v3590 = vpop.f32.mrf.mxu0
      %3591 = vmatprep.mubr.f32.mxu0 0.0
      %3592 = vmatmul.mubr.f32.gmra.mxu0 %v3384
      %v3593 = vpop.f32.mrf.mxu0
      %v3594 = vadd.f32 0.0, %v3593
      %v3595 = vpop.f32.mrf.mxu0
      %3596 = vmatprep.mubr.f32.mxu0 0.0
      %3597 = vmatmul.mubr.f32.gmra.mxu0 %v3387
      %v3598 = vpop.f32.mrf.mxu0
      %v3599 = vadd.f32 0.0, %v3598
      %v3600 = vpop.f32.mrf.mxu0
      %3601 = vmatprep.mubr.f32.mxu0 0.0
      %3602 = vmatmul.mubr.f32.gmra.mxu0 %v3390
      %v3603 = vpop.f32.mrf.mxu0
      %v3604 = vadd.f32 0.0, %v3603
      %v3605 = vpop.f32.mrf.mxu0
      %3606 = vmatprep.mubr.f32.mxu0 0.0
      %3607 = vmatmul.mubr.f32.gmra.mxu0 %v3393
      %v3608 = vpop.f32.mrf.mxu0
      %v3609 = vadd.f32 0.0, %v3608
      %v3610 = vpop.f32.mrf.mxu0
      %3611 = vmatprep.mubr.f32.mxu0 0.0
      %3612 = vmatmul.mubr.f32.gmra.mxu0 %v3396
      %v3613 = vpop.f32.mrf.mxu0
      %v3614 = vadd.f32 0.0, %v3613
      %v3615 = vpop.f32.mrf.mxu0
      %3616 = vmatprep.mubr.f32.mxu0 0.0
      %3617 = vmatmul.mubr.f32.gmra.mxu0 %v3399
      %v3618 = vpop.f32.mrf.mxu0
      %v3619 = vadd.f32 0.0, %v3618
      %v3620 = vpop.f32.mrf.mxu0
      %3621 = vmatprep.mubr.f32.mxu0 0.0
      %3622 = vmatmul.mubr.f32.gmra.mxu0 %v3402
      %v3623 = vpop.f32.mrf.mxu0
      %v3624 = vadd.f32 0.0, %v3623
      %v3625 = vpop.f32.mrf.mxu0
      %3626 = vmatprep.mubr.f32.mxu0 0.0
      %3627 = vmatmul.mubr.f32.gmra.mxu0 %v3405
      %v3628 = vpop.f32.mrf.mxu0
      %v3629 = vadd.f32 0.0, %v3628
      %v3630 = vpop.f32.mrf.mxu0
      %3631 = vdwg.mxu0
      %v3632 = vadd.f32 %v3237, %v3474
      %v3633 = vadd.f32 %v3238, %v3479
      %v3634 = vadd.f32 %v3239, %v3484
      %v3635 = vadd.f32 %v3240, %v3489
      %v3636 = vadd.f32 %v3241, %v3494
      %v3637 = vadd.f32 %v3242, %v3499
      %v3638 = vadd.f32 %v3243, %v3504
      %v3639 = vadd.f32 %v3244, %v3509
      %v3640 = vadd.f32 %v3245, %v3514
      %v3641 = vadd.f32 %v3246, %v3519
      %v3642 = vadd.f32 %v3247, %v3524
      %v3643 = vadd.f32 %v3248, %v3529
      %v3644 = vadd.f32 %v3249, %v3534
      %v3645 = vadd.f32 %v3250, %v3539
      %v3646 = vadd.f32 %v3251, %v3544
      %v3647 = vadd.f32 %v3252, %v3549
      %v3648 = vadd.f32 %v3253, %v3554
      %v3649 = vadd.f32 %v3254, %v3559
      %v3650 = vadd.f32 %v3255, %v3564
      %v3651 = vadd.f32 %v3256, %v3569
      %v3652 = vadd.f32 %v3257, %v3574
      %v3653 = vadd.f32 %v3258, %v3579
      %v3654 = vadd.f32 %v3259, %v3584
      %v3655 = vadd.f32 %v3260, %v3589
      %v3656 = vadd.f32 %v3261, %v3594
      %v3657 = vadd.f32 %v3262, %v3599
      %v3658 = vadd.f32 %v3263, %v3604
      %v3659 = vadd.f32 %v3264, %v3609
      %v3660 = vadd.f32 %v3265, %v3614
      %v3661 = vadd.f32 %v3266, %v3619
      %v3662 = vadd.f32 %v3267, %v3624
      %v3663 = vadd.f32 %v3268, %v3629
      %v3664 = vld [vmem:[%s2] sm:$0x1]
      %v3666 = vlaneseq
      %v3667 = vshrl.u32 %v3666, 7
      %v3668 = vsub.s32 0, %v3667
      %v3669 = vrot.slane %v3664, %v3668
      %v3671 = vadd.f32 %v3632, %v3669
      %v3672 = vadd.f32 %v3633, %v3669
      %v3673 = vadd.f32 %v3634, %v3669
      %v3674 = vadd.f32 %v3635, %v3669
      %v3675 = vadd.f32 %v3636, %v3669
      %v3676 = vadd.f32 %v3637, %v3669
      %v3677 = vadd.f32 %v3638, %v3669
      %v3678 = vadd.f32 %v3639, %v3669
      %v3679 = vadd.f32 %v3640, %v3669
      %v3680 = vadd.f32 %v3641, %v3669
      %v3681 = vadd.f32 %v3642, %v3669
      %v3682 = vadd.f32 %v3643, %v3669
      %v3683 = vadd.f32 %v3644, %v3669
      %v3684 = vadd.f32 %v3645, %v3669
      %v3685 = vadd.f32 %v3646, %v3669
      %v3686 = vadd.f32 %v3647, %v3669
      %v3687 = vadd.f32 %v3648, %v3669
      %v3688 = vadd.f32 %v3649, %v3669
      %v3689 = vadd.f32 %v3650, %v3669
      %v3690 = vadd.f32 %v3651, %v3669
      %v3691 = vadd.f32 %v3652, %v3669
      %v3692 = vadd.f32 %v3653, %v3669
      %v3693 = vadd.f32 %v3654, %v3669
      %v3694 = vadd.f32 %v3655, %v3669
      %v3695 = vadd.f32 %v3656, %v3669
      %v3696 = vadd.f32 %v3657, %v3669
      %v3697 = vadd.f32 %v3658, %v3669
      %v3698 = vadd.f32 %v3659, %v3669
      %v3699 = vadd.f32 %v3660, %v3669
      %v3700 = vadd.f32 %v3661, %v3669
      %v3701 = vadd.f32 %v3662, %v3669
      %v3702 = vadd.f32 %v3663, %v3669
      %3703 = vst [vmem:[%s170] sm:$0xff] %v3671
      %3704 = vst [vmem:[%s170 + $0x8] sm:$0xff] %v3672
      %3705 = vst [vmem:[%s170 + $0x10] sm:$0xff] %v3673
      %3706 = vst [vmem:[%s170 + $0x18] sm:$0xff] %v3674
      %3707 = vst [vmem:[%s170 + $0x20] sm:$0xff] %v3675
      %3708 = vst [vmem:[%s170 + $0x28] sm:$0xff] %v3676
      %3709 = vst [vmem:[%s170 + $0x30] sm:$0xff] %v3677
      %3710 = vst [vmem:[%s170 + $0x38] sm:$0xff] %v3678
      %3711 = vst [vmem:[%s170 + $0x40] sm:$0xff] %v3679
      %3712 = vst [vmem:[%s170 + $0x48] sm:$0xff] %v3680
      %3713 = vst [vmem:[%s170 + $0x50] sm:$0xff] %v3681
      %3714 = vst [vmem:[%s170 + $0x58] sm:$0xff] %v3682
      %3715 = vst [vmem:[%s170 + $0x60] sm:$0xff] %v3683
      %3716 = vst [vmem:[%s170 + $0x68] sm:$0xff] %v3684
      %3717 = vst [vmem:[%s170 + $0x70] sm:$0xff] %v3685
      %3718 = vst [vmem:[%s170 + $0x78] sm:$0xff] %v3686
      %3719 = vst [vmem:[%s170 + $0x80] sm:$0xff] %v3687
      %3720 = vst [vmem:[%s170 + $0x88] sm:$0xff] %v3688
      %3721 = vst [vmem:[%s170 + $0x90] sm:$0xff] %v3689
      %3722 = vst [vmem:[%s170 + $0x98] sm:$0xff] %v3690
      %3723 = vst [vmem:[%s170 + $0xa0] sm:$0xff] %v3691
      %3724 = vst [vmem:[%s170 + $0xa8] sm:$0xff] %v3692
      %3725 = vst [vmem:[%s170 + $0xb0] sm:$0xff] %v3693
      %3726 = vst [vmem:[%s170 + $0xb8] sm:$0xff] %v3694
      %3727 = vst [vmem:[%s170 + $0xc0] sm:$0xff] %v3695
      %3728 = vst [vmem:[%s170 + $0xc8] sm:$0xff] %v3696
      %3729 = vst [vmem:[%s170 + $0xd0] sm:$0xff] %v3697
      %3730 = vst [vmem:[%s170 + $0xd8] sm:$0xff] %v3698
      %3731 = vst [vmem:[%s170 + $0xe0] sm:$0xff] %v3699
      %3732 = vst [vmem:[%s170 + $0xe8] sm:$0xff] %v3700
      %3733 = vst [vmem:[%s170 + $0xf0] sm:$0xff] %v3701
      %3734 = vst [vmem:[%s170 + $0xf8] sm:$0xff] %v3702
      %p3735 = scmp.lt.s32.totalorder %s14, 1
      %s3736 = scalar_select %p3735, %s14, 1
      %s3737 = smul.addr %s3736, 32
      %s3738 = smul.addr %s3737, 8
      %s3739 = scalar_lea.vmem %s3, %s3738
      // Predicated region
      $region33: #{in_conv_forward.1} parent=31 // pred_check
        %p3740 = pneg %p100
      $region34: #{in_conv_forward.1} parent=31 // pred_check_branch
        %3742 = sbr.rel (%p3740) target = $region36
      $region35: #{in_conv_forward.1} parent=31 // pred_region
        _
      $region36: #{in_conv_forward.1} parent=31 // pred_fallthru
        _
    $region32: #{in_conv_forward.1} parent=5 // pred_fallthru
      _
    %p3743 = scmp.le.s32.totalorder 2, %s9
    // Predicated region
    $region37: #{in_conv_forward.1} parent=5 // pred_check
      %p3744 = pneg %p3743
    $region38: #{in_conv_forward.1} parent=5 // pred_check_branch
      %3746 = sbr.rel (%p3744) target = $region40
    $region39: #{in_conv_forward.1} parent=5 // pred_region
      %s3747 = ssub.s32 %s9, 2
      // Predicated region
      $region41: #{in_conv_forward.1} parent=39 // pred_check
        %p3748 = pneg %p106
      $region42: #{in_conv_forward.1} parent=39 // pred_check_branch
        %3750 = sbr.rel (%p3748) target = $region44
      $region43: #{in_conv_forward.1} parent=39 // pred_region
        %p3751 = scmp.lt.s32.totalorder %s15, 1
        %s3752 = scalar_select %p3751, %s15, 1
        %s3753 = smul.addr %s3752, 32
        %s3754 = smul.addr %s3753, 8
        %s3755 = scalar_lea.vmem %s3, %s3754
      $region44: #{in_conv_forward.1} parent=39 // pred_fallthru
        _
    $region40: #{in_conv_forward.1} parent=5 // pred_fallthru
      _
  $region6: #{in_conv_forward.1} parent=0 // loop_footer
    %s13 = sadd.s32 1, %s9
  $region7: #{in_conv_forward.1} parent=0 // loop_footer_branch
    %8 = sbr.rel target = $region3
  $region8: #{in_conv_forward.1} parent=0 // loop_exit
    _

</llo_original>
